<compile_context>
chip_gen: v6e
topology: v6e:2x2x1
jax: 0.10.0
libtpu: 0.0.40
codegen_flags: <defaults>
</compile_context>

<pallas_src>
import math
from functools import partial

import numpy as np
import jax
import jax.numpy as jnp
from jax import lax
from jax.experimental import pallas as pl
from jax.experimental.pallas import tpu as pltpu  # noqa: F401  (TPU backend)

D_MODEL = 32
N_HEAD = 4
FRAMES = 2  # T


# ------------------------------------------------------------ fused kernel ---

def _fused_block_kernel(
    x_ref, mt_ref, ms_ref,
    wqkv_ref, bqkv_ref, wo_ref, bo_ref,
    ln1w_ref, ln1b_ref, ln2w_ref, ln2b_ref,
    taw1_ref, tab1_ref, taw2_ref, tab2_ref,
    aw1_ref, ab1_ref, aw2_ref, ab2_ref,
    wfc_ref, bfc_ref, wp_ref, bp_ref,
    o_ref,
    *, L, BT, b, T, n_head,
):
    N, D = x_ref.shape                      # N = L * BT
    hd = D // n_head
    scale = 1.0 / math.sqrt(hd)
    f32 = jnp.float32

    def layer_norm(z, w_r, b_r):            # fp32 LayerNorm over the last dim
        m = jnp.mean(z, axis=-1, keepdims=True)
        c = z - m
        v = jnp.mean(c * c, axis=-1, keepdims=True)
        return c * lax.rsqrt(v + 1e-5) * w_r[...] + b_r[...]

    def attention(z, bias):
        # z: (N, D); bias: (N, N) additive mask (0 in-group, -1e9 out-of-group).
        qkv = jnp.dot(z, wqkv_ref[...], preferred_element_type=f32) + bqkv_ref[...]
        heads = []
        for h in range(n_head):             # static unroll (n_head = 4)
            qh = qkv[:, h * hd:(h + 1) * hd]
            kh = qkv[:, D + h * hd:D + (h + 1) * hd]
            vh = qkv[:, 2 * D + h * hd:2 * D + (h + 1) * hd]
            s = lax.dot_general(qh, kh, (((1,), (1,)), ((), ())),
                                preferred_element_type=f32) * scale + bias
            s = s - jnp.max(s, axis=-1, keepdims=True)
            p = jnp.exp(s)                  # masked entries underflow to exactly 0
            p = p / jnp.sum(p, axis=-1, keepdims=True)
            heads.append(jnp.dot(p, vh, preferred_element_type=f32))
        ctx = jnp.concatenate(heads, axis=-1)                       # (N, D)
        return jnp.dot(ctx, wo_ref[...], preferred_element_type=f32) + bo_ref[...]

    def adapter(z, w1_r, b1_r, w2_r, b2_r, skip):
        h = jnp.dot(z, w1_r[...], preferred_element_type=f32) + b1_r[...]
        h = 0.5 * h * (1.0 + lax.erf(h * (1.0 / math.sqrt(2.0))))   # exact GELU
        y = jnp.dot(h, w2_r[...], preferred_element_type=f32) + b2_r[...]
        return z + y if skip else y

    # ---- row gathers: piece[k] = (L, D) slab of batch column k of x ------------
    # x rows are in (l, bi, t) order with bt = bi*T + t; piece[k][l] = x[l, bt=k].
    piece = [x_ref[pl.ds(k, L, stride=BT), :] for k in range(BT)]

    # Batch-first view of x (rows in (bt, l) order).
    x_bf = jnp.concatenate(piece, axis=0)                           # (N, D)

    # Temporal-branch input: column order permuted by the PyTorch view/permute
    # quirk (bt -> (bt % b) * T + bt // b) so the branch output lands directly in
    # (bt, l) order and the addback is a plain elementwise add.
    z_in = jnp.concatenate(
        [piece[(bt % b) * T + (bt // b)] for bt in range(BT)], axis=0)

    # ---- temporal branch: attention over the T frames of each (l, b) group ----
    yt = adapter(attention(layer_norm(z_in, ln1w_ref, ln1b_ref), mt_ref[...]),
                 taw1_ref, tab1_ref, taw2_ref, tab2_ref, skip=False)
    x2 = x_bf + yt                                                  # (N, D), (bt, l)

    # ---- spatial self-attention over the L tokens of each bt column ----------
    x3 = x2 + attention(layer_norm(x2, ln1w_ref, ln1b_ref), ms_ref[...])
    # x = x[:L] in the reference is a no-op (no prompt tokens appended).

    # ---- Adapter with skip connection -----------------------------------------
    x4 = adapter(x3, aw1_ref, ab1_ref, aw2_ref, ab2_ref, skip=True)

    # ---- MLP (c_fc -> QuickGELU -> c_proj) with fused residual -----------------
    xn = layer_norm(x4, ln2w_ref, ln2b_ref)
    hmid = jnp.dot(xn, wfc_ref[...], preferred_element_type=f32) + bfc_ref[...]
    hmid = hmid * jax.nn.sigmoid(1.702 * hmid)
    out = x4 + jnp.dot(hmid, wp_ref[...], preferred_element_type=f32) + bp_ref[...]

    # ---- lane-dense store: (bt, l) row order -> (l, bt) lane order (8, 128) ----
    cols = [out[bt * L:(bt + 1) * L, :] for bt in range(BT)]
    o_ref[...] = jnp.concatenate(cols, axis=-1).astype(o_ref.dtype)  # (L, BT*D)


# ---------------------------------------------------------------- wrapper ----

def residual_attention_block_forward(x, params, *, n_head=N_HEAD, T=FRAMES):
    """x: (L, B*T, D) float32 in PyTorch (seq, batch, d_model) layout."""
    L, BT, D = x.shape
    b = BT // T
    N = L * BT

    # Additive block-diagonal attention masks (0 = attend, -1e9 = masked),
    # expressed in the kernel's internal (bt, l) / permuted-column row orders.
    idx = np.arange(N)
    l_idx = idx % L
    bt_idx = idx // L
    bi_idx = bt_idx % b
    same_t = (l_idx[:, None] == l_idx[None, :]) & (bi_idx[:, None] == bi_idx[None, :])
    same_s = bt_idx[:, None] == bt_idx[None, :]
    mask_t = jnp.asarray(np.where(same_t, 0.0, -1e9), jnp.float32)
    mask_s = jnp.asarray(np.where(same_s, 0.0, -1e9), jnp.float32)

    kernel = partial(_fused_block_kernel, L=L, BT=BT, b=b, T=T, n_head=n_head)
    out = pl.pallas_call(
        kernel,
        out_shape=jax.ShapeDtypeStruct((L, BT * D), x.dtype),
    )(
        x.reshape(N, D), mask_t, mask_s,
        # weights pre-transposed so the kernel computes x @ W directly
        params['attn_wqkv'].T, params['attn_bqkv'].reshape(1, 3 * D),
        params['attn_wo'].T, params['attn_bo'].reshape(1, D),
        params['ln1_w'].reshape(1, D), params['ln1_b'].reshape(1, D),
        params['ln2_w'].reshape(1, D), params['ln2_b'].reshape(1, D),
        params['t_adapter']['w1'].T, params['t_adapter']['b1'].reshape(1, -1),
        params['t_adapter']['w2'].T, params['t_adapter']['b2'].reshape(1, D),
        params['adapter']['w1'].T, params['adapter']['b1'].reshape(1, -1),
        params['adapter']['w2'].T, params['adapter']['b2'].reshape(1, D),
        params['mlp_wfc'].T, params['mlp_bfc'].reshape(1, 4 * D),
        params['mlp_wp'].T, params['mlp_bp'].reshape(1, D),
    )
    return out.reshape(L, BT, D)


# ------------------------------------------------------ params & reference ----

def init_params(key, d=D_MODEL):
    ks = jax.random.split(key, 16)
    dh = int(d * 0.25)
    s = 0.05

    def nrm(k, shape):
        return s * jax.random.normal(k, shape, jnp.float32)

    return {
        'attn_wqkv': nrm(ks[0], (3 * d, d)), 'attn_bqkv': nrm(ks[1], (3 * d,)),
        'attn_wo': nrm(ks[2], (d, d)), 'attn_bo': nrm(ks[3], (d,)),
        'ln1_w': jnp.ones((d,), jnp.float32), 'ln1_b': jnp.zeros((d,), jnp.float32),
        'ln2_w': jnp.ones((d,), jnp.float32), 'ln2_b': jnp.zeros((d,), jnp.float32),
        't_adapter': {'w1': nrm(ks[4], (dh, d)), 'b1': nrm(ks[5], (dh,)),
                      'w2': nrm(ks[6], (d, dh)), 'b2': nrm(ks[7], (d,))},
        'adapter': {'w1': nrm(ks[8], (dh, d)), 'b1': nrm(ks[9], (dh,)),
                    'w2': nrm(ks[10], (d, dh)), 'b2': nrm(ks[11], (d,))},
        'mlp_wfc': nrm(ks[12], (4 * d, d)), 'mlp_bfc': nrm(ks[13], (4 * d,)),
        'mlp_wp': nrm(ks[14], (d, 4 * d)), 'mlp_bp': nrm(ks[15], (d,)),
    }


def _ref_ln(x, w, b):
    m = jnp.mean(x, -1, keepdims=True)
    v = jnp.mean((x - m) ** 2, -1, keepdims=True)
    return (x - m) / jnp.sqrt(v + 1e-5) * w + b


def _ref_mha(x_sbd, wqkv, bqkv, wo, bo, n_head):
    S, B, D = x_sbd.shape
    hd = D // n_head
    qkv = jnp.einsum('sbd,ed->sbe', x_sbd, wqkv) + bqkv
    q, k, v = (t.reshape(S, B, n_head, hd)
               for t in (qkv[..., :D], qkv[..., D:2 * D], qkv[..., 2 * D:]))
    s = jnp.einsum('qbhd,kbhd->bhqk', q, k) / math.sqrt(hd)
    p = jax.nn.softmax(s, axis=-1)
    ctx = jnp.einsum('bhqk,kbhd->qbhd', p, v).reshape(S, B, D)
    return jnp.einsum('sbd,ed->sbe', ctx, wo) + bo


def _ref_adapter(x, p, skip):
    h = x @ p['w1'].T + p['b1']
    h = 0.5 * h * (1.0 + lax.erf(h / math.sqrt(2.0)))
    y = h @ p['w2'].T + p['b2']
    return x + y if skip else y


def _ref_forward(x, params, n_head, T):
    L, BT, D = x.shape
    b = BT // T
    attn = lambda z: _ref_mha(z, params['attn_wqkv'], params['attn_bqkv'],
                              params['attn_wo'], params['attn_bo'], n_head)
    xt = jnp.transpose(x.reshape(L, b, T, D), (2, 0, 1, 3)).reshape(T, L * b, D)
    xt = _ref_adapter(attn(_ref_ln(xt, params['ln1_w'], params['ln1_b'])),
                      params['t_adapter'], False)
    xt = jnp.transpose(xt.reshape(T, L, b, D), (1, 0, 2, 3)).reshape(L, T * b, D)
    x = x + xt
    x = x + attn(_ref_ln(x, params['ln1_w'], params['ln1_b']))
    x = x[:L]
    x = _ref_adapter(x, params['adapter'], True)
    xn = _ref_ln(x, params['ln2_w'], params['ln2_b'])
    h = xn @ params['mlp_wfc'].T + params['mlp_bfc']
    h = h * jax.nn.sigmoid(1.702 * h)
    return x + (h @ params['mlp_wp'].T + params['mlp_bp'])


# -------------------------------------------------------------------- main ----

if __name__ == "__main__":
    key = jax.random.PRNGKey(0)
    k_param, k_x = jax.random.split(key)
    L, b, T, D = 8, 2, FRAMES, D_MODEL
    params = init_params(k_param, D)
    x = jax.random.normal(k_x, (L, b * T, D), jnp.float32)

    fwd = jax.jit(partial(residual_attention_block_forward, n_head=N_HEAD, T=T))
    out = jax.block_until_ready(fwd(x, params))

    ref = _ref_forward(x, params, N_HEAD, T)
    assert out.shape == (L, b * T, D)
    err = float(jnp.max(jnp.abs(out - ref)))
    assert jnp.allclose(out, ref, atol=1e-4, rtol=1e-4), err
    print("KERNEL_OK")
</pallas_src>

<mosaic_0001>
module attributes {stable_mosaic.version = 11 : i64} {
  func.func @_fused_block_kernel(%arg0: memref<32x32xf32, #tpu.memory_space<vmem>>, %arg1: memref<32x32xf32, #tpu.memory_space<vmem>>, %arg2: memref<32x32xf32, #tpu.memory_space<vmem>>, %arg3: memref<32x96xf32, #tpu.memory_space<vmem>>, %arg4: memref<1x96xf32, #tpu.memory_space<vmem>>, %arg5: memref<32x32xf32, #tpu.memory_space<vmem>>, %arg6: memref<1x32xf32, #tpu.memory_space<vmem>>, %arg7: memref<1x32xf32, #tpu.memory_space<vmem>>, %arg8: memref<1x32xf32, #tpu.memory_space<vmem>>, %arg9: memref<1x32xf32, #tpu.memory_space<vmem>>, %arg10: memref<1x32xf32, #tpu.memory_space<vmem>>, %arg11: memref<32x8xf32, #tpu.memory_space<vmem>>, %arg12: memref<1x8xf32, #tpu.memory_space<vmem>>, %arg13: memref<8x32xf32, #tpu.memory_space<vmem>>, %arg14: memref<1x32xf32, #tpu.memory_space<vmem>>, %arg15: memref<32x8xf32, #tpu.memory_space<vmem>>, %arg16: memref<1x8xf32, #tpu.memory_space<vmem>>, %arg17: memref<8x32xf32, #tpu.memory_space<vmem>>, %arg18: memref<1x32xf32, #tpu.memory_space<vmem>>, %arg19: memref<32x128xf32, #tpu.memory_space<vmem>>, %arg20: memref<1x128xf32, #tpu.memory_space<vmem>>, %arg21: memref<128x32xf32, #tpu.memory_space<vmem>>, %arg22: memref<1x32xf32, #tpu.memory_space<vmem>>, %arg23: memref<8x128xf32, #tpu.memory_space<vmem>>) attributes {dimension_semantics = [], scalar_prefetch = 0 : i64, scratch_operands = 0 : i64, tpu.core_type = #tpu.core_type<tc>} {
    %c0 = arith.constant 0 : index
    %c0_0 = arith.constant 0 : index
    %0 = tpu.strided_load %arg0[%c0, %c0_0] {strides = array<i32: 4, 1>} : memref<32x32xf32, #tpu.memory_space<vmem>>, vector<8x32xf32>
    %c1 = arith.constant 1 : index
    %c0_1 = arith.constant 0 : index
    %1 = tpu.strided_load %arg0[%c1, %c0_1] {strides = array<i32: 4, 1>} : memref<32x32xf32, #tpu.memory_space<vmem>>, vector<8x32xf32>
    %c2 = arith.constant 2 : index
    %c0_2 = arith.constant 0 : index
    %2 = tpu.strided_load %arg0[%c2, %c0_2] {strides = array<i32: 4, 1>} : memref<32x32xf32, #tpu.memory_space<vmem>>, vector<8x32xf32>
    %c3 = arith.constant 3 : index
    %c0_3 = arith.constant 0 : index
    %3 = tpu.strided_load %arg0[%c3, %c0_3] {strides = array<i32: 4, 1>} : memref<32x32xf32, #tpu.memory_space<vmem>>, vector<8x32xf32>
    %4 = tpu.concatenate %0, %1, %2, %3 in 0 : vector<8x32xf32>, vector<8x32xf32>, vector<8x32xf32>, vector<8x32xf32> -> vector<32x32xf32>
    %5 = tpu.concatenate %0, %2, %1, %3 in 0 : vector<8x32xf32>, vector<8x32xf32>, vector<8x32xf32>, vector<8x32xf32> -> vector<32x32xf32>
    %cst = arith.constant dense<0.000000e+00> : vector<32xf32>
    %6 = vector.multi_reduction <add>, %5, %cst [1] : vector<32x32xf32> to vector<32xf32>
    %7 = vector.shape_cast %6 : vector<32xf32> to vector<32x1xf32>
    %cst_4 = arith.constant 3.200000e+01 : f32
    %8 = vector.broadcast %cst_4 : f32 to vector<32x1xf32>
    %9 = arith.divf %7, %8 : vector<32x1xf32>
    %10 = vector.broadcast %9 : vector<32x1xf32> to vector<32x32xf32>
    %11 = arith.subf %5, %10 : vector<32x32xf32>
    %12 = arith.mulf %11, %11 : vector<32x32xf32>
    %cst_5 = arith.constant dense<0.000000e+00> : vector<32xf32>
    %13 = vector.multi_reduction <add>, %12, %cst_5 [1] : vector<32x32xf32> to vector<32xf32>
    %14 = vector.shape_cast %13 : vector<32xf32> to vector<32x1xf32>
    %cst_6 = arith.constant 3.200000e+01 : f32
    %15 = vector.broadcast %cst_6 : f32 to vector<32x1xf32>
    %16 = arith.divf %14, %15 : vector<32x1xf32>
    %cst_7 = arith.constant 9.99999974E-6 : f32
    %17 = vector.broadcast %cst_7 : f32 to vector<32x1xf32>
    %18 = arith.addf %16, %17 : vector<32x1xf32>
    %19 = math.rsqrt %18 : vector<32x1xf32>
    %20 = vector.broadcast %19 : vector<32x1xf32> to vector<32x32xf32>
    %21 = arith.mulf %11, %20 : vector<32x32xf32>
    %c0_8 = arith.constant 0 : index
    %c0_9 = arith.constant 0 : index
    %22 = vector.load %arg7[%c0_8, %c0_9] : memref<1x32xf32, #tpu.memory_space<vmem>>, vector<1x32xf32>
    %23 = vector.broadcast %22 : vector<1x32xf32> to vector<32x32xf32>
    %24 = arith.mulf %21, %23 : vector<32x32xf32>
    %c0_10 = arith.constant 0 : index
    %c0_11 = arith.constant 0 : index
    %25 = vector.load %arg8[%c0_10, %c0_11] : memref<1x32xf32, #tpu.memory_space<vmem>>, vector<1x32xf32>
    %26 = vector.broadcast %25 : vector<1x32xf32> to vector<32x32xf32>
    %27 = arith.addf %24, %26 : vector<32x32xf32>
    %c0_12 = arith.constant 0 : index
    %c0_13 = arith.constant 0 : index
    %28 = vector.load %arg1[%c0_12, %c0_13] : memref<32x32xf32, #tpu.memory_space<vmem>>, vector<32x32xf32>
    %c0_14 = arith.constant 0 : index
    %c0_15 = arith.constant 0 : index
    %29 = vector.load %arg3[%c0_14, %c0_15] : memref<32x96xf32, #tpu.memory_space<vmem>>, vector<32x96xf32>
    %cst_16 = arith.constant dense<0.000000e+00> : vector<32x96xf32>
    %30 = tpu.matmul %27, %29, %cst_16 {dimension_numbers = #tpu.dot_dimension_numbers<[1], [0], [0], [1], [0, 0, 1, 1], [], []>} : vector<32x32xf32>, vector<32x96xf32>, vector<32x96xf32> -> vector<32x96xf32>
    %c0_17 = arith.constant 0 : index
    %c0_18 = arith.constant 0 : index
    %31 = vector.load %arg4[%c0_17, %c0_18] : memref<1x96xf32, #tpu.memory_space<vmem>>, vector<1x96xf32>
    %32 = vector.broadcast %31 : vector<1x96xf32> to vector<32x96xf32>
    %33 = arith.addf %30, %32 : vector<32x96xf32>
    %34 = vector.extract_strided_slice %33 {offsets = [0, 0], sizes = [32, 8], strides = [1, 1]} : vector<32x96xf32> to vector<32x8xf32>
    %35 = vector.extract_strided_slice %33 {offsets = [0, 32], sizes = [32, 8], strides = [1, 1]} : vector<32x96xf32> to vector<32x8xf32>
    %36 = vector.extract_strided_slice %33 {offsets = [0, 64], sizes = [32, 8], strides = [1, 1]} : vector<32x96xf32> to vector<32x8xf32>
    %cst_19 = arith.constant dense<0.000000e+00> : vector<32x32xf32>
    %37 = tpu.matmul %34, %35, %cst_19 {dimension_numbers = #tpu.dot_dimension_numbers<[1], [1], [0], [0], [0, 0, 1, 0], [], []>} : vector<32x8xf32>, vector<32x8xf32>, vector<32x32xf32> -> vector<32x32xf32>
    %cst_20 = arith.constant 0.353553385 : f32
    %38 = vector.broadcast %cst_20 : f32 to vector<32x32xf32>
    %39 = arith.mulf %37, %38 : vector<32x32xf32>
    %40 = arith.addf %39, %28 : vector<32x32xf32>
    %cst_21 = arith.constant dense<0xFF800000> : vector<32xf32>
    %41 = vector.multi_reduction <maximumf>, %40, %cst_21 [1] : vector<32x32xf32> to vector<32xf32>
    %42 = vector.shape_cast %41 : vector<32xf32> to vector<32x1xf32>
    %43 = vector.broadcast %42 : vector<32x1xf32> to vector<32x32xf32>
    %44 = arith.subf %40, %43 : vector<32x32xf32>
    %45 = math.exp %44 : vector<32x32xf32>
    %cst_22 = arith.constant dense<0.000000e+00> : vector<32xf32>
    %46 = vector.multi_reduction <add>, %45, %cst_22 [1] : vector<32x32xf32> to vector<32xf32>
    %47 = vector.shape_cast %46 : vector<32xf32> to vector<32x1xf32>
    %48 = vector.broadcast %47 : vector<32x1xf32> to vector<32x32xf32>
    %49 = arith.divf %45, %48 : vector<32x32xf32>
    %cst_23 = arith.constant dense<0.000000e+00> : vector<32x8xf32>
    %50 = tpu.matmul %49, %36, %cst_23 {dimension_numbers = #tpu.dot_dimension_numbers<[1], [0], [0], [1], [0, 0, 1, 1], [], []>} : vector<32x32xf32>, vector<32x8xf32>, vector<32x8xf32> -> vector<32x8xf32>
    %51 = vector.extract_strided_slice %33 {offsets = [0, 8], sizes = [32, 8], strides = [1, 1]} : vector<32x96xf32> to vector<32x8xf32>
    %52 = vector.extract_strided_slice %33 {offsets = [0, 40], sizes = [32, 8], strides = [1, 1]} : vector<32x96xf32> to vector<32x8xf32>
    %53 = vector.extract_strided_slice %33 {offsets = [0, 72], sizes = [32, 8], strides = [1, 1]} : vector<32x96xf32> to vector<32x8xf32>
    %cst_24 = arith.constant dense<0.000000e+00> : vector<32x32xf32>
    %54 = tpu.matmul %51, %52, %cst_24 {dimension_numbers = #tpu.dot_dimension_numbers<[1], [1], [0], [0], [0, 0, 1, 0], [], []>} : vector<32x8xf32>, vector<32x8xf32>, vector<32x32xf32> -> vector<32x32xf32>
    %cst_25 = arith.constant 0.353553385 : f32
    %55 = vector.broadcast %cst_25 : f32 to vector<32x32xf32>
    %56 = arith.mulf %54, %55 : vector<32x32xf32>
    %57 = arith.addf %56, %28 : vector<32x32xf32>
    %cst_26 = arith.constant dense<0xFF800000> : vector<32xf32>
    %58 = vector.multi_reduction <maximumf>, %57, %cst_26 [1] : vector<32x32xf32> to vector<32xf32>
    %59 = vector.shape_cast %58 : vector<32xf32> to vector<32x1xf32>
    %60 = vector.broadcast %59 : vector<32x1xf32> to vector<32x32xf32>
    %61 = arith.subf %57, %60 : vector<32x32xf32>
    %62 = math.exp %61 : vector<32x32xf32>
    %cst_27 = arith.constant dense<0.000000e+00> : vector<32xf32>
    %63 = vector.multi_reduction <add>, %62, %cst_27 [1] : vector<32x32xf32> to vector<32xf32>
    %64 = vector.shape_cast %63 : vector<32xf32> to vector<32x1xf32>
    %65 = vector.broadcast %64 : vector<32x1xf32> to vector<32x32xf32>
    %66 = arith.divf %62, %65 : vector<32x32xf32>
    %cst_28 = arith.constant dense<0.000000e+00> : vector<32x8xf32>
    %67 = tpu.matmul %66, %53, %cst_28 {dimension_numbers = #tpu.dot_dimension_numbers<[1], [0], [0], [1], [0, 0, 1, 1], [], []>} : vector<32x32xf32>, vector<32x8xf32>, vector<32x8xf32> -> vector<32x8xf32>
    %68 = vector.extract_strided_slice %33 {offsets = [0, 16], sizes = [32, 8], strides = [1, 1]} : vector<32x96xf32> to vector<32x8xf32>
    %69 = vector.extract_strided_slice %33 {offsets = [0, 48], sizes = [32, 8], strides = [1, 1]} : vector<32x96xf32> to vector<32x8xf32>
    %70 = vector.extract_strided_slice %33 {offsets = [0, 80], sizes = [32, 8], strides = [1, 1]} : vector<32x96xf32> to vector<32x8xf32>
    %cst_29 = arith.constant dense<0.000000e+00> : vector<32x32xf32>
    %71 = tpu.matmul %68, %69, %cst_29 {dimension_numbers = #tpu.dot_dimension_numbers<[1], [1], [0], [0], [0, 0, 1, 0], [], []>} : vector<32x8xf32>, vector<32x8xf32>, vector<32x32xf32> -> vector<32x32xf32>
    %cst_30 = arith.constant 0.353553385 : f32
    %72 = vector.broadcast %cst_30 : f32 to vector<32x32xf32>
    %73 = arith.mulf %71, %72 : vector<32x32xf32>
    %74 = arith.addf %73, %28 : vector<32x32xf32>
    %cst_31 = arith.constant dense<0xFF800000> : vector<32xf32>
    %75 = vector.multi_reduction <maximumf>, %74, %cst_31 [1] : vector<32x32xf32> to vector<32xf32>
    %76 = vector.shape_cast %75 : vector<32xf32> to vector<32x1xf32>
    %77 = vector.broadcast %76 : vector<32x1xf32> to vector<32x32xf32>
    %78 = arith.subf %74, %77 : vector<32x32xf32>
    %79 = math.exp %78 : vector<32x32xf32>
    %cst_32 = arith.constant dense<0.000000e+00> : vector<32xf32>
    %80 = vector.multi_reduction <add>, %79, %cst_32 [1] : vector<32x32xf32> to vector<32xf32>
    %81 = vector.shape_cast %80 : vector<32xf32> to vector<32x1xf32>
    %82 = vector.broadcast %81 : vector<32x1xf32> to vector<32x32xf32>
    %83 = arith.divf %79, %82 : vector<32x32xf32>
    %cst_33 = arith.constant dense<0.000000e+00> : vector<32x8xf32>
    %84 = tpu.matmul %83, %70, %cst_33 {dimension_numbers = #tpu.dot_dimension_numbers<[1], [0], [0], [1], [0, 0, 1, 1], [], []>} : vector<32x32xf32>, vector<32x8xf32>, vector<32x8xf32> -> vector<32x8xf32>
    %85 = vector.extract_strided_slice %33 {offsets = [0, 24], sizes = [32, 8], strides = [1, 1]} : vector<32x96xf32> to vector<32x8xf32>
    %86 = vector.extract_strided_slice %33 {offsets = [0, 56], sizes = [32, 8], strides = [1, 1]} : vector<32x96xf32> to vector<32x8xf32>
    %87 = vector.extract_strided_slice %33 {offsets = [0, 88], sizes = [32, 8], strides = [1, 1]} : vector<32x96xf32> to vector<32x8xf32>
    %cst_34 = arith.constant dense<0.000000e+00> : vector<32x32xf32>
    %88 = tpu.matmul %85, %86, %cst_34 {dimension_numbers = #tpu.dot_dimension_numbers<[1], [1], [0], [0], [0, 0, 1, 0], [], []>} : vector<32x8xf32>, vector<32x8xf32>, vector<32x32xf32> -> vector<32x32xf32>
    %cst_35 = arith.constant 0.353553385 : f32
    %89 = vector.broadcast %cst_35 : f32 to vector<32x32xf32>
    %90 = arith.mulf %88, %89 : vector<32x32xf32>
    %91 = arith.addf %90, %28 : vector<32x32xf32>
    %cst_36 = arith.constant dense<0xFF800000> : vector<32xf32>
    %92 = vector.multi_reduction <maximumf>, %91, %cst_36 [1] : vector<32x32xf32> to vector<32xf32>
    %93 = vector.shape_cast %92 : vector<32xf32> to vector<32x1xf32>
    %94 = vector.broadcast %93 : vector<32x1xf32> to vector<32x32xf32>
    %95 = arith.subf %91, %94 : vector<32x32xf32>
    %96 = math.exp %95 : vector<32x32xf32>
    %cst_37 = arith.constant dense<0.000000e+00> : vector<32xf32>
    %97 = vector.multi_reduction <add>, %96, %cst_37 [1] : vector<32x32xf32> to vector<32xf32>
    %98 = vector.shape_cast %97 : vector<32xf32> to vector<32x1xf32>
    %99 = vector.broadcast %98 : vector<32x1xf32> to vector<32x32xf32>
    %100 = arith.divf %96, %99 : vector<32x32xf32>
    %cst_38 = arith.constant dense<0.000000e+00> : vector<32x8xf32>
    %101 = tpu.matmul %100, %87, %cst_38 {dimension_numbers = #tpu.dot_dimension_numbers<[1], [0], [0], [1], [0, 0, 1, 1], [], []>} : vector<32x32xf32>, vector<32x8xf32>, vector<32x8xf32> -> vector<32x8xf32>
    %102 = tpu.concatenate %50, %67, %84, %101 in 1 : vector<32x8xf32>, vector<32x8xf32>, vector<32x8xf32>, vector<32x8xf32> -> vector<32x32xf32>
    %c0_39 = arith.constant 0 : index
    %c0_40 = arith.constant 0 : index
    %103 = vector.load %arg5[%c0_39, %c0_40] : memref<32x32xf32, #tpu.memory_space<vmem>>, vector<32x32xf32>
    %cst_41 = arith.constant dense<0.000000e+00> : vector<32x32xf32>
    %104 = tpu.matmul %102, %103, %cst_41 {dimension_numbers = #tpu.dot_dimension_numbers<[1], [0], [0], [1], [0, 0, 1, 1], [], []>} : vector<32x32xf32>, vector<32x32xf32>, vector<32x32xf32> -> vector<32x32xf32>
    %c0_42 = arith.constant 0 : index
    %c0_43 = arith.constant 0 : index
    %105 = vector.load %arg6[%c0_42, %c0_43] : memref<1x32xf32, #tpu.memory_space<vmem>>, vector<1x32xf32>
    %106 = vector.broadcast %105 : vector<1x32xf32> to vector<32x32xf32>
    %107 = arith.addf %104, %106 : vector<32x32xf32>
    %c0_44 = arith.constant 0 : index
    %c0_45 = arith.constant 0 : index
    %108 = vector.load %arg11[%c0_44, %c0_45] : memref<32x8xf32, #tpu.memory_space<vmem>>, vector<32x8xf32>
    %cst_46 = arith.constant dense<0.000000e+00> : vector<32x8xf32>
    %109 = tpu.matmul %107, %108, %cst_46 {dimension_numbers = #tpu.dot_dimension_numbers<[1], [0], [0], [1], [0, 0, 1, 1], [], []>} : vector<32x32xf32>, vector<32x8xf32>, vector<32x8xf32> -> vector<32x8xf32>
    %c0_47 = arith.constant 0 : index
    %c0_48 = arith.constant 0 : index
    %110 = vector.load %arg12[%c0_47, %c0_48] : memref<1x8xf32, #tpu.memory_space<vmem>>, vector<1x8xf32>
    %111 = vector.broadcast %110 : vector<1x8xf32> to vector<32x8xf32>
    %112 = arith.addf %109, %111 : vector<32x8xf32>
    %cst_49 = arith.constant 5.000000e-01 : f32
    %113 = vector.broadcast %cst_49 : f32 to vector<32x8xf32>
    %114 = arith.mulf %113, %112 : vector<32x8xf32>
    %cst_50 = arith.constant 0.707106769 : f32
    %115 = vector.broadcast %cst_50 : f32 to vector<32x8xf32>
    %116 = arith.mulf %112, %115 : vector<32x8xf32>
    %117 = math.erf %116 : vector<32x8xf32>
    %cst_51 = arith.constant 1.000000e+00 : f32
    %118 = vector.broadcast %cst_51 : f32 to vector<32x8xf32>
    %119 = arith.addf %118, %117 : vector<32x8xf32>
    %120 = arith.mulf %114, %119 : vector<32x8xf32>
    %c0_52 = arith.constant 0 : index
    %c0_53 = arith.constant 0 : index
    %121 = vector.load %arg13[%c0_52, %c0_53] : memref<8x32xf32, #tpu.memory_space<vmem>>, vector<8x32xf32>
    %cst_54 = arith.constant dense<0.000000e+00> : vector<32x32xf32>
    %122 = tpu.matmul %120, %121, %cst_54 {dimension_numbers = #tpu.dot_dimension_numbers<[1], [0], [0], [1], [0, 0, 1, 1], [], []>} : vector<32x8xf32>, vector<8x32xf32>, vector<32x32xf32> -> vector<32x32xf32>
    %c0_55 = arith.constant 0 : index
    %c0_56 = arith.constant 0 : index
    %123 = vector.load %arg14[%c0_55, %c0_56] : memref<1x32xf32, #tpu.memory_space<vmem>>, vector<1x32xf32>
    %124 = vector.broadcast %123 : vector<1x32xf32> to vector<32x32xf32>
    %125 = arith.addf %122, %124 : vector<32x32xf32>
    %126 = arith.addf %4, %125 : vector<32x32xf32>
    %cst_57 = arith.constant dense<0.000000e+00> : vector<32xf32>
    %127 = vector.multi_reduction <add>, %126, %cst_57 [1] : vector<32x32xf32> to vector<32xf32>
    %128 = vector.shape_cast %127 : vector<32xf32> to vector<32x1xf32>
    %cst_58 = arith.constant 3.200000e+01 : f32
    %129 = vector.broadcast %cst_58 : f32 to vector<32x1xf32>
    %130 = arith.divf %128, %129 : vector<32x1xf32>
    %131 = vector.broadcast %130 : vector<32x1xf32> to vector<32x32xf32>
    %132 = arith.subf %126, %131 : vector<32x32xf32>
    %133 = arith.mulf %132, %132 : vector<32x32xf32>
    %cst_59 = arith.constant dense<0.000000e+00> : vector<32xf32>
    %134 = vector.multi_reduction <add>, %133, %cst_59 [1] : vector<32x32xf32> to vector<32xf32>
    %135 = vector.shape_cast %134 : vector<32xf32> to vector<32x1xf32>
    %cst_60 = arith.constant 3.200000e+01 : f32
    %136 = vector.broadcast %cst_60 : f32 to vector<32x1xf32>
    %137 = arith.divf %135, %136 : vector<32x1xf32>
    %cst_61 = arith.constant 9.99999974E-6 : f32
    %138 = vector.broadcast %cst_61 : f32 to vector<32x1xf32>
    %139 = arith.addf %137, %138 : vector<32x1xf32>
    %140 = math.rsqrt %139 : vector<32x1xf32>
    %141 = vector.broadcast %140 : vector<32x1xf32> to vector<32x32xf32>
    %142 = arith.mulf %132, %141 : vector<32x32xf32>
    %c0_62 = arith.constant 0 : index
    %c0_63 = arith.constant 0 : index
    %143 = vector.load %arg7[%c0_62, %c0_63] : memref<1x32xf32, #tpu.memory_space<vmem>>, vector<1x32xf32>
    %144 = vector.broadcast %143 : vector<1x32xf32> to vector<32x32xf32>
    %145 = arith.mulf %142, %144 : vector<32x32xf32>
    %c0_64 = arith.constant 0 : index
    %c0_65 = arith.constant 0 : index
    %146 = vector.load %arg8[%c0_64, %c0_65] : memref<1x32xf32, #tpu.memory_space<vmem>>, vector<1x32xf32>
    %147 = vector.broadcast %146 : vector<1x32xf32> to vector<32x32xf32>
    %148 = arith.addf %145, %147 : vector<32x32xf32>
    %c0_66 = arith.constant 0 : index
    %c0_67 = arith.constant 0 : index
    %149 = vector.load %arg2[%c0_66, %c0_67] : memref<32x32xf32, #tpu.memory_space<vmem>>, vector<32x32xf32>
    %c0_68 = arith.constant 0 : index
    %c0_69 = arith.constant 0 : index
    %150 = vector.load %arg3[%c0_68, %c0_69] : memref<32x96xf32, #tpu.memory_space<vmem>>, vector<32x96xf32>
    %cst_70 = arith.constant dense<0.000000e+00> : vector<32x96xf32>
    %151 = tpu.matmul %148, %150, %cst_70 {dimension_numbers = #tpu.dot_dimension_numbers<[1], [0], [0], [1], [0, 0, 1, 1], [], []>} : vector<32x32xf32>, vector<32x96xf32>, vector<32x96xf32> -> vector<32x96xf32>
    %c0_71 = arith.constant 0 : index
    %c0_72 = arith.constant 0 : index
    %152 = vector.load %arg4[%c0_71, %c0_72] : memref<1x96xf32, #tpu.memory_space<vmem>>, vector<1x96xf32>
    %153 = vector.broadcast %152 : vector<1x96xf32> to vector<32x96xf32>
    %154 = arith.addf %151, %153 : vector<32x96xf32>
    %155 = vector.extract_strided_slice %154 {offsets = [0, 0], sizes = [32, 8], strides = [1, 1]} : vector<32x96xf32> to vector<32x8xf32>
    %156 = vector.extract_strided_slice %154 {offsets = [0, 32], sizes = [32, 8], strides = [1, 1]} : vector<32x96xf32> to vector<32x8xf32>
    %157 = vector.extract_strided_slice %154 {offsets = [0, 64], sizes = [32, 8], strides = [1, 1]} : vector<32x96xf32> to vector<32x8xf32>
    %cst_73 = arith.constant dense<0.000000e+00> : vector<32x32xf32>
    %158 = tpu.matmul %155, %156, %cst_73 {dimension_numbers = #tpu.dot_dimension_numbers<[1], [1], [0], [0], [0, 0, 1, 0], [], []>} : vector<32x8xf32>, vector<32x8xf32>, vector<32x32xf32> -> vector<32x32xf32>
    %cst_74 = arith.constant 0.353553385 : f32
    %159 = vector.broadcast %cst_74 : f32 to vector<32x32xf32>
    %160 = arith.mulf %158, %159 : vector<32x32xf32>
    %161 = arith.addf %160, %149 : vector<32x32xf32>
    %cst_75 = arith.constant dense<0xFF800000> : vector<32xf32>
    %162 = vector.multi_reduction <maximumf>, %161, %cst_75 [1] : vector<32x32xf32> to vector<32xf32>
    %163 = vector.shape_cast %162 : vector<32xf32> to vector<32x1xf32>
    %164 = vector.broadcast %163 : vector<32x1xf32> to vector<32x32xf32>
    %165 = arith.subf %161, %164 : vector<32x32xf32>
    %166 = math.exp %165 : vector<32x32xf32>
    %cst_76 = arith.constant dense<0.000000e+00> : vector<32xf32>
    %167 = vector.multi_reduction <add>, %166, %cst_76 [1] : vector<32x32xf32> to vector<32xf32>
    %168 = vector.shape_cast %167 : vector<32xf32> to vector<32x1xf32>
    %169 = vector.broadcast %168 : vector<32x1xf32> to vector<32x32xf32>
    %170 = arith.divf %166, %169 : vector<32x32xf32>
    %cst_77 = arith.constant dense<0.000000e+00> : vector<32x8xf32>
    %171 = tpu.matmul %170, %157, %cst_77 {dimension_numbers = #tpu.dot_dimension_numbers<[1], [0], [0], [1], [0, 0, 1, 1], [], []>} : vector<32x32xf32>, vector<32x8xf32>, vector<32x8xf32> -> vector<32x8xf32>
    %172 = vector.extract_strided_slice %154 {offsets = [0, 8], sizes = [32, 8], strides = [1, 1]} : vector<32x96xf32> to vector<32x8xf32>
    %173 = vector.extract_strided_slice %154 {offsets = [0, 40], sizes = [32, 8], strides = [1, 1]} : vector<32x96xf32> to vector<32x8xf32>
    %174 = vector.extract_strided_slice %154 {offsets = [0, 72], sizes = [32, 8], strides = [1, 1]} : vector<32x96xf32> to vector<32x8xf32>
    %cst_78 = arith.constant dense<0.000000e+00> : vector<32x32xf32>
    %175 = tpu.matmul %172, %173, %cst_78 {dimension_numbers = #tpu.dot_dimension_numbers<[1], [1], [0], [0], [0, 0, 1, 0], [], []>} : vector<32x8xf32>, vector<32x8xf32>, vector<32x32xf32> -> vector<32x32xf32>
    %cst_79 = arith.constant 0.353553385 : f32
    %176 = vector.broadcast %cst_79 : f32 to vector<32x32xf32>
    %177 = arith.mulf %175, %176 : vector<32x32xf32>
    %178 = arith.addf %177, %149 : vector<32x32xf32>
    %cst_80 = arith.constant dense<0xFF800000> : vector<32xf32>
    %179 = vector.multi_reduction <maximumf>, %178, %cst_80 [1] : vector<32x32xf32> to vector<32xf32>
    %180 = vector.shape_cast %179 : vector<32xf32> to vector<32x1xf32>
    %181 = vector.broadcast %180 : vector<32x1xf32> to vector<32x32xf32>
    %182 = arith.subf %178, %181 : vector<32x32xf32>
    %183 = math.exp %182 : vector<32x32xf32>
    %cst_81 = arith.constant dense<0.000000e+00> : vector<32xf32>
    %184 = vector.multi_reduction <add>, %183, %cst_81 [1] : vector<32x32xf32> to vector<32xf32>
    %185 = vector.shape_cast %184 : vector<32xf32> to vector<32x1xf32>
    %186 = vector.broadcast %185 : vector<32x1xf32> to vector<32x32xf32>
    %187 = arith.divf %183, %186 : vector<32x32xf32>
    %cst_82 = arith.constant dense<0.000000e+00> : vector<32x8xf32>
    %188 = tpu.matmul %187, %174, %cst_82 {dimension_numbers = #tpu.dot_dimension_numbers<[1], [0], [0], [1], [0, 0, 1, 1], [], []>} : vector<32x32xf32>, vector<32x8xf32>, vector<32x8xf32> -> vector<32x8xf32>
    %189 = vector.extract_strided_slice %154 {offsets = [0, 16], sizes = [32, 8], strides = [1, 1]} : vector<32x96xf32> to vector<32x8xf32>
    %190 = vector.extract_strided_slice %154 {offsets = [0, 48], sizes = [32, 8], strides = [1, 1]} : vector<32x96xf32> to vector<32x8xf32>
    %191 = vector.extract_strided_slice %154 {offsets = [0, 80], sizes = [32, 8], strides = [1, 1]} : vector<32x96xf32> to vector<32x8xf32>
    %cst_83 = arith.constant dense<0.000000e+00> : vector<32x32xf32>
    %192 = tpu.matmul %189, %190, %cst_83 {dimension_numbers = #tpu.dot_dimension_numbers<[1], [1], [0], [0], [0, 0, 1, 0], [], []>} : vector<32x8xf32>, vector<32x8xf32>, vector<32x32xf32> -> vector<32x32xf32>
    %cst_84 = arith.constant 0.353553385 : f32
    %193 = vector.broadcast %cst_84 : f32 to vector<32x32xf32>
    %194 = arith.mulf %192, %193 : vector<32x32xf32>
    %195 = arith.addf %194, %149 : vector<32x32xf32>
    %cst_85 = arith.constant dense<0xFF800000> : vector<32xf32>
    %196 = vector.multi_reduction <maximumf>, %195, %cst_85 [1] : vector<32x32xf32> to vector<32xf32>
    %197 = vector.shape_cast %196 : vector<32xf32> to vector<32x1xf32>
    %198 = vector.broadcast %197 : vector<32x1xf32> to vector<32x32xf32>
    %199 = arith.subf %195, %198 : vector<32x32xf32>
    %200 = math.exp %199 : vector<32x32xf32>
    %cst_86 = arith.constant dense<0.000000e+00> : vector<32xf32>
    %201 = vector.multi_reduction <add>, %200, %cst_86 [1] : vector<32x32xf32> to vector<32xf32>
    %202 = vector.shape_cast %201 : vector<32xf32> to vector<32x1xf32>
    %203 = vector.broadcast %202 : vector<32x1xf32> to vector<32x32xf32>
    %204 = arith.divf %200, %203 : vector<32x32xf32>
    %cst_87 = arith.constant dense<0.000000e+00> : vector<32x8xf32>
    %205 = tpu.matmul %204, %191, %cst_87 {dimension_numbers = #tpu.dot_dimension_numbers<[1], [0], [0], [1], [0, 0, 1, 1], [], []>} : vector<32x32xf32>, vector<32x8xf32>, vector<32x8xf32> -> vector<32x8xf32>
    %206 = vector.extract_strided_slice %154 {offsets = [0, 24], sizes = [32, 8], strides = [1, 1]} : vector<32x96xf32> to vector<32x8xf32>
    %207 = vector.extract_strided_slice %154 {offsets = [0, 56], sizes = [32, 8], strides = [1, 1]} : vector<32x96xf32> to vector<32x8xf32>
    %208 = vector.extract_strided_slice %154 {offsets = [0, 88], sizes = [32, 8], strides = [1, 1]} : vector<32x96xf32> to vector<32x8xf32>
    %cst_88 = arith.constant dense<0.000000e+00> : vector<32x32xf32>
    %209 = tpu.matmul %206, %207, %cst_88 {dimension_numbers = #tpu.dot_dimension_numbers<[1], [1], [0], [0], [0, 0, 1, 0], [], []>} : vector<32x8xf32>, vector<32x8xf32>, vector<32x32xf32> -> vector<32x32xf32>
    %cst_89 = arith.constant 0.353553385 : f32
    %210 = vector.broadcast %cst_89 : f32 to vector<32x32xf32>
    %211 = arith.mulf %209, %210 : vector<32x32xf32>
    %212 = arith.addf %211, %149 : vector<32x32xf32>
    %cst_90 = arith.constant dense<0xFF800000> : vector<32xf32>
    %213 = vector.multi_reduction <maximumf>, %212, %cst_90 [1] : vector<32x32xf32> to vector<32xf32>
    %214 = vector.shape_cast %213 : vector<32xf32> to vector<32x1xf32>
    %215 = vector.broadcast %214 : vector<32x1xf32> to vector<32x32xf32>
    %216 = arith.subf %212, %215 : vector<32x32xf32>
    %217 = math.exp %216 : vector<32x32xf32>
    %cst_91 = arith.constant dense<0.000000e+00> : vector<32xf32>
    %218 = vector.multi_reduction <add>, %217, %cst_91 [1] : vector<32x32xf32> to vector<32xf32>
    %219 = vector.shape_cast %218 : vector<32xf32> to vector<32x1xf32>
    %220 = vector.broadcast %219 : vector<32x1xf32> to vector<32x32xf32>
    %221 = arith.divf %217, %220 : vector<32x32xf32>
    %cst_92 = arith.constant dense<0.000000e+00> : vector<32x8xf32>
    %222 = tpu.matmul %221, %208, %cst_92 {dimension_numbers = #tpu.dot_dimension_numbers<[1], [0], [0], [1], [0, 0, 1, 1], [], []>} : vector<32x32xf32>, vector<32x8xf32>, vector<32x8xf32> -> vector<32x8xf32>
    %223 = tpu.concatenate %171, %188, %205, %222 in 1 : vector<32x8xf32>, vector<32x8xf32>, vector<32x8xf32>, vector<32x8xf32> -> vector<32x32xf32>
    %c0_93 = arith.constant 0 : index
    %c0_94 = arith.constant 0 : index
    %224 = vector.load %arg5[%c0_93, %c0_94] : memref<32x32xf32, #tpu.memory_space<vmem>>, vector<32x32xf32>
    %cst_95 = arith.constant dense<0.000000e+00> : vector<32x32xf32>
    %225 = tpu.matmul %223, %224, %cst_95 {dimension_numbers = #tpu.dot_dimension_numbers<[1], [0], [0], [1], [0, 0, 1, 1], [], []>} : vector<32x32xf32>, vector<32x32xf32>, vector<32x32xf32> -> vector<32x32xf32>
    %c0_96 = arith.constant 0 : index
    %c0_97 = arith.constant 0 : index
    %226 = vector.load %arg6[%c0_96, %c0_97] : memref<1x32xf32, #tpu.memory_space<vmem>>, vector<1x32xf32>
    %227 = vector.broadcast %226 : vector<1x32xf32> to vector<32x32xf32>
    %228 = arith.addf %225, %227 : vector<32x32xf32>
    %229 = arith.addf %126, %228 : vector<32x32xf32>
    %c0_98 = arith.constant 0 : index
    %c0_99 = arith.constant 0 : index
    %230 = vector.load %arg15[%c0_98, %c0_99] : memref<32x8xf32, #tpu.memory_space<vmem>>, vector<32x8xf32>
    %cst_100 = arith.constant dense<0.000000e+00> : vector<32x8xf32>
    %231 = tpu.matmul %229, %230, %cst_100 {dimension_numbers = #tpu.dot_dimension_numbers<[1], [0], [0], [1], [0, 0, 1, 1], [], []>} : vector<32x32xf32>, vector<32x8xf32>, vector<32x8xf32> -> vector<32x8xf32>
    %c0_101 = arith.constant 0 : index
    %c0_102 = arith.constant 0 : index
    %232 = vector.load %arg16[%c0_101, %c0_102] : memref<1x8xf32, #tpu.memory_space<vmem>>, vector<1x8xf32>
    %233 = vector.broadcast %232 : vector<1x8xf32> to vector<32x8xf32>
    %234 = arith.addf %231, %233 : vector<32x8xf32>
    %cst_103 = arith.constant 5.000000e-01 : f32
    %235 = vector.broadcast %cst_103 : f32 to vector<32x8xf32>
    %236 = arith.mulf %235, %234 : vector<32x8xf32>
    %cst_104 = arith.constant 0.707106769 : f32
    %237 = vector.broadcast %cst_104 : f32 to vector<32x8xf32>
    %238 = arith.mulf %234, %237 : vector<32x8xf32>
    %239 = math.erf %238 : vector<32x8xf32>
    %cst_105 = arith.constant 1.000000e+00 : f32
    %240 = vector.broadcast %cst_105 : f32 to vector<32x8xf32>
    %241 = arith.addf %240, %239 : vector<32x8xf32>
    %242 = arith.mulf %236, %241 : vector<32x8xf32>
    %c0_106 = arith.constant 0 : index
    %c0_107 = arith.constant 0 : index
    %243 = vector.load %arg17[%c0_106, %c0_107] : memref<8x32xf32, #tpu.memory_space<vmem>>, vector<8x32xf32>
    %cst_108 = arith.constant dense<0.000000e+00> : vector<32x32xf32>
    %244 = tpu.matmul %242, %243, %cst_108 {dimension_numbers = #tpu.dot_dimension_numbers<[1], [0], [0], [1], [0, 0, 1, 1], [], []>} : vector<32x8xf32>, vector<8x32xf32>, vector<32x32xf32> -> vector<32x32xf32>
    %c0_109 = arith.constant 0 : index
    %c0_110 = arith.constant 0 : index
    %245 = vector.load %arg18[%c0_109, %c0_110] : memref<1x32xf32, #tpu.memory_space<vmem>>, vector<1x32xf32>
    %246 = vector.broadcast %245 : vector<1x32xf32> to vector<32x32xf32>
    %247 = arith.addf %244, %246 : vector<32x32xf32>
    %248 = arith.addf %229, %247 : vector<32x32xf32>
    %cst_111 = arith.constant dense<0.000000e+00> : vector<32xf32>
    %249 = vector.multi_reduction <add>, %248, %cst_111 [1] : vector<32x32xf32> to vector<32xf32>
    %250 = vector.shape_cast %249 : vector<32xf32> to vector<32x1xf32>
    %cst_112 = arith.constant 3.200000e+01 : f32
    %251 = vector.broadcast %cst_112 : f32 to vector<32x1xf32>
    %252 = arith.divf %250, %251 : vector<32x1xf32>
    %253 = vector.broadcast %252 : vector<32x1xf32> to vector<32x32xf32>
    %254 = arith.subf %248, %253 : vector<32x32xf32>
    %255 = arith.mulf %254, %254 : vector<32x32xf32>
    %cst_113 = arith.constant dense<0.000000e+00> : vector<32xf32>
    %256 = vector.multi_reduction <add>, %255, %cst_113 [1] : vector<32x32xf32> to vector<32xf32>
    %257 = vector.shape_cast %256 : vector<32xf32> to vector<32x1xf32>
    %cst_114 = arith.constant 3.200000e+01 : f32
    %258 = vector.broadcast %cst_114 : f32 to vector<32x1xf32>
    %259 = arith.divf %257, %258 : vector<32x1xf32>
    %cst_115 = arith.constant 9.99999974E-6 : f32
    %260 = vector.broadcast %cst_115 : f32 to vector<32x1xf32>
    %261 = arith.addf %259, %260 : vector<32x1xf32>
    %262 = math.rsqrt %261 : vector<32x1xf32>
    %263 = vector.broadcast %262 : vector<32x1xf32> to vector<32x32xf32>
    %264 = arith.mulf %254, %263 : vector<32x32xf32>
    %c0_116 = arith.constant 0 : index
    %c0_117 = arith.constant 0 : index
    %265 = vector.load %arg9[%c0_116, %c0_117] : memref<1x32xf32, #tpu.memory_space<vmem>>, vector<1x32xf32>
    %266 = vector.broadcast %265 : vector<1x32xf32> to vector<32x32xf32>
    %267 = arith.mulf %264, %266 : vector<32x32xf32>
    %c0_118 = arith.constant 0 : index
    %c0_119 = arith.constant 0 : index
    %268 = vector.load %arg10[%c0_118, %c0_119] : memref<1x32xf32, #tpu.memory_space<vmem>>, vector<1x32xf32>
    %269 = vector.broadcast %268 : vector<1x32xf32> to vector<32x32xf32>
    %270 = arith.addf %267, %269 : vector<32x32xf32>
    %c0_120 = arith.constant 0 : index
    %c0_121 = arith.constant 0 : index
    %271 = vector.load %arg19[%c0_120, %c0_121] : memref<32x128xf32, #tpu.memory_space<vmem>>, vector<32x128xf32>
    %cst_122 = arith.constant dense<0.000000e+00> : vector<32x128xf32>
    %272 = tpu.matmul %270, %271, %cst_122 {dimension_numbers = #tpu.dot_dimension_numbers<[1], [0], [0], [1], [0, 0, 1, 1], [], []>} : vector<32x32xf32>, vector<32x128xf32>, vector<32x128xf32> -> vector<32x128xf32>
    %c0_123 = arith.constant 0 : index
    %c0_124 = arith.constant 0 : index
    %273 = vector.load %arg20[%c0_123, %c0_124] : memref<1x128xf32, #tpu.memory_space<vmem>>, vector<1x128xf32>
    %274 = vector.broadcast %273 : vector<1x128xf32> to vector<32x128xf32>
    %275 = arith.addf %272, %274 : vector<32x128xf32>
    %cst_125 = arith.constant 1.702000e+00 : f32
    %276 = vector.broadcast %cst_125 : f32 to vector<32x128xf32>
    %277 = arith.mulf %276, %275 : vector<32x128xf32>
    %278 = arith.negf %277 : vector<32x128xf32>
    %279 = math.exp %278 : vector<32x128xf32>
    %cst_126 = arith.constant 1.000000e+00 : f32
    %280 = vector.broadcast %cst_126 : f32 to vector<32x128xf32>
    %281 = arith.addf %280, %279 : vector<32x128xf32>
    %282 = arith.divf %280, %281 : vector<32x128xf32>
    %283 = arith.mulf %275, %282 : vector<32x128xf32>
    %c0_127 = arith.constant 0 : index
    %c0_128 = arith.constant 0 : index
    %284 = vector.load %arg21[%c0_127, %c0_128] : memref<128x32xf32, #tpu.memory_space<vmem>>, vector<128x32xf32>
    %cst_129 = arith.constant dense<0.000000e+00> : vector<32x32xf32>
    %285 = tpu.matmul %283, %284, %cst_129 {dimension_numbers = #tpu.dot_dimension_numbers<[1], [0], [0], [1], [0, 0, 1, 1], [], []>} : vector<32x128xf32>, vector<128x32xf32>, vector<32x32xf32> -> vector<32x32xf32>
    %286 = arith.addf %248, %285 : vector<32x32xf32>
    %c0_130 = arith.constant 0 : index
    %c0_131 = arith.constant 0 : index
    %287 = vector.load %arg22[%c0_130, %c0_131] : memref<1x32xf32, #tpu.memory_space<vmem>>, vector<1x32xf32>
    %288 = vector.broadcast %287 : vector<1x32xf32> to vector<32x32xf32>
    %289 = arith.addf %286, %288 : vector<32x32xf32>
    %290 = vector.extract_strided_slice %289 {offsets = [0, 0], sizes = [8, 32], strides = [1, 1]} : vector<32x32xf32> to vector<8x32xf32>
    %291 = vector.extract_strided_slice %289 {offsets = [8, 0], sizes = [8, 32], strides = [1, 1]} : vector<32x32xf32> to vector<8x32xf32>
    %292 = vector.extract_strided_slice %289 {offsets = [16, 0], sizes = [8, 32], strides = [1, 1]} : vector<32x32xf32> to vector<8x32xf32>
    %293 = vector.extract_strided_slice %289 {offsets = [24, 0], sizes = [8, 32], strides = [1, 1]} : vector<32x32xf32> to vector<8x32xf32>
    %294 = tpu.concatenate %290, %291, %292, %293 in 1 : vector<8x32xf32>, vector<8x32xf32>, vector<8x32xf32>, vector<8x32xf32> -> vector<8x128xf32>
    %c0_132 = arith.constant 0 : index
    %c0_133 = arith.constant 0 : index
    %295 = vector.load %arg23[%c0_132, %c0_133] : memref<8x128xf32, #tpu.memory_space<vmem>>, vector<8x128xf32>
    tpu.vector_store %arg23[%c0_132, %c0_133], %294 {strides = array<i32>} : memref<8x128xf32, #tpu.memory_space<vmem>>, vector<8x128xf32>,
    return
  }
}

</mosaic_0001>

<llo_original>
// kernel: residual_attention_block_forward.1
$region0: #{residual_attention_block_forward.1}
  #allocation0 [shape = 'u32[]', space=smem, size = 0x4, offset = 0x4, fixed_abs, tag = 'smem constant byte address 0x4 - core index']
  #allocation1 [shape = 'u32[144,128]{1,0:T(1,128)}', space=vmem, size = 0x12000, scoped, tag = 'internal scratch']
  %s0 = inlined_call_operand.vmem [shape: f32[32,32], index: 0, kind: input, shape index: {}]
  %s1 = inlined_call_operand.vmem [shape: f32[32,32], index: 1, kind: input, shape index: {}]
  %s2 = inlined_call_operand.vmem [shape: f32[32,32], index: 2, kind: input, shape index: {}]
  %s3 = inlined_call_operand.vmem [shape: f32[32,96], index: 3, kind: input, shape index: {}]
  %s4 = inlined_call_operand.vmem [shape: f32[1,96], index: 4, kind: input, shape index: {}]
  %s5 = inlined_call_operand.vmem [shape: f32[32,32], index: 5, kind: input, shape index: {}]
  %s6 = inlined_call_operand.vmem [shape: f32[1,32], index: 6, kind: input, shape index: {}]
  %s7 = inlined_call_operand.vmem [shape: f32[1,32], index: 7, kind: input, shape index: {}]
  %s8 = inlined_call_operand.vmem [shape: f32[1,32], index: 8, kind: input, shape index: {}]
  %s9 = inlined_call_operand.vmem [shape: f32[1,32], index: 9, kind: input, shape index: {}]
  %s10 = inlined_call_operand.vmem [shape: f32[1,32], index: 10, kind: input, shape index: {}]
  %s11 = inlined_call_operand.vmem [shape: f32[32,8], index: 11, kind: input, shape index: {}]
  %s12 = inlined_call_operand.vmem [shape: f32[1,8], index: 12, kind: input, shape index: {}]
  %s13 = inlined_call_operand.vmem [shape: f32[8,32], index: 13, kind: input, shape index: {}]
  %s14 = inlined_call_operand.vmem [shape: f32[1,32], index: 14, kind: input, shape index: {}]
  %s15 = inlined_call_operand.vmem [shape: f32[32,8], index: 15, kind: input, shape index: {}]
  %s16 = inlined_call_operand.vmem [shape: f32[1,8], index: 16, kind: input, shape index: {}]
  %s17 = inlined_call_operand.vmem [shape: f32[8,32], index: 17, kind: input, shape index: {}]
  %s18 = inlined_call_operand.vmem [shape: f32[1,32], index: 18, kind: input, shape index: {}]
  %s19 = inlined_call_operand.vmem [shape: f32[32,128], index: 19, kind: input, shape index: {}]
  %s20 = inlined_call_operand.vmem [shape: f32[1,128], index: 20, kind: input, shape index: {}]
  %s21 = inlined_call_operand.vmem [shape: f32[128,32], index: 21, kind: input, shape index: {}]
  %s22 = inlined_call_operand.vmem [shape: f32[1,32], index: 22, kind: input, shape index: {}]
  %s23 = inlined_call_operand.vmem [shape: f32[8,128], index: 23, kind: output, shape index: {}]
  %s24 = sld [smem:[#allocation0]]
  $region102: #{residual_attention_block_forward.1} parent=0
    _
  %s26 = ssub.s32 1, %s24
  %s27 = scalar_select 0, %s26, %s24
  // Predicated region
  $region2: #{residual_attention_block_forward.1} parent=0 // pred_check
    _
  $region3: #{residual_attention_block_forward.1} parent=0 // pred_check_branch
    %29 = sbr.rel (0) target = $region5
  $region4: #{residual_attention_block_forward.1} parent=0 // pred_region
    _
  $region5: #{residual_attention_block_forward.1} parent=0 // pred_fallthru
    _
  // Predicated region
  $region6: #{residual_attention_block_forward.1} parent=0 // pred_check
    _
  $region7: #{residual_attention_block_forward.1} parent=0 // pred_check_branch
    %31 = sbr.rel (0) target = $region9
  $region8: #{residual_attention_block_forward.1} parent=0 // pred_region
    _
  $region9: #{residual_attention_block_forward.1} parent=0 // pred_fallthru
    _
  // Predicated region
  $region10: #{residual_attention_block_forward.1} parent=0 // pred_check
    _
  $region11: #{residual_attention_block_forward.1} parent=0 // pred_check_branch
    %33 = sbr.rel (0) target = $region13
  $region12: #{residual_attention_block_forward.1} parent=0 // pred_region
    _
  $region13: #{residual_attention_block_forward.1} parent=0 // pred_fallthru
    _
  // Predicated region
  $region14: #{residual_attention_block_forward.1} parent=0 // pred_check
    _
  $region15: #{residual_attention_block_forward.1} parent=0 // pred_check_branch
    %35 = sbr.rel (0) target = $region17
  $region16: #{residual_attention_block_forward.1} parent=0 // pred_region
    _
  $region17: #{residual_attention_block_forward.1} parent=0 // pred_fallthru
    _
  // Predicated region
  $region18: #{residual_attention_block_forward.1} parent=0 // pred_check
    _
  $region19: #{residual_attention_block_forward.1} parent=0 // pred_check_branch
    %37 = sbr.rel (0) target = $region21
  $region20: #{residual_attention_block_forward.1} parent=0 // pred_region
    _
  $region21: #{residual_attention_block_forward.1} parent=0 // pred_fallthru
    _
  // Predicated region
  $region22: #{residual_attention_block_forward.1} parent=0 // pred_check
    _
  $region23: #{residual_attention_block_forward.1} parent=0 // pred_check_branch
    %39 = sbr.rel (0) target = $region25
  $region24: #{residual_attention_block_forward.1} parent=0 // pred_region
    _
  $region25: #{residual_attention_block_forward.1} parent=0 // pred_fallthru
    _
  // Predicated region
  $region26: #{residual_attention_block_forward.1} parent=0 // pred_check
    _
  $region27: #{residual_attention_block_forward.1} parent=0 // pred_check_branch
    %41 = sbr.rel (0) target = $region29
  $region28: #{residual_attention_block_forward.1} parent=0 // pred_region
    _
  $region29: #{residual_attention_block_forward.1} parent=0 // pred_fallthru
    _
  // Predicated region
  $region30: #{residual_attention_block_forward.1} parent=0 // pred_check
    _
  $region31: #{residual_attention_block_forward.1} parent=0 // pred_check_branch
    %43 = sbr.rel (0) target = $region33
  $region32: #{residual_attention_block_forward.1} parent=0 // pred_region
    _
  $region33: #{residual_attention_block_forward.1} parent=0 // pred_fallthru
    _
  // Predicated region
  $region34: #{residual_attention_block_forward.1} parent=0 // pred_check
    _
  $region35: #{residual_attention_block_forward.1} parent=0 // pred_check_branch
    %45 = sbr.rel (0) target = $region37
  $region36: #{residual_attention_block_forward.1} parent=0 // pred_region
    _
  $region37: #{residual_attention_block_forward.1} parent=0 // pred_fallthru
    _
  // Predicated region
  $region38: #{residual_attention_block_forward.1} parent=0 // pred_check
    _
  $region39: #{residual_attention_block_forward.1} parent=0 // pred_check_branch
    %47 = sbr.rel (0) target = $region41
  $region40: #{residual_attention_block_forward.1} parent=0 // pred_region
    _
  $region41: #{residual_attention_block_forward.1} parent=0 // pred_fallthru
    _
  // Predicated region
  $region42: #{residual_attention_block_forward.1} parent=0 // pred_check
    _
  $region43: #{residual_attention_block_forward.1} parent=0 // pred_check_branch
    %49 = sbr.rel (0) target = $region45
  $region44: #{residual_attention_block_forward.1} parent=0 // pred_region
    _
  $region45: #{residual_attention_block_forward.1} parent=0 // pred_fallthru
    _
  // Predicated region
  $region46: #{residual_attention_block_forward.1} parent=0 // pred_check
    _
  $region47: #{residual_attention_block_forward.1} parent=0 // pred_check_branch
    %51 = sbr.rel (0) target = $region49
  $region48: #{residual_attention_block_forward.1} parent=0 // pred_region
    _
  $region49: #{residual_attention_block_forward.1} parent=0 // pred_fallthru
    _
  // Predicated region
  $region50: #{residual_attention_block_forward.1} parent=0 // pred_check
    _
  $region51: #{residual_attention_block_forward.1} parent=0 // pred_check_branch
    %53 = sbr.rel (0) target = $region53
  $region52: #{residual_attention_block_forward.1} parent=0 // pred_region
    _
  $region53: #{residual_attention_block_forward.1} parent=0 // pred_fallthru
    _
  // Predicated region
  $region54: #{residual_attention_block_forward.1} parent=0 // pred_check
    _
  $region55: #{residual_attention_block_forward.1} parent=0 // pred_check_branch
    %55 = sbr.rel (0) target = $region57
  $region56: #{residual_attention_block_forward.1} parent=0 // pred_region
    _
  $region57: #{residual_attention_block_forward.1} parent=0 // pred_fallthru
    _
  // Predicated region
  $region58: #{residual_attention_block_forward.1} parent=0 // pred_check
    _
  $region59: #{residual_attention_block_forward.1} parent=0 // pred_check_branch
    %57 = sbr.rel (0) target = $region61
  $region60: #{residual_attention_block_forward.1} parent=0 // pred_region
    _
  $region61: #{residual_attention_block_forward.1} parent=0 // pred_fallthru
    _
  // Predicated region
  $region62: #{residual_attention_block_forward.1} parent=0 // pred_check
    _
  $region63: #{residual_attention_block_forward.1} parent=0 // pred_check_branch
    %59 = sbr.rel (0) target = $region65
  $region64: #{residual_attention_block_forward.1} parent=0 // pred_region
    _
  $region65: #{residual_attention_block_forward.1} parent=0 // pred_fallthru
    _
  // Predicated region
  $region66: #{residual_attention_block_forward.1} parent=0 // pred_check
    _
  $region67: #{residual_attention_block_forward.1} parent=0 // pred_check_branch
    %61 = sbr.rel (0) target = $region69
  $region68: #{residual_attention_block_forward.1} parent=0 // pred_region
    _
  $region69: #{residual_attention_block_forward.1} parent=0 // pred_fallthru
    _
  // Predicated region
  $region70: #{residual_attention_block_forward.1} parent=0 // pred_check
    _
  $region71: #{residual_attention_block_forward.1} parent=0 // pred_check_branch
    %63 = sbr.rel (0) target = $region73
  $region72: #{residual_attention_block_forward.1} parent=0 // pred_region
    _
  $region73: #{residual_attention_block_forward.1} parent=0 // pred_fallthru
    _
  // Predicated region
  $region74: #{residual_attention_block_forward.1} parent=0 // pred_check
    _
  $region75: #{residual_attention_block_forward.1} parent=0 // pred_check_branch
    %65 = sbr.rel (0) target = $region77
  $region76: #{residual_attention_block_forward.1} parent=0 // pred_region
    _
  $region77: #{residual_attention_block_forward.1} parent=0 // pred_fallthru
    _
  // Predicated region
  $region78: #{residual_attention_block_forward.1} parent=0 // pred_check
    _
  $region79: #{residual_attention_block_forward.1} parent=0 // pred_check_branch
    %67 = sbr.rel (0) target = $region81
  $region80: #{residual_attention_block_forward.1} parent=0 // pred_region
    _
  $region81: #{residual_attention_block_forward.1} parent=0 // pred_fallthru
    _
  // Predicated region
  $region82: #{residual_attention_block_forward.1} parent=0 // pred_check
    _
  $region83: #{residual_attention_block_forward.1} parent=0 // pred_check_branch
    %69 = sbr.rel (0) target = $region85
  $region84: #{residual_attention_block_forward.1} parent=0 // pred_region
    _
  $region85: #{residual_attention_block_forward.1} parent=0 // pred_fallthru
    _
  // Predicated region
  $region86: #{residual_attention_block_forward.1} parent=0 // pred_check
    _
  $region87: #{residual_attention_block_forward.1} parent=0 // pred_check_branch
    %71 = sbr.rel (0) target = $region89
  $region88: #{residual_attention_block_forward.1} parent=0 // pred_region
    _
  $region89: #{residual_attention_block_forward.1} parent=0 // pred_fallthru
    _
  // Predicated region
  $region90: #{residual_attention_block_forward.1} parent=0 // pred_check
    _
  $region91: #{residual_attention_block_forward.1} parent=0 // pred_check_branch
    %73 = sbr.rel (0) target = $region93
  $region92: #{residual_attention_block_forward.1} parent=0 // pred_region
    _
  $region93: #{residual_attention_block_forward.1} parent=0 // pred_fallthru
    _
  %v74 = vld [vmem:[%s0] ss:$4 sm:$0xff]
  %s75 = scalar_lea.vmem %s0, 1
  %v76 = vld [vmem:[%s75] ss:$4 sm:$0xff]
  %s77 = scalar_lea.vmem %s0, 2
  %v78 = vld [vmem:[%s77] ss:$4 sm:$0xff]
  %s79 = scalar_lea.vmem %s0, 3
  %v80 = vld [vmem:[%s79] ss:$4 sm:$0xff]
  %vm81 = vcmask 261120
  %v82 = vsel %vm81, %v74, 0.0
  %83 = vadd.xlane.f32.xlu0 %v82
  %v84 = vpop.xlane.xlu0 %83
  %v85 = vsel %vm81, %v78, 0.0
  %86 = vadd.xlane.f32.xlu0 %v85
  %v87 = vpop.xlane.xlu0 %86
  %v88 = vsel %vm81, %v76, 0.0
  %89 = vadd.xlane.f32.xlu0 %v88
  %v90 = vpop.xlane.xlu0 %89
  %v91 = vsel %vm81, %v80, 0.0
  %92 = vadd.xlane.f32.xlu0 %v91
  %v93 = vpop.xlane.xlu0 %92
  %v94 = vrcp.pop 32.0
  %v95 = vmul.f32 %v84, %v94
  %v96 = vmul.f32 %v87, %v94
  %v97 = vmul.f32 %v90, %v94
  %v98 = vmul.f32 %v93, %v94
  %v99 = vsub.f32 %v74, %v95
  %v100 = vsub.f32 %v78, %v96
  %v101 = vsub.f32 %v76, %v97
  %v102 = vsub.f32 %v80, %v98
  %v103 = vmul.f32 %v99, %v99
  %v104 = vmul.f32 %v100, %v100
  %v105 = vmul.f32 %v101, %v101
  %v106 = vmul.f32 %v102, %v102
  %v107 = vsel %vm81, %v103, 0.0
  %108 = vadd.xlane.f32.xlu0 %v107
  %v109 = vpop.xlane.xlu0 %108
  %v110 = vsel %vm81, %v104, 0.0
  %111 = vadd.xlane.f32.xlu0 %v110
  %v112 = vpop.xlane.xlu0 %111
  %v113 = vsel %vm81, %v105, 0.0
  %114 = vadd.xlane.f32.xlu0 %v113
  %v115 = vpop.xlane.xlu0 %114
  %v116 = vsel %vm81, %v106, 0.0
  %117 = vadd.xlane.f32.xlu0 %v116
  %v118 = vpop.xlane.xlu0 %117
  %v119 = vmul.f32 %v109, %v94
  %v120 = vmul.f32 %v112, %v94
  %v121 = vmul.f32 %v115, %v94
  %v122 = vmul.f32 %v118, %v94
  %v123 = vadd.f32 %v119, 1e-05
  %v124 = vadd.f32 %v120, 1e-05
  %v125 = vadd.f32 %v121, 1e-05
  %v126 = vadd.f32 %v122, 1e-05
  %v127 = vrsqrt.pop %v123
  %v128 = vrsqrt.pop %v124
  %v129 = vrsqrt.pop %v125
  %v130 = vrsqrt.pop %v126
  %v131 = vmul.f32 %v99, %v127
  %v132 = vmul.f32 %v100, %v128
  %v133 = vmul.f32 %v101, %v129
  %v134 = vmul.f32 %v102, %v130
  %v135 = vld [vmem:[%s7] sm:$0x1]
  %v137 = vlaneseq
  %v138 = vshrl.u32 %v137, 7
  %v139 = vsub.s32 0, %v138
  %v140 = vrot.slane %v135, %v139
  %v142 = vmul.f32 %v131, %v140
  %v143 = vmul.f32 %v132, %v140
  %v144 = vmul.f32 %v133, %v140
  %v145 = vmul.f32 %v134, %v140
  %v146 = vld [vmem:[%s8] sm:$0x1]
  %v148 = vlaneseq
  %v149 = vshrl.u32 %v148, 7
  %v150 = vsub.s32 0, %v149
  %v151 = vrot.slane %v146, %v150
  %v153 = vadd.f32 %v142, %v151
  %v154 = vadd.f32 %v143, %v151
  %v155 = vadd.f32 %v144, %v151
  %v156 = vadd.f32 %v145, %v151
  %v157 = vld [vmem:[%s1] sm:$0xff]
  %v158 = vld [vmem:[%s1 + $0x8] sm:$0xff]
  %v159 = vld [vmem:[%s1 + $0x10] sm:$0xff]
  %v160 = vld [vmem:[%s1 + $0x18] sm:$0xff]
  %v161 = vld [vmem:[%s3] sm:$0xff]
  %v162 = vld [vmem:[%s3 + $0x8] sm:$0xff]
  %v163 = vld [vmem:[%s3 + $0x10] sm:$0xff]
  %v164 = vld [vmem:[%s3 + $0x18] sm:$0xff]
  %v165 = vld [vmem:[%s4] sm:$0x1]
  %v167 = vlaneseq
  %v168 = vshrl.u32 %v167, 7
  %v169 = vsub.s32 0, %v168
  %v170 = vrot.slane %v165, %v169
  %v173 = vsel %vm81, %v153, 0
  %v176 = vsel %vm81, %v154, 0
  %v179 = vsel %vm81, %v155, 0
  %v182 = vsel %vm81, %v156, 0
  %184 = vmatprep.subr.mxu0 0.0
  %185 = vmatpush1.msra.mxu0 0.0
  %186 = vmatprep.subr.mxu0 0.0
  %187 = vmatpush1.msra.mxu0 0.0
  %188 = vmatprep.subr.mxu0 0.0
  %189 = vmatpush1.msra.mxu0 0.0
  %190 = vmatprep.subr.mxu0 0.0
  %191 = vmatpush1.msra.mxu0 0.0
  %192 = vmatprep.subr.mxu0 0.0
  %193 = vmatpush1.msra.mxu0 0.0
  %194 = vmatprep.subr.mxu0 0.0
  %195 = vmatpush1.msra.mxu0 0.0
  %196 = vmatprep.subr.mxu0 0.0
  %197 = vmatpush1.msra.mxu0 0.0
  %198 = vmatprep.subr.mxu0 0.0
  %199 = vmatpush1.msra.mxu0 0.0
  %200 = vmatprep.subr.mxu0 0.0
  %201 = vmatpush1.msra.mxu0 0.0
  %202 = vmatprep.subr.mxu0 0.0
  %203 = vmatpush1.msra.mxu0 0.0
  %204 = vmatprep.subr.mxu0 0.0
  %205 = vmatpush1.msra.mxu0 0.0
  %206 = vmatprep.subr.mxu0 0.0
  %207 = vmatpush1.msra.mxu0 0.0
  %208 = vmatprep.subr.mxu0 0.0
  %209 = vmatpush1.msra.mxu0 %v164
  %210 = vmatprep.subr.mxu0 0.0
  %211 = vmatpush1.msra.mxu0 %v163
  %212 = vmatprep.subr.mxu0 0.0
  %213 = vmatpush1.msra.mxu0 %v162
  %214 = vmatprep.subr.mxu0 0.0
  %215 = vmatpush1.msra.mxu0 %v161
  %216 = vmatprep.subr.mxu0 0.0
  %217 = vmatpush2.msra.mxu0 0.0
  %218 = vmatprep.subr.mxu0 0.0
  %219 = vmatpush2.msra.mxu0 0.0
  %220 = vmatprep.subr.mxu0 0.0
  %221 = vmatpush2.msra.mxu0 0.0
  %222 = vmatprep.subr.mxu0 0.0
  %223 = vmatpush2.msra.mxu0 0.0
  %224 = vmatprep.subr.mxu0 0.0
  %225 = vmatpush2.msra.mxu0 0.0
  %226 = vmatprep.subr.mxu0 0.0
  %227 = vmatpush2.msra.mxu0 0.0
  %228 = vmatprep.subr.mxu0 0.0
  %229 = vmatpush2.msra.mxu0 0.0
  %230 = vmatprep.subr.mxu0 0.0
  %231 = vmatpush2.msra.mxu0 0.0
  %232 = vmatprep.subr.mxu0 0.0
  %233 = vmatpush2.msra.mxu0 0.0
  %234 = vmatprep.subr.mxu0 0.0
  %235 = vmatpush2.msra.mxu0 0.0
  %236 = vmatprep.subr.mxu0 0.0
  %237 = vmatpush2.msra.mxu0 0.0
  %238 = vmatprep.subr.mxu0 0.0
  %239 = vmatpush2.msra.mxu0 0.0
  %240 = vmatprep.subr.mxu0 0.0
  %241 = vmatpush2.msra.mxu0 0.0
  %242 = vmatprep.subr.mxu0 0.0
  %243 = vmatpush2.msra.mxu0 0.0
  %244 = vmatprep.subr.mxu0 0.0
  %245 = vmatpush2.msra.mxu0 0.0
  %246 = vmatprep.subr.mxu0 0.0
  %247 = vmatpush2.msra.mxu0 0.0
  %248 = vmatprep.mubr.f32.mxu0 0.0
  %249 = vmatmul.mubr.f32.gmra.mxu0 %v173
  %v250 = vpop.f32.mrf.mxu0
  %v251 = vadd.f32 %v170, %v250
  %v252 = vpop.f32.mrf.mxu0
  %253 = vmatprep.mubr.f32.mxu0 0.0
  %254 = vmatmul.mubr.f32.gmra.mxu0 %v176
  %v255 = vpop.f32.mrf.mxu0
  %v256 = vadd.f32 %v170, %v255
  %v257 = vpop.f32.mrf.mxu0
  %258 = vmatprep.mubr.f32.mxu0 0.0
  %259 = vmatmul.mubr.f32.gmra.mxu0 %v179
  %v260 = vpop.f32.mrf.mxu0
  %v261 = vadd.f32 %v170, %v260
  %v262 = vpop.f32.mrf.mxu0
  %263 = vmatprep.mubr.f32.mxu0 0.0
  %264 = vmatmul.mubr.f32.gmra.mxu0 %v182
  %v265 = vpop.f32.mrf.mxu0
  %v266 = vadd.f32 %v170, %v265
  %v267 = vpop.f32.mrf.mxu0
  %268 = vdwg.mxu0
  %273 = vrot.lane.b32.xlu0 %v251, 96
  %v274 = vpop.permute.xlu0 %273
  %275 = vrot.lane.b32.xlu0 %v256, 96
  %v276 = vpop.permute.xlu0 %275
  %277 = vrot.lane.b32.xlu0 %v261, 96
  %v278 = vpop.permute.xlu0 %277
  %279 = vrot.lane.b32.xlu0 %v266, 96
  %v280 = vpop.permute.xlu0 %279
  %vm281 = vcmask 64512
  %v282 = vsel %vm281, %v251, 0
  %v284 = vsel %vm281, %v256, 0
  %v286 = vsel %vm281, %v261, 0
  %v288 = vsel %vm281, %v266, 0
  %v290 = vsel %vm281, %v274, 0
  %v292 = vsel %vm281, %v276, 0
  %v294 = vsel %vm281, %v278, 0
  %v296 = vsel %vm281, %v280, 0
  %298 = vmatprep.subr.mxu0 0.0
  %299 = vmatpush1.xpose.msra.mxu0 0.0
  %300 = vmatprep.subr.mxu0 0.0
  %301 = vmatpush1.xpose.msra.mxu0 0.0
  %302 = vmatprep.subr.mxu0 0.0
  %303 = vmatpush1.xpose.msra.mxu0 0.0
  %304 = vmatprep.subr.mxu0 0.0
  %305 = vmatpush1.xpose.msra.mxu0 0.0
  %306 = vmatprep.subr.mxu0 0.0
  %307 = vmatpush1.xpose.msra.mxu0 0.0
  %308 = vmatprep.subr.mxu0 0.0
  %309 = vmatpush1.xpose.msra.mxu0 0.0
  %310 = vmatprep.subr.mxu0 0.0
  %311 = vmatpush1.xpose.msra.mxu0 0.0
  %312 = vmatprep.subr.mxu0 0.0
  %313 = vmatpush1.xpose.msra.mxu0 0.0
  %314 = vmatprep.subr.mxu0 0.0
  %315 = vmatpush1.xpose.msra.mxu0 0.0
  %316 = vmatprep.subr.mxu0 0.0
  %317 = vmatpush1.xpose.msra.mxu0 0.0
  %318 = vmatprep.subr.mxu0 0.0
  %319 = vmatpush1.xpose.msra.mxu0 0.0
  %320 = vmatprep.subr.mxu0 0.0
  %321 = vmatpush1.xpose.msra.mxu0 0.0
  %322 = vmatprep.subr.mxu0 0.0
  %323 = vmatpush1.xpose.msra.mxu0 %v296
  %324 = vmatprep.subr.mxu0 0.0
  %325 = vmatpush1.xpose.msra.mxu0 %v294
  %326 = vmatprep.subr.mxu0 0.0
  %327 = vmatpush1.xpose.msra.mxu0 %v292
  %328 = vmatprep.subr.mxu0 0.0
  %329 = vmatpush1.xpose.msra.mxu0 %v290
  %330 = vmatprep.subr.mxu0 0.0
  %331 = vmatpush2.xpose.msra.mxu0 0.0
  %332 = vmatprep.subr.mxu0 0.0
  %333 = vmatpush2.xpose.msra.mxu0 0.0
  %334 = vmatprep.subr.mxu0 0.0
  %335 = vmatpush2.xpose.msra.mxu0 0.0
  %336 = vmatprep.subr.mxu0 0.0
  %337 = vmatpush2.xpose.msra.mxu0 0.0
  %338 = vmatprep.subr.mxu0 0.0
  %339 = vmatpush2.xpose.msra.mxu0 0.0
  %340 = vmatprep.subr.mxu0 0.0
  %341 = vmatpush2.xpose.msra.mxu0 0.0
  %342 = vmatprep.subr.mxu0 0.0
  %343 = vmatpush2.xpose.msra.mxu0 0.0
  %344 = vmatprep.subr.mxu0 0.0
  %345 = vmatpush2.xpose.msra.mxu0 0.0
  %346 = vmatprep.subr.mxu0 0.0
  %347 = vmatpush2.xpose.msra.mxu0 0.0
  %348 = vmatprep.subr.mxu0 0.0
  %349 = vmatpush2.xpose.msra.mxu0 0.0
  %350 = vmatprep.subr.mxu0 0.0
  %351 = vmatpush2.xpose.msra.mxu0 0.0
  %352 = vmatprep.subr.mxu0 0.0
  %353 = vmatpush2.xpose.msra.mxu0 0.0
  %354 = vmatprep.subr.mxu0 0.0
  %355 = vmatpush2.xpose.msra.mxu0 0.0
  %356 = vmatprep.subr.mxu0 0.0
  %357 = vmatpush2.xpose.msra.mxu0 0.0
  %358 = vmatprep.subr.mxu0 0.0
  %359 = vmatpush2.xpose.msra.mxu0 0.0
  %360 = vmatprep.subr.mxu0 0.0
  %361 = vmatpush2.xpose.msra.mxu0 0.0
  %362 = vmatprep.mubr.f32.mxu0 0.0
  %363 = vmatmul.mubr.f32.gmra.mxu0 %v282
  %v364 = vpop.f32.mrf.mxu0
  %v365 = vadd.f32 0.0, %v364
  %v366 = vpop.f32.mrf.mxu0
  %367 = vmatprep.mubr.f32.mxu0 0.0
  %368 = vmatmul.mubr.f32.gmra.mxu0 %v284
  %v369 = vpop.f32.mrf.mxu0
  %v370 = vadd.f32 0.0, %v369
  %v371 = vpop.f32.mrf.mxu0
  %372 = vmatprep.mubr.f32.mxu0 0.0
  %373 = vmatmul.mubr.f32.gmra.mxu0 %v286
  %v374 = vpop.f32.mrf.mxu0
  %v375 = vadd.f32 0.0, %v374
  %v376 = vpop.f32.mrf.mxu0
  %377 = vmatprep.mubr.f32.mxu0 0.0
  %378 = vmatmul.mubr.f32.gmra.mxu0 %v288
  %v379 = vpop.f32.mrf.mxu0
  %v380 = vadd.f32 0.0, %v379
  %v381 = vpop.f32.mrf.mxu0
  %382 = vdwg.mxu0
  %v383 = vmul.f32 %v365, 0.35355338
  %v384 = vmul.f32 %v370, 0.35355338
  %v385 = vmul.f32 %v375, 0.35355338
  %v386 = vmul.f32 %v380, 0.35355338
  %v387 = vadd.f32 %v383, %v157
  %v388 = vadd.f32 %v384, %v158
  %v389 = vadd.f32 %v385, %v159
  %v390 = vadd.f32 %v386, %v160
  %v391 = vsel %vm81, %v387, -inf
  %392 = vmax.xlane.f32.xlu0 %v391
  %v393 = vpop.xlane.xlu0 %392
  %v394 = vsel %vm81, %v388, -inf
  %395 = vmax.xlane.f32.xlu0 %v394
  %v396 = vpop.xlane.xlu0 %395
  %v397 = vsel %vm81, %v389, -inf
  %398 = vmax.xlane.f32.xlu0 %v397
  %v399 = vpop.xlane.xlu0 %398
  %v400 = vsel %vm81, %v390, -inf
  %401 = vmax.xlane.f32.xlu0 %v400
  %v402 = vpop.xlane.xlu0 %401
  %v403 = vsub.f32 %v387, %v393
  %v404 = vsub.f32 %v388, %v396
  %v405 = vsub.f32 %v389, %v399
  %v406 = vsub.f32 %v390, %v402
  %v407 = vmul.f32 %v403, 1.442695
  %v408 = vpow.pop %v407
  %v409 = vmul.f32 %v404, 1.442695
  %v410 = vpow.pop %v409
  %v411 = vmul.f32 %v405, 1.442695
  %v412 = vpow.pop %v411
  %v413 = vmul.f32 %v406, 1.442695
  %v414 = vpow.pop %v413
  %v415 = vsel %vm81, %v408, 0.0
  %416 = vadd.xlane.f32.xlu0 %v415
  %v417 = vpop.xlane.xlu0 %416
  %v418 = vsel %vm81, %v410, 0.0
  %419 = vadd.xlane.f32.xlu0 %v418
  %v420 = vpop.xlane.xlu0 %419
  %v421 = vsel %vm81, %v412, 0.0
  %422 = vadd.xlane.f32.xlu0 %v421
  %v423 = vpop.xlane.xlu0 %422
  %v424 = vsel %vm81, %v414, 0.0
  %425 = vadd.xlane.f32.xlu0 %v424
  %v426 = vpop.xlane.xlu0 %425
  %v427 = vrcp.pop %v417
  %v428 = vmul.f32 %v408, %v427
  %v429 = vrcp.pop %v420
  %v430 = vmul.f32 %v410, %v429
  %v431 = vrcp.pop %v423
  %v432 = vmul.f32 %v412, %v431
  %v433 = vrcp.pop %v426
  %v434 = vmul.f32 %v414, %v433
  %435 = vrot.lane.b32.xlu0 %v251, 64
  %v436 = vpop.permute.xlu0 %435
  %437 = vrot.lane.b32.xlu0 %v256, 64
  %v438 = vpop.permute.xlu0 %437
  %439 = vrot.lane.b32.xlu0 %v261, 64
  %v440 = vpop.permute.xlu0 %439
  %441 = vrot.lane.b32.xlu0 %v266, 64
  %v442 = vpop.permute.xlu0 %441
  %v448 = vsel %vm81, %v428, 0
  %v451 = vsel %vm81, %v430, 0
  %v454 = vsel %vm81, %v432, 0
  %v457 = vsel %vm81, %v434, 0
  %459 = vmatprep.subr.mxu0 0.0
  %460 = vmatpush1.msra.mxu0 0.0
  %461 = vmatprep.subr.mxu0 0.0
  %462 = vmatpush1.msra.mxu0 0.0
  %463 = vmatprep.subr.mxu0 0.0
  %464 = vmatpush1.msra.mxu0 0.0
  %465 = vmatprep.subr.mxu0 0.0
  %466 = vmatpush1.msra.mxu0 0.0
  %467 = vmatprep.subr.mxu0 0.0
  %468 = vmatpush1.msra.mxu0 0.0
  %469 = vmatprep.subr.mxu0 0.0
  %470 = vmatpush1.msra.mxu0 0.0
  %471 = vmatprep.subr.mxu0 0.0
  %472 = vmatpush1.msra.mxu0 0.0
  %473 = vmatprep.subr.mxu0 0.0
  %474 = vmatpush1.msra.mxu0 0.0
  %475 = vmatprep.subr.mxu0 0.0
  %476 = vmatpush1.msra.mxu0 0.0
  %477 = vmatprep.subr.mxu0 0.0
  %478 = vmatpush1.msra.mxu0 0.0
  %479 = vmatprep.subr.mxu0 0.0
  %480 = vmatpush1.msra.mxu0 0.0
  %481 = vmatprep.subr.mxu0 0.0
  %482 = vmatpush1.msra.mxu0 0.0
  %483 = vmatprep.subr.mxu0 0.0
  %484 = vmatpush1.msra.mxu0 %v442
  %485 = vmatprep.subr.mxu0 0.0
  %486 = vmatpush1.msra.mxu0 %v440
  %487 = vmatprep.subr.mxu0 0.0
  %488 = vmatpush1.msra.mxu0 %v438
  %489 = vmatprep.subr.mxu0 0.0
  %490 = vmatpush1.msra.mxu0 %v436
  %491 = vmatprep.subr.mxu0 0.0
  %492 = vmatpush2.msra.mxu0 0.0
  %493 = vmatprep.subr.mxu0 0.0
  %494 = vmatpush2.msra.mxu0 0.0
  %495 = vmatprep.subr.mxu0 0.0
  %496 = vmatpush2.msra.mxu0 0.0
  %497 = vmatprep.subr.mxu0 0.0
  %498 = vmatpush2.msra.mxu0 0.0
  %499 = vmatprep.subr.mxu0 0.0
  %500 = vmatpush2.msra.mxu0 0.0
  %501 = vmatprep.subr.mxu0 0.0
  %502 = vmatpush2.msra.mxu0 0.0
  %503 = vmatprep.subr.mxu0 0.0
  %504 = vmatpush2.msra.mxu0 0.0
  %505 = vmatprep.subr.mxu0 0.0
  %506 = vmatpush2.msra.mxu0 0.0
  %507 = vmatprep.subr.mxu0 0.0
  %508 = vmatpush2.msra.mxu0 0.0
  %509 = vmatprep.subr.mxu0 0.0
  %510 = vmatpush2.msra.mxu0 0.0
  %511 = vmatprep.subr.mxu0 0.0
  %512 = vmatpush2.msra.mxu0 0.0
  %513 = vmatprep.subr.mxu0 0.0
  %514 = vmatpush2.msra.mxu0 0.0
  %515 = vmatprep.subr.mxu0 0.0
  %516 = vmatpush2.msra.mxu0 0.0
  %517 = vmatprep.subr.mxu0 0.0
  %518 = vmatpush2.msra.mxu0 0.0
  %519 = vmatprep.subr.mxu0 0.0
  %520 = vmatpush2.msra.mxu0 0.0
  %521 = vmatprep.subr.mxu0 0.0
  %522 = vmatpush2.msra.mxu0 0.0
  %523 = vmatprep.mubr.f32.mxu0 0.0
  %524 = vmatmul.mubr.f32.gmra.mxu0 %v448
  %v525 = vpop.f32.mrf.mxu0
  %v526 = vadd.f32 0.0, %v525
  %v527 = vpop.f32.mrf.mxu0
  %528 = vmatprep.mubr.f32.mxu0 0.0
  %529 = vmatmul.mubr.f32.gmra.mxu0 %v451
  %v530 = vpop.f32.mrf.mxu0
  %v531 = vadd.f32 0.0, %v530
  %v532 = vpop.f32.mrf.mxu0
  %533 = vmatprep.mubr.f32.mxu0 0.0
  %534 = vmatmul.mubr.f32.gmra.mxu0 %v454
  %v535 = vpop.f32.mrf.mxu0
  %v536 = vadd.f32 0.0, %v535
  %v537 = vpop.f32.mrf.mxu0
  %538 = vmatprep.mubr.f32.mxu0 0.0
  %539 = vmatmul.mubr.f32.gmra.mxu0 %v457
  %v540 = vpop.f32.mrf.mxu0
  %v541 = vadd.f32 0.0, %v540
  %v542 = vpop.f32.mrf.mxu0
  %543 = vdwg.mxu0
  %544 = vrot.lane.b32.xlu0 %v251, 120
  %v545 = vpop.permute.xlu0 %544
  %546 = vrot.lane.b32.xlu0 %v256, 120
  %v547 = vpop.permute.xlu0 %546
  %548 = vrot.lane.b32.xlu0 %v261, 120
  %v549 = vpop.permute.xlu0 %548
  %550 = vrot.lane.b32.xlu0 %v266, 120
  %v551 = vpop.permute.xlu0 %550
  %552 = vrot.lane.b32.xlu0 %v251, 88
  %v553 = vpop.permute.xlu0 %552
  %554 = vrot.lane.b32.xlu0 %v256, 88
  %v555 = vpop.permute.xlu0 %554
  %556 = vrot.lane.b32.xlu0 %v261, 88
  %v557 = vpop.permute.xlu0 %556
  %558 = vrot.lane.b32.xlu0 %v266, 88
  %v559 = vpop.permute.xlu0 %558
  %v560 = vsel %vm281, %v545, 0
  %v562 = vsel %vm281, %v547, 0
  %v564 = vsel %vm281, %v549, 0
  %v566 = vsel %vm281, %v551, 0
  %v568 = vsel %vm281, %v553, 0
  %v570 = vsel %vm281, %v555, 0
  %v572 = vsel %vm281, %v557, 0
  %v574 = vsel %vm281, %v559, 0
  %576 = vmatprep.subr.mxu0 0.0
  %577 = vmatpush1.xpose.msra.mxu0 0.0
  %578 = vmatprep.subr.mxu0 0.0
  %579 = vmatpush1.xpose.msra.mxu0 0.0
  %580 = vmatprep.subr.mxu0 0.0
  %581 = vmatpush1.xpose.msra.mxu0 0.0
  %582 = vmatprep.subr.mxu0 0.0
  %583 = vmatpush1.xpose.msra.mxu0 0.0
  %584 = vmatprep.subr.mxu0 0.0
  %585 = vmatpush1.xpose.msra.mxu0 0.0
  %586 = vmatprep.subr.mxu0 0.0
  %587 = vmatpush1.xpose.msra.mxu0 0.0
  %588 = vmatprep.subr.mxu0 0.0
  %589 = vmatpush1.xpose.msra.mxu0 0.0
  %590 = vmatprep.subr.mxu0 0.0
  %591 = vmatpush1.xpose.msra.mxu0 0.0
  %592 = vmatprep.subr.mxu0 0.0
  %593 = vmatpush1.xpose.msra.mxu0 0.0
  %594 = vmatprep.subr.mxu0 0.0
  %595 = vmatpush1.xpose.msra.mxu0 0.0
  %596 = vmatprep.subr.mxu0 0.0
  %597 = vmatpush1.xpose.msra.mxu0 0.0
  %598 = vmatprep.subr.mxu0 0.0
  %599 = vmatpush1.xpose.msra.mxu0 0.0
  %600 = vmatprep.subr.mxu0 0.0
  %601 = vmatpush1.xpose.msra.mxu0 %v574
  %602 = vmatprep.subr.mxu0 0.0
  %603 = vmatpush1.xpose.msra.mxu0 %v572
  %604 = vmatprep.subr.mxu0 0.0
  %605 = vmatpush1.xpose.msra.mxu0 %v570
  %606 = vmatprep.subr.mxu0 0.0
  %607 = vmatpush1.xpose.msra.mxu0 %v568
  %608 = vmatprep.subr.mxu0 0.0
  %609 = vmatpush2.xpose.msra.mxu0 0.0
  %610 = vmatprep.subr.mxu0 0.0
  %611 = vmatpush2.xpose.msra.mxu0 0.0
  %612 = vmatprep.subr.mxu0 0.0
  %613 = vmatpush2.xpose.msra.mxu0 0.0
  %614 = vmatprep.subr.mxu0 0.0
  %615 = vmatpush2.xpose.msra.mxu0 0.0
  %616 = vmatprep.subr.mxu0 0.0
  %617 = vmatpush2.xpose.msra.mxu0 0.0
  %618 = vmatprep.subr.mxu0 0.0
  %619 = vmatpush2.xpose.msra.mxu0 0.0
  %620 = vmatprep.subr.mxu0 0.0
  %621 = vmatpush2.xpose.msra.mxu0 0.0
  %622 = vmatprep.subr.mxu0 0.0
  %623 = vmatpush2.xpose.msra.mxu0 0.0
  %624 = vmatprep.subr.mxu0 0.0
  %625 = vmatpush2.xpose.msra.mxu0 0.0
  %626 = vmatprep.subr.mxu0 0.0
  %627 = vmatpush2.xpose.msra.mxu0 0.0
  %628 = vmatprep.subr.mxu0 0.0
  %629 = vmatpush2.xpose.msra.mxu0 0.0
  %630 = vmatprep.subr.mxu0 0.0
  %631 = vmatpush2.xpose.msra.mxu0 0.0
  %632 = vmatprep.subr.mxu0 0.0
  %633 = vmatpush2.xpose.msra.mxu0 0.0
  %634 = vmatprep.subr.mxu0 0.0
  %635 = vmatpush2.xpose.msra.mxu0 0.0
  %636 = vmatprep.subr.mxu0 0.0
  %637 = vmatpush2.xpose.msra.mxu0 0.0
  %638 = vmatprep.subr.mxu0 0.0
  %639 = vmatpush2.xpose.msra.mxu0 0.0
  %640 = vmatprep.mubr.f32.mxu0 0.0
  %641 = vmatmul.mubr.f32.gmra.mxu0 %v560
  %v642 = vpop.f32.mrf.mxu0
  %v643 = vadd.f32 0.0, %v642
  %v644 = vpop.f32.mrf.mxu0
  %645 = vmatprep.mubr.f32.mxu0 0.0
  %646 = vmatmul.mubr.f32.gmra.mxu0 %v562
  %v647 = vpop.f32.mrf.mxu0
  %v648 = vadd.f32 0.0, %v647
  %v649 = vpop.f32.mrf.mxu0
  %650 = vmatprep.mubr.f32.mxu0 0.0
  %651 = vmatmul.mubr.f32.gmra.mxu0 %v564
  %v652 = vpop.f32.mrf.mxu0
  %v653 = vadd.f32 0.0, %v652
  %v654 = vpop.f32.mrf.mxu0
  %655 = vmatprep.mubr.f32.mxu0 0.0
  %656 = vmatmul.mubr.f32.gmra.mxu0 %v566
  %v657 = vpop.f32.mrf.mxu0
  %v658 = vadd.f32 0.0, %v657
  %v659 = vpop.f32.mrf.mxu0
  %660 = vdwg.mxu0
  %v661 = vmul.f32 %v643, 0.35355338
  %v662 = vmul.f32 %v648, 0.35355338
  %v663 = vmul.f32 %v653, 0.35355338
  %v664 = vmul.f32 %v658, 0.35355338
  %v665 = vadd.f32 %v661, %v157
  %v666 = vadd.f32 %v662, %v158
  %v667 = vadd.f32 %v663, %v159
  %v668 = vadd.f32 %v664, %v160
  %v669 = vsel %vm81, %v665, -inf
  %670 = vmax.xlane.f32.xlu0 %v669
  %v671 = vpop.xlane.xlu0 %670
  %v672 = vsel %vm81, %v666, -inf
  %673 = vmax.xlane.f32.xlu0 %v672
  %v674 = vpop.xlane.xlu0 %673
  %v675 = vsel %vm81, %v667, -inf
  %676 = vmax.xlane.f32.xlu0 %v675
  %v677 = vpop.xlane.xlu0 %676
  %v678 = vsel %vm81, %v668, -inf
  %679 = vmax.xlane.f32.xlu0 %v678
  %v680 = vpop.xlane.xlu0 %679
  %v681 = vsub.f32 %v665, %v671
  %v682 = vsub.f32 %v666, %v674
  %v683 = vsub.f32 %v667, %v677
  %v684 = vsub.f32 %v668, %v680
  %v685 = vmul.f32 %v681, 1.442695
  %v686 = vpow.pop %v685
  %v687 = vmul.f32 %v682, 1.442695
  %v688 = vpow.pop %v687
  %v689 = vmul.f32 %v683, 1.442695
  %v690 = vpow.pop %v689
  %v691 = vmul.f32 %v684, 1.442695
  %v692 = vpow.pop %v691
  %v693 = vsel %vm81, %v686, 0.0
  %694 = vadd.xlane.f32.xlu0 %v693
  %v695 = vpop.xlane.xlu0 %694
  %v696 = vsel %vm81, %v688, 0.0
  %697 = vadd.xlane.f32.xlu0 %v696
  %v698 = vpop.xlane.xlu0 %697
  %v699 = vsel %vm81, %v690, 0.0
  %700 = vadd.xlane.f32.xlu0 %v699
  %v701 = vpop.xlane.xlu0 %700
  %v702 = vsel %vm81, %v692, 0.0
  %703 = vadd.xlane.f32.xlu0 %v702
  %v704 = vpop.xlane.xlu0 %703
  %v705 = vrcp.pop %v695
  %v706 = vmul.f32 %v686, %v705
  %v707 = vrcp.pop %v698
  %v708 = vmul.f32 %v688, %v707
  %v709 = vrcp.pop %v701
  %v710 = vmul.f32 %v690, %v709
  %v711 = vrcp.pop %v704
  %v712 = vmul.f32 %v692, %v711
  %713 = vrot.lane.b32.xlu0 %v251, 56
  %v714 = vpop.permute.xlu0 %713
  %715 = vrot.lane.b32.xlu0 %v256, 56
  %v716 = vpop.permute.xlu0 %715
  %717 = vrot.lane.b32.xlu0 %v261, 56
  %v718 = vpop.permute.xlu0 %717
  %719 = vrot.lane.b32.xlu0 %v266, 56
  %v720 = vpop.permute.xlu0 %719
  %v726 = vsel %vm81, %v706, 0
  %v729 = vsel %vm81, %v708, 0
  %v732 = vsel %vm81, %v710, 0
  %v735 = vsel %vm81, %v712, 0
  %737 = vmatprep.subr.mxu0 0.0
  %738 = vmatpush1.msra.mxu0 0.0
  %739 = vmatprep.subr.mxu0 0.0
  %740 = vmatpush1.msra.mxu0 0.0
  %741 = vmatprep.subr.mxu0 0.0
  %742 = vmatpush1.msra.mxu0 0.0
  %743 = vmatprep.subr.mxu0 0.0
  %744 = vmatpush1.msra.mxu0 0.0
  %745 = vmatprep.subr.mxu0 0.0
  %746 = vmatpush1.msra.mxu0 0.0
  %747 = vmatprep.subr.mxu0 0.0
  %748 = vmatpush1.msra.mxu0 0.0
  %749 = vmatprep.subr.mxu0 0.0
  %750 = vmatpush1.msra.mxu0 0.0
  %751 = vmatprep.subr.mxu0 0.0
  %752 = vmatpush1.msra.mxu0 0.0
  %753 = vmatprep.subr.mxu0 0.0
  %754 = vmatpush1.msra.mxu0 0.0
  %755 = vmatprep.subr.mxu0 0.0
  %756 = vmatpush1.msra.mxu0 0.0
  %757 = vmatprep.subr.mxu0 0.0
  %758 = vmatpush1.msra.mxu0 0.0
  %759 = vmatprep.subr.mxu0 0.0
  %760 = vmatpush1.msra.mxu0 0.0
  %761 = vmatprep.subr.mxu0 0.0
  %762 = vmatpush1.msra.mxu0 %v720
  %763 = vmatprep.subr.mxu0 0.0
  %764 = vmatpush1.msra.mxu0 %v718
  %765 = vmatprep.subr.mxu0 0.0
  %766 = vmatpush1.msra.mxu0 %v716
  %767 = vmatprep.subr.mxu0 0.0
  %768 = vmatpush1.msra.mxu0 %v714
  %769 = vmatprep.subr.mxu0 0.0
  %770 = vmatpush2.msra.mxu0 0.0
  %771 = vmatprep.subr.mxu0 0.0
  %772 = vmatpush2.msra.mxu0 0.0
  %773 = vmatprep.subr.mxu0 0.0
  %774 = vmatpush2.msra.mxu0 0.0
  %775 = vmatprep.subr.mxu0 0.0
  %776 = vmatpush2.msra.mxu0 0.0
  %777 = vmatprep.subr.mxu0 0.0
  %778 = vmatpush2.msra.mxu0 0.0
  %779 = vmatprep.subr.mxu0 0.0
  %780 = vmatpush2.msra.mxu0 0.0
  %781 = vmatprep.subr.mxu0 0.0
  %782 = vmatpush2.msra.mxu0 0.0
  %783 = vmatprep.subr.mxu0 0.0
  %784 = vmatpush2.msra.mxu0 0.0
  %785 = vmatprep.subr.mxu0 0.0
  %786 = vmatpush2.msra.mxu0 0.0
  %787 = vmatprep.subr.mxu0 0.0
  %788 = vmatpush2.msra.mxu0 0.0
  %789 = vmatprep.subr.mxu0 0.0
  %790 = vmatpush2.msra.mxu0 0.0
  %791 = vmatprep.subr.mxu0 0.0
  %792 = vmatpush2.msra.mxu0 0.0
  %793 = vmatprep.subr.mxu0 0.0
  %794 = vmatpush2.msra.mxu0 0.0
  %795 = vmatprep.subr.mxu0 0.0
  %796 = vmatpush2.msra.mxu0 0.0
  %797 = vmatprep.subr.mxu0 0.0
  %798 = vmatpush2.msra.mxu0 0.0
  %799 = vmatprep.subr.mxu0 0.0
  %800 = vmatpush2.msra.mxu0 0.0
  %801 = vmatprep.mubr.f32.mxu0 0.0
  %802 = vmatmul.mubr.f32.gmra.mxu0 %v726
  %v803 = vpop.f32.mrf.mxu0
  %v804 = vadd.f32 0.0, %v803
  %v805 = vpop.f32.mrf.mxu0
  %806 = vmatprep.mubr.f32.mxu0 0.0
  %807 = vmatmul.mubr.f32.gmra.mxu0 %v729
  %v808 = vpop.f32.mrf.mxu0
  %v809 = vadd.f32 0.0, %v808
  %v810 = vpop.f32.mrf.mxu0
  %811 = vmatprep.mubr.f32.mxu0 0.0
  %812 = vmatmul.mubr.f32.gmra.mxu0 %v732
  %v813 = vpop.f32.mrf.mxu0
  %v814 = vadd.f32 0.0, %v813
  %v815 = vpop.f32.mrf.mxu0
  %816 = vmatprep.mubr.f32.mxu0 0.0
  %817 = vmatmul.mubr.f32.gmra.mxu0 %v735
  %v818 = vpop.f32.mrf.mxu0
  %v819 = vadd.f32 0.0, %v818
  %v820 = vpop.f32.mrf.mxu0
  %821 = vdwg.mxu0
  %822 = vrot.lane.b32.xlu0 %v251, 112
  %v823 = vpop.permute.xlu0 %822
  %824 = vrot.lane.b32.xlu0 %v256, 112
  %v825 = vpop.permute.xlu0 %824
  %826 = vrot.lane.b32.xlu0 %v261, 112
  %v827 = vpop.permute.xlu0 %826
  %828 = vrot.lane.b32.xlu0 %v266, 112
  %v829 = vpop.permute.xlu0 %828
  %830 = vrot.lane.b32.xlu0 %v251, 80
  %v831 = vpop.permute.xlu0 %830
  %832 = vrot.lane.b32.xlu0 %v256, 80
  %v833 = vpop.permute.xlu0 %832
  %834 = vrot.lane.b32.xlu0 %v261, 80
  %v835 = vpop.permute.xlu0 %834
  %836 = vrot.lane.b32.xlu0 %v266, 80
  %v837 = vpop.permute.xlu0 %836
  %v838 = vsel %vm281, %v823, 0
  %v840 = vsel %vm281, %v825, 0
  %v842 = vsel %vm281, %v827, 0
  %v844 = vsel %vm281, %v829, 0
  %v846 = vsel %vm281, %v831, 0
  %v848 = vsel %vm281, %v833, 0
  %v850 = vsel %vm281, %v835, 0
  %v852 = vsel %vm281, %v837, 0
  %854 = vmatprep.subr.mxu0 0.0
  %855 = vmatpush1.xpose.msra.mxu0 0.0
  %856 = vmatprep.subr.mxu0 0.0
  %857 = vmatpush1.xpose.msra.mxu0 0.0
  %858 = vmatprep.subr.mxu0 0.0
  %859 = vmatpush1.xpose.msra.mxu0 0.0
  %860 = vmatprep.subr.mxu0 0.0
  %861 = vmatpush1.xpose.msra.mxu0 0.0
  %862 = vmatprep.subr.mxu0 0.0
  %863 = vmatpush1.xpose.msra.mxu0 0.0
  %864 = vmatprep.subr.mxu0 0.0
  %865 = vmatpush1.xpose.msra.mxu0 0.0
  %866 = vmatprep.subr.mxu0 0.0
  %867 = vmatpush1.xpose.msra.mxu0 0.0
  %868 = vmatprep.subr.mxu0 0.0
  %869 = vmatpush1.xpose.msra.mxu0 0.0
  %870 = vmatprep.subr.mxu0 0.0
  %871 = vmatpush1.xpose.msra.mxu0 0.0
  %872 = vmatprep.subr.mxu0 0.0
  %873 = vmatpush1.xpose.msra.mxu0 0.0
  %874 = vmatprep.subr.mxu0 0.0
  %875 = vmatpush1.xpose.msra.mxu0 0.0
  %876 = vmatprep.subr.mxu0 0.0
  %877 = vmatpush1.xpose.msra.mxu0 0.0
  %878 = vmatprep.subr.mxu0 0.0
  %879 = vmatpush1.xpose.msra.mxu0 %v852
  %880 = vmatprep.subr.mxu0 0.0
  %881 = vmatpush1.xpose.msra.mxu0 %v850
  %882 = vmatprep.subr.mxu0 0.0
  %883 = vmatpush1.xpose.msra.mxu0 %v848
  %884 = vmatprep.subr.mxu0 0.0
  %885 = vmatpush1.xpose.msra.mxu0 %v846
  %886 = vmatprep.subr.mxu0 0.0
  %887 = vmatpush2.xpose.msra.mxu0 0.0
  %888 = vmatprep.subr.mxu0 0.0
  %889 = vmatpush2.xpose.msra.mxu0 0.0
  %890 = vmatprep.subr.mxu0 0.0
  %891 = vmatpush2.xpose.msra.mxu0 0.0
  %892 = vmatprep.subr.mxu0 0.0
  %893 = vmatpush2.xpose.msra.mxu0 0.0
  %894 = vmatprep.subr.mxu0 0.0
  %895 = vmatpush2.xpose.msra.mxu0 0.0
  %896 = vmatprep.subr.mxu0 0.0
  %897 = vmatpush2.xpose.msra.mxu0 0.0
  %898 = vmatprep.subr.mxu0 0.0
  %899 = vmatpush2.xpose.msra.mxu0 0.0
  %900 = vmatprep.subr.mxu0 0.0
  %901 = vmatpush2.xpose.msra.mxu0 0.0
  %902 = vmatprep.subr.mxu0 0.0
  %903 = vmatpush2.xpose.msra.mxu0 0.0
  %904 = vmatprep.subr.mxu0 0.0
  %905 = vmatpush2.xpose.msra.mxu0 0.0
  %906 = vmatprep.subr.mxu0 0.0
  %907 = vmatpush2.xpose.msra.mxu0 0.0
  %908 = vmatprep.subr.mxu0 0.0
  %909 = vmatpush2.xpose.msra.mxu0 0.0
  %910 = vmatprep.subr.mxu0 0.0
  %911 = vmatpush2.xpose.msra.mxu0 0.0
  %912 = vmatprep.subr.mxu0 0.0
  %913 = vmatpush2.xpose.msra.mxu0 0.0
  %914 = vmatprep.subr.mxu0 0.0
  %915 = vmatpush2.xpose.msra.mxu0 0.0
  %916 = vmatprep.subr.mxu0 0.0
  %917 = vmatpush2.xpose.msra.mxu0 0.0
  %918 = vmatprep.mubr.f32.mxu0 0.0
  %919 = vmatmul.mubr.f32.gmra.mxu0 %v838
  %v920 = vpop.f32.mrf.mxu0
  %v921 = vadd.f32 0.0, %v920
  %v922 = vpop.f32.mrf.mxu0
  %923 = vmatprep.mubr.f32.mxu0 0.0
  %924 = vmatmul.mubr.f32.gmra.mxu0 %v840
  %v925 = vpop.f32.mrf.mxu0
  %v926 = vadd.f32 0.0, %v925
  %v927 = vpop.f32.mrf.mxu0
  %928 = vmatprep.mubr.f32.mxu0 0.0
  %929 = vmatmul.mubr.f32.gmra.mxu0 %v842
  %v930 = vpop.f32.mrf.mxu0
  %v931 = vadd.f32 0.0, %v930
  %v932 = vpop.f32.mrf.mxu0
  %933 = vmatprep.mubr.f32.mxu0 0.0
  %934 = vmatmul.mubr.f32.gmra.mxu0 %v844
  %v935 = vpop.f32.mrf.mxu0
  %v936 = vadd.f32 0.0, %v935
  %v937 = vpop.f32.mrf.mxu0
  %938 = vdwg.mxu0
  %v939 = vmul.f32 %v921, 0.35355338
  %v940 = vmul.f32 %v926, 0.35355338
  %v941 = vmul.f32 %v931, 0.35355338
  %v942 = vmul.f32 %v936, 0.35355338
  %v943 = vadd.f32 %v939, %v157
  %v944 = vadd.f32 %v940, %v158
  %v945 = vadd.f32 %v941, %v159
  %v946 = vadd.f32 %v942, %v160
  %v947 = vsel %vm81, %v943, -inf
  %948 = vmax.xlane.f32.xlu0 %v947
  %v949 = vpop.xlane.xlu0 %948
  %v950 = vsel %vm81, %v944, -inf
  %951 = vmax.xlane.f32.xlu0 %v950
  %v952 = vpop.xlane.xlu0 %951
  %v953 = vsel %vm81, %v945, -inf
  %954 = vmax.xlane.f32.xlu0 %v953
  %v955 = vpop.xlane.xlu0 %954
  %v956 = vsel %vm81, %v946, -inf
  %957 = vmax.xlane.f32.xlu0 %v956
  %v958 = vpop.xlane.xlu0 %957
  %v959 = vsub.f32 %v943, %v949
  %v960 = vsub.f32 %v944, %v952
  %v961 = vsub.f32 %v945, %v955
  %v962 = vsub.f32 %v946, %v958
  %v963 = vmul.f32 %v959, 1.442695
  %v964 = vpow.pop %v963
  %v965 = vmul.f32 %v960, 1.442695
  %v966 = vpow.pop %v965
  %v967 = vmul.f32 %v961, 1.442695
  %v968 = vpow.pop %v967
  %v969 = vmul.f32 %v962, 1.442695
  %v970 = vpow.pop %v969
  %v971 = vsel %vm81, %v964, 0.0
  %972 = vadd.xlane.f32.xlu0 %v971
  %v973 = vpop.xlane.xlu0 %972
  %v974 = vsel %vm81, %v966, 0.0
  %975 = vadd.xlane.f32.xlu0 %v974
  %v976 = vpop.xlane.xlu0 %975
  %v977 = vsel %vm81, %v968, 0.0
  %978 = vadd.xlane.f32.xlu0 %v977
  %v979 = vpop.xlane.xlu0 %978
  %v980 = vsel %vm81, %v970, 0.0
  %981 = vadd.xlane.f32.xlu0 %v980
  %v982 = vpop.xlane.xlu0 %981
  %v983 = vrcp.pop %v973
  %v984 = vmul.f32 %v964, %v983
  %v985 = vrcp.pop %v976
  %v986 = vmul.f32 %v966, %v985
  %v987 = vrcp.pop %v979
  %v988 = vmul.f32 %v968, %v987
  %v989 = vrcp.pop %v982
  %v990 = vmul.f32 %v970, %v989
  %991 = vrot.lane.b32.xlu0 %v251, 48
  %v992 = vpop.permute.xlu0 %991
  %993 = vrot.lane.b32.xlu0 %v256, 48
  %v994 = vpop.permute.xlu0 %993
  %995 = vrot.lane.b32.xlu0 %v261, 48
  %v996 = vpop.permute.xlu0 %995
  %997 = vrot.lane.b32.xlu0 %v266, 48
  %v998 = vpop.permute.xlu0 %997
  %v1004 = vsel %vm81, %v984, 0
  %v1007 = vsel %vm81, %v986, 0
  %v1010 = vsel %vm81, %v988, 0
  %v1013 = vsel %vm81, %v990, 0
  %1015 = vmatprep.subr.mxu0 0.0
  %1016 = vmatpush1.msra.mxu0 0.0
  %1017 = vmatprep.subr.mxu0 0.0
  %1018 = vmatpush1.msra.mxu0 0.0
  %1019 = vmatprep.subr.mxu0 0.0
  %1020 = vmatpush1.msra.mxu0 0.0
  %1021 = vmatprep.subr.mxu0 0.0
  %1022 = vmatpush1.msra.mxu0 0.0
  %1023 = vmatprep.subr.mxu0 0.0
  %1024 = vmatpush1.msra.mxu0 0.0
  %1025 = vmatprep.subr.mxu0 0.0
  %1026 = vmatpush1.msra.mxu0 0.0
  %1027 = vmatprep.subr.mxu0 0.0
  %1028 = vmatpush1.msra.mxu0 0.0
  %1029 = vmatprep.subr.mxu0 0.0
  %1030 = vmatpush1.msra.mxu0 0.0
  %1031 = vmatprep.subr.mxu0 0.0
  %1032 = vmatpush1.msra.mxu0 0.0
  %1033 = vmatprep.subr.mxu0 0.0
  %1034 = vmatpush1.msra.mxu0 0.0
  %1035 = vmatprep.subr.mxu0 0.0
  %1036 = vmatpush1.msra.mxu0 0.0
  %1037 = vmatprep.subr.mxu0 0.0
  %1038 = vmatpush1.msra.mxu0 0.0
  %1039 = vmatprep.subr.mxu0 0.0
  %1040 = vmatpush1.msra.mxu0 %v998
  %1041 = vmatprep.subr.mxu0 0.0
  %1042 = vmatpush1.msra.mxu0 %v996
  %1043 = vmatprep.subr.mxu0 0.0
  %1044 = vmatpush1.msra.mxu0 %v994
  %1045 = vmatprep.subr.mxu0 0.0
  %1046 = vmatpush1.msra.mxu0 %v992
  %1047 = vmatprep.subr.mxu0 0.0
  %1048 = vmatpush2.msra.mxu0 0.0
  %1049 = vmatprep.subr.mxu0 0.0
  %1050 = vmatpush2.msra.mxu0 0.0
  %1051 = vmatprep.subr.mxu0 0.0
  %1052 = vmatpush2.msra.mxu0 0.0
  %1053 = vmatprep.subr.mxu0 0.0
  %1054 = vmatpush2.msra.mxu0 0.0
  %1055 = vmatprep.subr.mxu0 0.0
  %1056 = vmatpush2.msra.mxu0 0.0
  %1057 = vmatprep.subr.mxu0 0.0
  %1058 = vmatpush2.msra.mxu0 0.0
  %1059 = vmatprep.subr.mxu0 0.0
  %1060 = vmatpush2.msra.mxu0 0.0
  %1061 = vmatprep.subr.mxu0 0.0
  %1062 = vmatpush2.msra.mxu0 0.0
  %1063 = vmatprep.subr.mxu0 0.0
  %1064 = vmatpush2.msra.mxu0 0.0
  %1065 = vmatprep.subr.mxu0 0.0
  %1066 = vmatpush2.msra.mxu0 0.0
  %1067 = vmatprep.subr.mxu0 0.0
  %1068 = vmatpush2.msra.mxu0 0.0
  %1069 = vmatprep.subr.mxu0 0.0
  %1070 = vmatpush2.msra.mxu0 0.0
  %1071 = vmatprep.subr.mxu0 0.0
  %1072 = vmatpush2.msra.mxu0 0.0
  %1073 = vmatprep.subr.mxu0 0.0
  %1074 = vmatpush2.msra.mxu0 0.0
  %1075 = vmatprep.subr.mxu0 0.0
  %1076 = vmatpush2.msra.mxu0 0.0
  %1077 = vmatprep.subr.mxu0 0.0
  %1078 = vmatpush2.msra.mxu0 0.0
  %1079 = vmatprep.mubr.f32.mxu0 0.0
  %1080 = vmatmul.mubr.f32.gmra.mxu0 %v1004
  %v1081 = vpop.f32.mrf.mxu0
  %v1082 = vadd.f32 0.0, %v1081
  %v1083 = vpop.f32.mrf.mxu0
  %1084 = vmatprep.mubr.f32.mxu0 0.0
  %1085 = vmatmul.mubr.f32.gmra.mxu0 %v1007
  %v1086 = vpop.f32.mrf.mxu0
  %v1087 = vadd.f32 0.0, %v1086
  %v1088 = vpop.f32.mrf.mxu0
  %1089 = vmatprep.mubr.f32.mxu0 0.0
  %1090 = vmatmul.mubr.f32.gmra.mxu0 %v1010
  %v1091 = vpop.f32.mrf.mxu0
  %v1092 = vadd.f32 0.0, %v1091
  %v1093 = vpop.f32.mrf.mxu0
  %1094 = vmatprep.mubr.f32.mxu0 0.0
  %1095 = vmatmul.mubr.f32.gmra.mxu0 %v1013
  %v1096 = vpop.f32.mrf.mxu0
  %v1097 = vadd.f32 0.0, %v1096
  %v1098 = vpop.f32.mrf.mxu0
  %1099 = vdwg.mxu0
  %1100 = vrot.lane.b32.xlu0 %v251, 104
  %v1101 = vpop.permute.xlu0 %1100
  %1102 = vrot.lane.b32.xlu0 %v256, 104
  %v1103 = vpop.permute.xlu0 %1102
  %1104 = vrot.lane.b32.xlu0 %v261, 104
  %v1105 = vpop.permute.xlu0 %1104
  %1106 = vrot.lane.b32.xlu0 %v266, 104
  %v1107 = vpop.permute.xlu0 %1106
  %1108 = vrot.lane.b32.xlu0 %v251, 72
  %v1109 = vpop.permute.xlu0 %1108
  %1110 = vrot.lane.b32.xlu0 %v256, 72
  %v1111 = vpop.permute.xlu0 %1110
  %1112 = vrot.lane.b32.xlu0 %v261, 72
  %v1113 = vpop.permute.xlu0 %1112
  %1114 = vrot.lane.b32.xlu0 %v266, 72
  %v1115 = vpop.permute.xlu0 %1114
  %v1116 = vsel %vm281, %v1101, 0
  %v1118 = vsel %vm281, %v1103, 0
  %v1120 = vsel %vm281, %v1105, 0
  %v1122 = vsel %vm281, %v1107, 0
  %v1124 = vsel %vm281, %v1109, 0
  %v1126 = vsel %vm281, %v1111, 0
  %v1128 = vsel %vm281, %v1113, 0
  %v1130 = vsel %vm281, %v1115, 0
  %1132 = vmatprep.subr.mxu0 0.0
  %1133 = vmatpush1.xpose.msra.mxu0 0.0
  %1134 = vmatprep.subr.mxu0 0.0
  %1135 = vmatpush1.xpose.msra.mxu0 0.0
  %1136 = vmatprep.subr.mxu0 0.0
  %1137 = vmatpush1.xpose.msra.mxu0 0.0
  %1138 = vmatprep.subr.mxu0 0.0
  %1139 = vmatpush1.xpose.msra.mxu0 0.0
  %1140 = vmatprep.subr.mxu0 0.0
  %1141 = vmatpush1.xpose.msra.mxu0 0.0
  %1142 = vmatprep.subr.mxu0 0.0
  %1143 = vmatpush1.xpose.msra.mxu0 0.0
  %1144 = vmatprep.subr.mxu0 0.0
  %1145 = vmatpush1.xpose.msra.mxu0 0.0
  %1146 = vmatprep.subr.mxu0 0.0
  %1147 = vmatpush1.xpose.msra.mxu0 0.0
  %1148 = vmatprep.subr.mxu0 0.0
  %1149 = vmatpush1.xpose.msra.mxu0 0.0
  %1150 = vmatprep.subr.mxu0 0.0
  %1151 = vmatpush1.xpose.msra.mxu0 0.0
  %1152 = vmatprep.subr.mxu0 0.0
  %1153 = vmatpush1.xpose.msra.mxu0 0.0
  %1154 = vmatprep.subr.mxu0 0.0
  %1155 = vmatpush1.xpose.msra.mxu0 0.0
  %1156 = vmatprep.subr.mxu0 0.0
  %1157 = vmatpush1.xpose.msra.mxu0 %v1130
  %1158 = vmatprep.subr.mxu0 0.0
  %1159 = vmatpush1.xpose.msra.mxu0 %v1128
  %1160 = vmatprep.subr.mxu0 0.0
  %1161 = vmatpush1.xpose.msra.mxu0 %v1126
  %1162 = vmatprep.subr.mxu0 0.0
  %1163 = vmatpush1.xpose.msra.mxu0 %v1124
  %1164 = vmatprep.subr.mxu0 0.0
  %1165 = vmatpush2.xpose.msra.mxu0 0.0
  %1166 = vmatprep.subr.mxu0 0.0
  %1167 = vmatpush2.xpose.msra.mxu0 0.0
  %1168 = vmatprep.subr.mxu0 0.0
  %1169 = vmatpush2.xpose.msra.mxu0 0.0
  %1170 = vmatprep.subr.mxu0 0.0
  %1171 = vmatpush2.xpose.msra.mxu0 0.0
  %1172 = vmatprep.subr.mxu0 0.0
  %1173 = vmatpush2.xpose.msra.mxu0 0.0
  %1174 = vmatprep.subr.mxu0 0.0
  %1175 = vmatpush2.xpose.msra.mxu0 0.0
  %1176 = vmatprep.subr.mxu0 0.0
  %1177 = vmatpush2.xpose.msra.mxu0 0.0
  %1178 = vmatprep.subr.mxu0 0.0
  %1179 = vmatpush2.xpose.msra.mxu0 0.0
  %1180 = vmatprep.subr.mxu0 0.0
  %1181 = vmatpush2.xpose.msra.mxu0 0.0
  %1182 = vmatprep.subr.mxu0 0.0
  %1183 = vmatpush2.xpose.msra.mxu0 0.0
  %1184 = vmatprep.subr.mxu0 0.0
  %1185 = vmatpush2.xpose.msra.mxu0 0.0
  %1186 = vmatprep.subr.mxu0 0.0
  %1187 = vmatpush2.xpose.msra.mxu0 0.0
  %1188 = vmatprep.subr.mxu0 0.0
  %1189 = vmatpush2.xpose.msra.mxu0 0.0
  %1190 = vmatprep.subr.mxu0 0.0
  %1191 = vmatpush2.xpose.msra.mxu0 0.0
  %1192 = vmatprep.subr.mxu0 0.0
  %1193 = vmatpush2.xpose.msra.mxu0 0.0
  %1194 = vmatprep.subr.mxu0 0.0
  %1195 = vmatpush2.xpose.msra.mxu0 0.0
  %1196 = vmatprep.mubr.f32.mxu0 0.0
  %1197 = vmatmul.mubr.f32.gmra.mxu0 %v1116
  %v1198 = vpop.f32.mrf.mxu0
  %v1199 = vadd.f32 0.0, %v1198
  %v1200 = vpop.f32.mrf.mxu0
  %1201 = vmatprep.mubr.f32.mxu0 0.0
  %1202 = vmatmul.mubr.f32.gmra.mxu0 %v1118
  %v1203 = vpop.f32.mrf.mxu0
  %v1204 = vadd.f32 0.0, %v1203
  %v1205 = vpop.f32.mrf.mxu0
  %1206 = vmatprep.mubr.f32.mxu0 0.0
  %1207 = vmatmul.mubr.f32.gmra.mxu0 %v1120
  %v1208 = vpop.f32.mrf.mxu0
  %v1209 = vadd.f32 0.0, %v1208
  %v1210 = vpop.f32.mrf.mxu0
  %1211 = vmatprep.mubr.f32.mxu0 0.0
  %1212 = vmatmul.mubr.f32.gmra.mxu0 %v1122
  %v1213 = vpop.f32.mrf.mxu0
  %v1214 = vadd.f32 0.0, %v1213
  %v1215 = vpop.f32.mrf.mxu0
  %1216 = vdwg.mxu0
  %v1217 = vmul.f32 %v1199, 0.35355338
  %v1218 = vmul.f32 %v1204, 0.35355338
  %v1219 = vmul.f32 %v1209, 0.35355338
  %v1220 = vmul.f32 %v1214, 0.35355338
  %v1221 = vadd.f32 %v1217, %v157
  %v1222 = vadd.f32 %v1218, %v158
  %v1223 = vadd.f32 %v1219, %v159
  %v1224 = vadd.f32 %v1220, %v160
  %v1225 = vsel %vm81, %v1221, -inf
  %1226 = vmax.xlane.f32.xlu0 %v1225
  %v1227 = vpop.xlane.xlu0 %1226
  %v1228 = vsel %vm81, %v1222, -inf
  %1229 = vmax.xlane.f32.xlu0 %v1228
  %v1230 = vpop.xlane.xlu0 %1229
  %v1231 = vsel %vm81, %v1223, -inf
  %1232 = vmax.xlane.f32.xlu0 %v1231
  %v1233 = vpop.xlane.xlu0 %1232
  %v1234 = vsel %vm81, %v1224, -inf
  %1235 = vmax.xlane.f32.xlu0 %v1234
  %v1236 = vpop.xlane.xlu0 %1235
  %v1237 = vsub.f32 %v1221, %v1227
  %v1238 = vsub.f32 %v1222, %v1230
  %v1239 = vsub.f32 %v1223, %v1233
  %v1240 = vsub.f32 %v1224, %v1236
  %v1241 = vmul.f32 %v1237, 1.442695
  %v1242 = vpow.pop %v1241
  %v1243 = vmul.f32 %v1238, 1.442695
  %v1244 = vpow.pop %v1243
  %v1245 = vmul.f32 %v1239, 1.442695
  %v1246 = vpow.pop %v1245
  %v1247 = vmul.f32 %v1240, 1.442695
  %v1248 = vpow.pop %v1247
  %v1249 = vsel %vm81, %v1242, 0.0
  %1250 = vadd.xlane.f32.xlu0 %v1249
  %v1251 = vpop.xlane.xlu0 %1250
  %v1252 = vsel %vm81, %v1244, 0.0
  %1253 = vadd.xlane.f32.xlu0 %v1252
  %v1254 = vpop.xlane.xlu0 %1253
  %v1255 = vsel %vm81, %v1246, 0.0
  %1256 = vadd.xlane.f32.xlu0 %v1255
  %v1257 = vpop.xlane.xlu0 %1256
  %v1258 = vsel %vm81, %v1248, 0.0
  %1259 = vadd.xlane.f32.xlu0 %v1258
  %v1260 = vpop.xlane.xlu0 %1259
  %v1261 = vrcp.pop %v1251
  %v1262 = vmul.f32 %v1242, %v1261
  %v1263 = vrcp.pop %v1254
  %v1264 = vmul.f32 %v1244, %v1263
  %v1265 = vrcp.pop %v1257
  %v1266 = vmul.f32 %v1246, %v1265
  %v1267 = vrcp.pop %v1260
  %v1268 = vmul.f32 %v1248, %v1267
  %1269 = vrot.lane.b32.xlu0 %v251, 40
  %v1270 = vpop.permute.xlu0 %1269
  %1271 = vrot.lane.b32.xlu0 %v256, 40
  %v1272 = vpop.permute.xlu0 %1271
  %1273 = vrot.lane.b32.xlu0 %v261, 40
  %v1274 = vpop.permute.xlu0 %1273
  %1275 = vrot.lane.b32.xlu0 %v266, 40
  %v1276 = vpop.permute.xlu0 %1275
  %v1282 = vsel %vm81, %v1262, 0
  %v1285 = vsel %vm81, %v1264, 0
  %v1288 = vsel %vm81, %v1266, 0
  %v1291 = vsel %vm81, %v1268, 0
  %1293 = vmatprep.subr.mxu0 0.0
  %1294 = vmatpush1.msra.mxu0 0.0
  %1295 = vmatprep.subr.mxu0 0.0
  %1296 = vmatpush1.msra.mxu0 0.0
  %1297 = vmatprep.subr.mxu0 0.0
  %1298 = vmatpush1.msra.mxu0 0.0
  %1299 = vmatprep.subr.mxu0 0.0
  %1300 = vmatpush1.msra.mxu0 0.0
  %1301 = vmatprep.subr.mxu0 0.0
  %1302 = vmatpush1.msra.mxu0 0.0
  %1303 = vmatprep.subr.mxu0 0.0
  %1304 = vmatpush1.msra.mxu0 0.0
  %1305 = vmatprep.subr.mxu0 0.0
  %1306 = vmatpush1.msra.mxu0 0.0
  %1307 = vmatprep.subr.mxu0 0.0
  %1308 = vmatpush1.msra.mxu0 0.0
  %1309 = vmatprep.subr.mxu0 0.0
  %1310 = vmatpush1.msra.mxu0 0.0
  %1311 = vmatprep.subr.mxu0 0.0
  %1312 = vmatpush1.msra.mxu0 0.0
  %1313 = vmatprep.subr.mxu0 0.0
  %1314 = vmatpush1.msra.mxu0 0.0
  %1315 = vmatprep.subr.mxu0 0.0
  %1316 = vmatpush1.msra.mxu0 0.0
  %1317 = vmatprep.subr.mxu0 0.0
  %1318 = vmatpush1.msra.mxu0 %v1276
  %1319 = vmatprep.subr.mxu0 0.0
  %1320 = vmatpush1.msra.mxu0 %v1274
  %1321 = vmatprep.subr.mxu0 0.0
  %1322 = vmatpush1.msra.mxu0 %v1272
  %1323 = vmatprep.subr.mxu0 0.0
  %1324 = vmatpush1.msra.mxu0 %v1270
  %1325 = vmatprep.subr.mxu0 0.0
  %1326 = vmatpush2.msra.mxu0 0.0
  %1327 = vmatprep.subr.mxu0 0.0
  %1328 = vmatpush2.msra.mxu0 0.0
  %1329 = vmatprep.subr.mxu0 0.0
  %1330 = vmatpush2.msra.mxu0 0.0
  %1331 = vmatprep.subr.mxu0 0.0
  %1332 = vmatpush2.msra.mxu0 0.0
  %1333 = vmatprep.subr.mxu0 0.0
  %1334 = vmatpush2.msra.mxu0 0.0
  %1335 = vmatprep.subr.mxu0 0.0
  %1336 = vmatpush2.msra.mxu0 0.0
  %1337 = vmatprep.subr.mxu0 0.0
  %1338 = vmatpush2.msra.mxu0 0.0
  %1339 = vmatprep.subr.mxu0 0.0
  %1340 = vmatpush2.msra.mxu0 0.0
  %1341 = vmatprep.subr.mxu0 0.0
  %1342 = vmatpush2.msra.mxu0 0.0
  %1343 = vmatprep.subr.mxu0 0.0
  %1344 = vmatpush2.msra.mxu0 0.0
  %1345 = vmatprep.subr.mxu0 0.0
  %1346 = vmatpush2.msra.mxu0 0.0
  %1347 = vmatprep.subr.mxu0 0.0
  %1348 = vmatpush2.msra.mxu0 0.0
  %1349 = vmatprep.subr.mxu0 0.0
  %1350 = vmatpush2.msra.mxu0 0.0
  %1351 = vmatprep.subr.mxu0 0.0
  %1352 = vmatpush2.msra.mxu0 0.0
  %1353 = vmatprep.subr.mxu0 0.0
  %1354 = vmatpush2.msra.mxu0 0.0
  %1355 = vmatprep.subr.mxu0 0.0
  %1356 = vmatpush2.msra.mxu0 0.0
  %1357 = vmatprep.mubr.f32.mxu0 0.0
  %1358 = vmatmul.mubr.f32.gmra.mxu0 %v1282
  %v1359 = vpop.f32.mrf.mxu0
  %v1360 = vadd.f32 0.0, %v1359
  %v1361 = vpop.f32.mrf.mxu0
  %1362 = vmatprep.mubr.f32.mxu0 0.0
  %1363 = vmatmul.mubr.f32.gmra.mxu0 %v1285
  %v1364 = vpop.f32.mrf.mxu0
  %v1365 = vadd.f32 0.0, %v1364
  %v1366 = vpop.f32.mrf.mxu0
  %1367 = vmatprep.mubr.f32.mxu0 0.0
  %1368 = vmatmul.mubr.f32.gmra.mxu0 %v1288
  %v1369 = vpop.f32.mrf.mxu0
  %v1370 = vadd.f32 0.0, %v1369
  %v1371 = vpop.f32.mrf.mxu0
  %1372 = vmatprep.mubr.f32.mxu0 0.0
  %1373 = vmatmul.mubr.f32.gmra.mxu0 %v1291
  %v1374 = vpop.f32.mrf.mxu0
  %v1375 = vadd.f32 0.0, %v1374
  %v1376 = vpop.f32.mrf.mxu0
  %1377 = vdwg.mxu0
  %1382 = vrot.lane.b32.xlu0 %v804, 8
  %v1383 = vpop.permute.xlu0 %1382
  %1384 = vrot.lane.b32.xlu0 %v809, 8
  %v1385 = vpop.permute.xlu0 %1384
  %1386 = vrot.lane.b32.xlu0 %v814, 8
  %v1387 = vpop.permute.xlu0 %1386
  %1388 = vrot.lane.b32.xlu0 %v819, 8
  %v1389 = vpop.permute.xlu0 %1388
  %1398 = vrot.lane.b32.xlu0 %v1082, 16
  %v1399 = vpop.permute.xlu0 %1398
  %1400 = vrot.lane.b32.xlu0 %v1087, 16
  %v1401 = vpop.permute.xlu0 %1400
  %1402 = vrot.lane.b32.xlu0 %v1092, 16
  %v1403 = vpop.permute.xlu0 %1402
  %1404 = vrot.lane.b32.xlu0 %v1097, 16
  %v1405 = vpop.permute.xlu0 %1404
  %1414 = vrot.lane.b32.xlu0 %v1360, 24
  %v1415 = vpop.permute.xlu0 %1414
  %1416 = vrot.lane.b32.xlu0 %v1365, 24
  %v1417 = vpop.permute.xlu0 %1416
  %1418 = vrot.lane.b32.xlu0 %v1370, 24
  %v1419 = vpop.permute.xlu0 %1418
  %1420 = vrot.lane.b32.xlu0 %v1375, 24
  %v1421 = vpop.permute.xlu0 %1420
  %v1426 = vsel %vm281, %v526, %v1383
  %v1427 = vsel %vm281, %v531, %v1385
  %v1428 = vsel %vm281, %v536, %v1387
  %v1429 = vsel %vm281, %v541, %v1389
  %vm1430 = vcmask 130048
  %v1431 = vsel %vm1430, %v1426, %v1399
  %v1432 = vsel %vm1430, %v1427, %v1401
  %v1433 = vsel %vm1430, %v1428, %v1403
  %v1434 = vsel %vm1430, %v1429, %v1405
  %vm1435 = vcmask 195584
  %v1436 = vsel %vm1435, %v1431, %v1415
  %v1437 = vsel %vm1435, %v1432, %v1417
  %v1438 = vsel %vm1435, %v1433, %v1419
  %v1439 = vsel %vm1435, %v1434, %v1421
  %v1440 = vld [vmem:[%s5] sm:$0xff]
  %v1441 = vld [vmem:[%s5 + $0x8] sm:$0xff]
  %v1442 = vld [vmem:[%s5 + $0x10] sm:$0xff]
  %v1443 = vld [vmem:[%s5 + $0x18] sm:$0xff]
  %v1444 = vld [vmem:[%s6] sm:$0x1]
  %v1446 = vlaneseq
  %v1447 = vshrl.u32 %v1446, 7
  %v1448 = vsub.s32 0, %v1447
  %v1449 = vrot.slane %v1444, %v1448
  %v1452 = vsel %vm81, %v1436, 0
  %v1455 = vsel %vm81, %v1437, 0
  %v1458 = vsel %vm81, %v1438, 0
  %v1461 = vsel %vm81, %v1439, 0
  %1463 = vmatprep.subr.mxu0 0.0
  %1464 = vmatpush1.msra.mxu0 0.0
  %1465 = vmatprep.subr.mxu0 0.0
  %1466 = vmatpush1.msra.mxu0 0.0
  %1467 = vmatprep.subr.mxu0 0.0
  %1468 = vmatpush1.msra.mxu0 0.0
  %1469 = vmatprep.subr.mxu0 0.0
  %1470 = vmatpush1.msra.mxu0 0.0
  %1471 = vmatprep.subr.mxu0 0.0
  %1472 = vmatpush1.msra.mxu0 0.0
  %1473 = vmatprep.subr.mxu0 0.0
  %1474 = vmatpush1.msra.mxu0 0.0
  %1475 = vmatprep.subr.mxu0 0.0
  %1476 = vmatpush1.msra.mxu0 0.0
  %1477 = vmatprep.subr.mxu0 0.0
  %1478 = vmatpush1.msra.mxu0 0.0
  %1479 = vmatprep.subr.mxu0 0.0
  %1480 = vmatpush1.msra.mxu0 0.0
  %1481 = vmatprep.subr.mxu0 0.0
  %1482 = vmatpush1.msra.mxu0 0.0
  %1483 = vmatprep.subr.mxu0 0.0
  %1484 = vmatpush1.msra.mxu0 0.0
  %1485 = vmatprep.subr.mxu0 0.0
  %1486 = vmatpush1.msra.mxu0 0.0
  %1487 = vmatprep.subr.mxu0 0.0
  %1488 = vmatpush1.msra.mxu0 %v1443
  %1489 = vmatprep.subr.mxu0 0.0
  %1490 = vmatpush1.msra.mxu0 %v1442
  %1491 = vmatprep.subr.mxu0 0.0
  %1492 = vmatpush1.msra.mxu0 %v1441
  %1493 = vmatprep.subr.mxu0 0.0
  %1494 = vmatpush1.msra.mxu0 %v1440
  %1495 = vmatprep.subr.mxu0 0.0
  %1496 = vmatpush2.msra.mxu0 0.0
  %1497 = vmatprep.subr.mxu0 0.0
  %1498 = vmatpush2.msra.mxu0 0.0
  %1499 = vmatprep.subr.mxu0 0.0
  %1500 = vmatpush2.msra.mxu0 0.0
  %1501 = vmatprep.subr.mxu0 0.0
  %1502 = vmatpush2.msra.mxu0 0.0
  %1503 = vmatprep.subr.mxu0 0.0
  %1504 = vmatpush2.msra.mxu0 0.0
  %1505 = vmatprep.subr.mxu0 0.0
  %1506 = vmatpush2.msra.mxu0 0.0
  %1507 = vmatprep.subr.mxu0 0.0
  %1508 = vmatpush2.msra.mxu0 0.0
  %1509 = vmatprep.subr.mxu0 0.0
  %1510 = vmatpush2.msra.mxu0 0.0
  %1511 = vmatprep.subr.mxu0 0.0
  %1512 = vmatpush2.msra.mxu0 0.0
  %1513 = vmatprep.subr.mxu0 0.0
  %1514 = vmatpush2.msra.mxu0 0.0
  %1515 = vmatprep.subr.mxu0 0.0
  %1516 = vmatpush2.msra.mxu0 0.0
  %1517 = vmatprep.subr.mxu0 0.0
  %1518 = vmatpush2.msra.mxu0 0.0
  %1519 = vmatprep.subr.mxu0 0.0
  %1520 = vmatpush2.msra.mxu0 0.0
  %1521 = vmatprep.subr.mxu0 0.0
  %1522 = vmatpush2.msra.mxu0 0.0
  %1523 = vmatprep.subr.mxu0 0.0
  %1524 = vmatpush2.msra.mxu0 0.0
  %1525 = vmatprep.subr.mxu0 0.0
  %1526 = vmatpush2.msra.mxu0 0.0
  %1527 = vmatprep.mubr.f32.mxu0 0.0
  %1528 = vmatmul.mubr.f32.gmra.mxu0 %v1452
  %v1529 = vpop.f32.mrf.mxu0
  %v1530 = vadd.f32 %v1449, %v1529
  %v1531 = vpop.f32.mrf.mxu0
  %1532 = vmatprep.mubr.f32.mxu0 0.0
  %1533 = vmatmul.mubr.f32.gmra.mxu0 %v1455
  %v1534 = vpop.f32.mrf.mxu0
  %v1535 = vadd.f32 %v1449, %v1534
  %v1536 = vpop.f32.mrf.mxu0
  %1537 = vmatprep.mubr.f32.mxu0 0.0
  %1538 = vmatmul.mubr.f32.gmra.mxu0 %v1458
  %v1539 = vpop.f32.mrf.mxu0
  %v1540 = vadd.f32 %v1449, %v1539
  %v1541 = vpop.f32.mrf.mxu0
  %1542 = vmatprep.mubr.f32.mxu0 0.0
  %1543 = vmatmul.mubr.f32.gmra.mxu0 %v1461
  %v1544 = vpop.f32.mrf.mxu0
  %v1545 = vadd.f32 %v1449, %v1544
  %v1546 = vpop.f32.mrf.mxu0
  %1547 = vdwg.mxu0
  %v1548 = vld [vmem:[%s11] sm:$0xff]
  %v1549 = vld [vmem:[%s11 + $0x8] sm:$0xff]
  %v1550 = vld [vmem:[%s11 + $0x10] sm:$0xff]
  %v1551 = vld [vmem:[%s11 + $0x18] sm:$0xff]
  %v1552 = vld [vmem:[%s12] sm:$0x1]
  %v1554 = vlaneseq
  %v1555 = vshrl.u32 %v1554, 7
  %v1556 = vsub.s32 0, %v1555
  %v1557 = vrot.slane %v1552, %v1556
  %v1560 = vsel %vm81, %v1530, 0
  %v1563 = vsel %vm81, %v1535, 0
  %v1566 = vsel %vm81, %v1540, 0
  %v1569 = vsel %vm81, %v1545, 0
  %1571 = vmatprep.subr.mxu0 0.0
  %1572 = vmatpush1.msra.mxu0 0.0
  %1573 = vmatprep.subr.mxu0 0.0
  %1574 = vmatpush1.msra.mxu0 0.0
  %1575 = vmatprep.subr.mxu0 0.0
  %1576 = vmatpush1.msra.mxu0 0.0
  %1577 = vmatprep.subr.mxu0 0.0
  %1578 = vmatpush1.msra.mxu0 0.0
  %1579 = vmatprep.subr.mxu0 0.0
  %1580 = vmatpush1.msra.mxu0 0.0
  %1581 = vmatprep.subr.mxu0 0.0
  %1582 = vmatpush1.msra.mxu0 0.0
  %1583 = vmatprep.subr.mxu0 0.0
  %1584 = vmatpush1.msra.mxu0 0.0
  %1585 = vmatprep.subr.mxu0 0.0
  %1586 = vmatpush1.msra.mxu0 0.0
  %1587 = vmatprep.subr.mxu0 0.0
  %1588 = vmatpush1.msra.mxu0 0.0
  %1589 = vmatprep.subr.mxu0 0.0
  %1590 = vmatpush1.msra.mxu0 0.0
  %1591 = vmatprep.subr.mxu0 0.0
  %1592 = vmatpush1.msra.mxu0 0.0
  %1593 = vmatprep.subr.mxu0 0.0
  %1594 = vmatpush1.msra.mxu0 0.0
  %1595 = vmatprep.subr.mxu0 0.0
  %1596 = vmatpush1.msra.mxu0 %v1551
  %1597 = vmatprep.subr.mxu0 0.0
  %1598 = vmatpush1.msra.mxu0 %v1550
  %1599 = vmatprep.subr.mxu0 0.0
  %1600 = vmatpush1.msra.mxu0 %v1549
  %1601 = vmatprep.subr.mxu0 0.0
  %1602 = vmatpush1.msra.mxu0 %v1548
  %1603 = vmatprep.subr.mxu0 0.0
  %1604 = vmatpush2.msra.mxu0 0.0
  %1605 = vmatprep.subr.mxu0 0.0
  %1606 = vmatpush2.msra.mxu0 0.0
  %1607 = vmatprep.subr.mxu0 0.0
  %1608 = vmatpush2.msra.mxu0 0.0
  %1609 = vmatprep.subr.mxu0 0.0
  %1610 = vmatpush2.msra.mxu0 0.0
  %1611 = vmatprep.subr.mxu0 0.0
  %1612 = vmatpush2.msra.mxu0 0.0
  %1613 = vmatprep.subr.mxu0 0.0
  %1614 = vmatpush2.msra.mxu0 0.0
  %1615 = vmatprep.subr.mxu0 0.0
  %1616 = vmatpush2.msra.mxu0 0.0
  %1617 = vmatprep.subr.mxu0 0.0
  %1618 = vmatpush2.msra.mxu0 0.0
  %1619 = vmatprep.subr.mxu0 0.0
  %1620 = vmatpush2.msra.mxu0 0.0
  %1621 = vmatprep.subr.mxu0 0.0
  %1622 = vmatpush2.msra.mxu0 0.0
  %1623 = vmatprep.subr.mxu0 0.0
  %1624 = vmatpush2.msra.mxu0 0.0
  %1625 = vmatprep.subr.mxu0 0.0
  %1626 = vmatpush2.msra.mxu0 0.0
  %1627 = vmatprep.subr.mxu0 0.0
  %1628 = vmatpush2.msra.mxu0 0.0
  %1629 = vmatprep.subr.mxu0 0.0
  %1630 = vmatpush2.msra.mxu0 0.0
  %1631 = vmatprep.subr.mxu0 0.0
  %1632 = vmatpush2.msra.mxu0 0.0
  %1633 = vmatprep.subr.mxu0 0.0
  %1634 = vmatpush2.msra.mxu0 0.0
  %1635 = vmatprep.mubr.f32.mxu0 0.0
  %1636 = vmatmul.mubr.f32.gmra.mxu0 %v1560
  %v1637 = vpop.f32.mrf.mxu0
  %v1638 = vadd.f32 %v1557, %v1637
  %v1639 = vpop.f32.mrf.mxu0
  %1640 = vmatprep.mubr.f32.mxu0 0.0
  %1641 = vmatmul.mubr.f32.gmra.mxu0 %v1563
  %v1642 = vpop.f32.mrf.mxu0
  %v1643 = vadd.f32 %v1557, %v1642
  %v1644 = vpop.f32.mrf.mxu0
  %1645 = vmatprep.mubr.f32.mxu0 0.0
  %1646 = vmatmul.mubr.f32.gmra.mxu0 %v1566
  %v1647 = vpop.f32.mrf.mxu0
  %v1648 = vadd.f32 %v1557, %v1647
  %v1649 = vpop.f32.mrf.mxu0
  %1650 = vmatprep.mubr.f32.mxu0 0.0
  %1651 = vmatmul.mubr.f32.gmra.mxu0 %v1569
  %v1652 = vpop.f32.mrf.mxu0
  %v1653 = vadd.f32 %v1557, %v1652
  %v1654 = vpop.f32.mrf.mxu0
  %1655 = vdwg.mxu0
  %v1656 = vmul.f32 %v1638, 0.5
  %v1657 = vmul.f32 %v1643, 0.5
  %v1658 = vmul.f32 %v1648, 0.5
  %v1659 = vmul.f32 %v1653, 0.5
  %v1660 = vmul.f32 %v1638, 0.70710677
  %v1661 = vmul.f32 %v1643, 0.70710677
  %v1662 = vmul.f32 %v1648, 0.70710677
  %v1663 = vmul.f32 %v1653, 0.70710677
  %v1664 = verf.f32.pop %v1660
  %v1665 = verf.f32.pop %v1661
  %v1666 = verf.f32.pop %v1662
  %v1667 = verf.f32.pop %v1663
  %v1668 = vadd.f32 %v1664, 1.0
  %v1669 = vadd.f32 %v1665, 1.0
  %v1670 = vadd.f32 %v1666, 1.0
  %v1671 = vadd.f32 %v1667, 1.0
  %v1672 = vmul.f32 %v1656, %v1668
  %v1673 = vmul.f32 %v1657, %v1669
  %v1674 = vmul.f32 %v1658, %v1670
  %v1675 = vmul.f32 %v1659, %v1671
  %v1676 = vld [vmem:[%s13] sm:$0xff]
  %v1677 = vld [vmem:[%s14] sm:$0x1]
  %v1679 = vlaneseq
  %v1680 = vshrl.u32 %v1679, 7
  %v1681 = vsub.s32 0, %v1680
  %v1682 = vrot.slane %v1677, %v1681
  %v1685 = vsel %vm281, %v1672, 0
  %v1688 = vsel %vm281, %v1673, 0
  %v1691 = vsel %vm281, %v1674, 0
  %v1694 = vsel %vm281, %v1675, 0
  %1696 = vmatprep.subr.mxu0 0.0
  %1697 = vmatpush1.msra.mxu0 0.0
  %1698 = vmatprep.subr.mxu0 0.0
  %1699 = vmatpush1.msra.mxu0 0.0
  %1700 = vmatprep.subr.mxu0 0.0
  %1701 = vmatpush1.msra.mxu0 0.0
  %1702 = vmatprep.subr.mxu0 0.0
  %1703 = vmatpush1.msra.mxu0 0.0
  %1704 = vmatprep.subr.mxu0 0.0
  %1705 = vmatpush1.msra.mxu0 0.0
  %1706 = vmatprep.subr.mxu0 0.0
  %1707 = vmatpush1.msra.mxu0 0.0
  %1708 = vmatprep.subr.mxu0 0.0
  %1709 = vmatpush1.msra.mxu0 0.0
  %1710 = vmatprep.subr.mxu0 0.0
  %1711 = vmatpush1.msra.mxu0 0.0
  %1712 = vmatprep.subr.mxu0 0.0
  %1713 = vmatpush1.msra.mxu0 0.0
  %1714 = vmatprep.subr.mxu0 0.0
  %1715 = vmatpush1.msra.mxu0 0.0
  %1716 = vmatprep.subr.mxu0 0.0
  %1717 = vmatpush1.msra.mxu0 0.0
  %1718 = vmatprep.subr.mxu0 0.0
  %1719 = vmatpush1.msra.mxu0 0.0
  %1720 = vmatprep.subr.mxu0 0.0
  %1721 = vmatpush1.msra.mxu0 0.0
  %1722 = vmatprep.subr.mxu0 0.0
  %1723 = vmatpush1.msra.mxu0 0.0
  %1724 = vmatprep.subr.mxu0 0.0
  %1725 = vmatpush1.msra.mxu0 0.0
  %1726 = vmatprep.subr.mxu0 0.0
  %1727 = vmatpush1.msra.mxu0 %v1676
  %1728 = vmatprep.subr.mxu0 0.0
  %1729 = vmatpush2.msra.mxu0 0.0
  %1730 = vmatprep.subr.mxu0 0.0
  %1731 = vmatpush2.msra.mxu0 0.0
  %1732 = vmatprep.subr.mxu0 0.0
  %1733 = vmatpush2.msra.mxu0 0.0
  %1734 = vmatprep.subr.mxu0 0.0
  %1735 = vmatpush2.msra.mxu0 0.0
  %1736 = vmatprep.subr.mxu0 0.0
  %1737 = vmatpush2.msra.mxu0 0.0
  %1738 = vmatprep.subr.mxu0 0.0
  %1739 = vmatpush2.msra.mxu0 0.0
  %1740 = vmatprep.subr.mxu0 0.0
  %1741 = vmatpush2.msra.mxu0 0.0
  %1742 = vmatprep.subr.mxu0 0.0
  %1743 = vmatpush2.msra.mxu0 0.0
  %1744 = vmatprep.subr.mxu0 0.0
  %1745 = vmatpush2.msra.mxu0 0.0
  %1746 = vmatprep.subr.mxu0 0.0
  %1747 = vmatpush2.msra.mxu0 0.0
  %1748 = vmatprep.subr.mxu0 0.0
  %1749 = vmatpush2.msra.mxu0 0.0
  %1750 = vmatprep.subr.mxu0 0.0
  %1751 = vmatpush2.msra.mxu0 0.0
  %1752 = vmatprep.subr.mxu0 0.0
  %1753 = vmatpush2.msra.mxu0 0.0
  %1754 = vmatprep.subr.mxu0 0.0
  %1755 = vmatpush2.msra.mxu0 0.0
  %1756 = vmatprep.subr.mxu0 0.0
  %1757 = vmatpush2.msra.mxu0 0.0
  %1758 = vmatprep.subr.mxu0 0.0
  %1759 = vmatpush2.msra.mxu0 0.0
  %1760 = vmatprep.mubr.f32.mxu0 0.0
  %1761 = vmatmul.mubr.f32.gmra.mxu0 %v1685
  %v1762 = vpop.f32.mrf.mxu0
  %v1763 = vadd.f32 %v1682, %v1762
  %v1764 = vpop.f32.mrf.mxu0
  %1765 = vmatprep.mubr.f32.mxu0 0.0
  %1766 = vmatmul.mubr.f32.gmra.mxu0 %v1688
  %v1767 = vpop.f32.mrf.mxu0
  %v1768 = vadd.f32 %v1682, %v1767
  %v1769 = vpop.f32.mrf.mxu0
  %1770 = vmatprep.mubr.f32.mxu0 0.0
  %1771 = vmatmul.mubr.f32.gmra.mxu0 %v1691
  %v1772 = vpop.f32.mrf.mxu0
  %v1773 = vadd.f32 %v1682, %v1772
  %v1774 = vpop.f32.mrf.mxu0
  %1775 = vmatprep.mubr.f32.mxu0 0.0
  %1776 = vmatmul.mubr.f32.gmra.mxu0 %v1694
  %v1777 = vpop.f32.mrf.mxu0
  %v1778 = vadd.f32 %v1682, %v1777
  %v1779 = vpop.f32.mrf.mxu0
  %1780 = vdwg.mxu0
  %v1781 = vadd.f32 %v74, %v1763
  %v1782 = vadd.f32 %v76, %v1768
  %v1783 = vadd.f32 %v78, %v1773
  %v1784 = vadd.f32 %v80, %v1778
  %v1785 = vsel %vm81, %v1781, 0.0
  %1786 = vadd.xlane.f32.xlu0 %v1785
  %v1787 = vpop.xlane.xlu0 %1786
  %v1788 = vsel %vm81, %v1782, 0.0
  %1789 = vadd.xlane.f32.xlu0 %v1788
  %v1790 = vpop.xlane.xlu0 %1789
  %v1791 = vsel %vm81, %v1783, 0.0
  %1792 = vadd.xlane.f32.xlu0 %v1791
  %v1793 = vpop.xlane.xlu0 %1792
  %v1794 = vsel %vm81, %v1784, 0.0
  %1795 = vadd.xlane.f32.xlu0 %v1794
  %v1796 = vpop.xlane.xlu0 %1795
  %v1797 = vmul.f32 %v1787, %v94
  %v1798 = vmul.f32 %v1790, %v94
  %v1799 = vmul.f32 %v1793, %v94
  %v1800 = vmul.f32 %v1796, %v94
  %v1801 = vsub.f32 %v1781, %v1797
  %v1802 = vsub.f32 %v1782, %v1798
  %v1803 = vsub.f32 %v1783, %v1799
  %v1804 = vsub.f32 %v1784, %v1800
  %v1805 = vmul.f32 %v1801, %v1801
  %v1806 = vmul.f32 %v1802, %v1802
  %v1807 = vmul.f32 %v1803, %v1803
  %v1808 = vmul.f32 %v1804, %v1804
  %v1809 = vsel %vm81, %v1805, 0.0
  %1810 = vadd.xlane.f32.xlu0 %v1809
  %v1811 = vpop.xlane.xlu0 %1810
  %v1812 = vsel %vm81, %v1806, 0.0
  %1813 = vadd.xlane.f32.xlu0 %v1812
  %v1814 = vpop.xlane.xlu0 %1813
  %v1815 = vsel %vm81, %v1807, 0.0
  %1816 = vadd.xlane.f32.xlu0 %v1815
  %v1817 = vpop.xlane.xlu0 %1816
  %v1818 = vsel %vm81, %v1808, 0.0
  %1819 = vadd.xlane.f32.xlu0 %v1818
  %v1820 = vpop.xlane.xlu0 %1819
  %v1821 = vmul.f32 %v1811, %v94
  %v1822 = vmul.f32 %v1814, %v94
  %v1823 = vmul.f32 %v1817, %v94
  %v1824 = vmul.f32 %v1820, %v94
  %v1825 = vadd.f32 %v1821, 1e-05
  %v1826 = vadd.f32 %v1822, 1e-05
  %v1827 = vadd.f32 %v1823, 1e-05
  %v1828 = vadd.f32 %v1824, 1e-05
  %v1829 = vrsqrt.pop %v1825
  %v1830 = vrsqrt.pop %v1826
  %v1831 = vrsqrt.pop %v1827
  %v1832 = vrsqrt.pop %v1828
  %v1833 = vmul.f32 %v1801, %v1829
  %v1834 = vmul.f32 %v1802, %v1830
  %v1835 = vmul.f32 %v1803, %v1831
  %v1836 = vmul.f32 %v1804, %v1832
  %v1837 = vmul.f32 %v1833, %v140
  %v1838 = vmul.f32 %v1834, %v140
  %v1839 = vmul.f32 %v1835, %v140
  %v1840 = vmul.f32 %v1836, %v140
  %v1841 = vadd.f32 %v1837, %v151
  %v1842 = vadd.f32 %v1838, %v151
  %v1843 = vadd.f32 %v1839, %v151
  %v1844 = vadd.f32 %v1840, %v151
  %v1845 = vld [vmem:[%s2] sm:$0xff]
  %v1846 = vld [vmem:[%s2 + $0x8] sm:$0xff]
  %v1847 = vld [vmem:[%s2 + $0x10] sm:$0xff]
  %v1848 = vld [vmem:[%s2 + $0x18] sm:$0xff]
  %v1850 = vsel %vm81, %v1841, 0
  %v1853 = vsel %vm81, %v1842, 0
  %v1856 = vsel %vm81, %v1843, 0
  %v1859 = vsel %vm81, %v1844, 0
  %1861 = vmatprep.subr.mxu0 0.0
  %1862 = vmatpush1.msra.mxu0 0.0
  %1863 = vmatprep.subr.mxu0 0.0
  %1864 = vmatpush1.msra.mxu0 0.0
  %1865 = vmatprep.subr.mxu0 0.0
  %1866 = vmatpush1.msra.mxu0 0.0
  %1867 = vmatprep.subr.mxu0 0.0
  %1868 = vmatpush1.msra.mxu0 0.0
  %1869 = vmatprep.subr.mxu0 0.0
  %1870 = vmatpush1.msra.mxu0 0.0
  %1871 = vmatprep.subr.mxu0 0.0
  %1872 = vmatpush1.msra.mxu0 0.0
  %1873 = vmatprep.subr.mxu0 0.0
  %1874 = vmatpush1.msra.mxu0 0.0
  %1875 = vmatprep.subr.mxu0 0.0
  %1876 = vmatpush1.msra.mxu0 0.0
  %1877 = vmatprep.subr.mxu0 0.0
  %1878 = vmatpush1.msra.mxu0 0.0
  %1879 = vmatprep.subr.mxu0 0.0
  %1880 = vmatpush1.msra.mxu0 0.0
  %1881 = vmatprep.subr.mxu0 0.0
  %1882 = vmatpush1.msra.mxu0 0.0
  %1883 = vmatprep.subr.mxu0 0.0
  %1884 = vmatpush1.msra.mxu0 0.0
  %1885 = vmatprep.subr.mxu0 0.0
  %1886 = vmatpush1.msra.mxu0 %v164
  %1887 = vmatprep.subr.mxu0 0.0
  %1888 = vmatpush1.msra.mxu0 %v163
  %1889 = vmatprep.subr.mxu0 0.0
  %1890 = vmatpush1.msra.mxu0 %v162
  %1891 = vmatprep.subr.mxu0 0.0
  %1892 = vmatpush1.msra.mxu0 %v161
  %1893 = vmatprep.subr.mxu0 0.0
  %1894 = vmatpush2.msra.mxu0 0.0
  %1895 = vmatprep.subr.mxu0 0.0
  %1896 = vmatpush2.msra.mxu0 0.0
  %1897 = vmatprep.subr.mxu0 0.0
  %1898 = vmatpush2.msra.mxu0 0.0
  %1899 = vmatprep.subr.mxu0 0.0
  %1900 = vmatpush2.msra.mxu0 0.0
  %1901 = vmatprep.subr.mxu0 0.0
  %1902 = vmatpush2.msra.mxu0 0.0
  %1903 = vmatprep.subr.mxu0 0.0
  %1904 = vmatpush2.msra.mxu0 0.0
  %1905 = vmatprep.subr.mxu0 0.0
  %1906 = vmatpush2.msra.mxu0 0.0
  %1907 = vmatprep.subr.mxu0 0.0
  %1908 = vmatpush2.msra.mxu0 0.0
  %1909 = vmatprep.subr.mxu0 0.0
  %1910 = vmatpush2.msra.mxu0 0.0
  %1911 = vmatprep.subr.mxu0 0.0
  %1912 = vmatpush2.msra.mxu0 0.0
  %1913 = vmatprep.subr.mxu0 0.0
  %1914 = vmatpush2.msra.mxu0 0.0
  %1915 = vmatprep.subr.mxu0 0.0
  %1916 = vmatpush2.msra.mxu0 0.0
  %1917 = vmatprep.subr.mxu0 0.0
  %1918 = vmatpush2.msra.mxu0 0.0
  %1919 = vmatprep.subr.mxu0 0.0
  %1920 = vmatpush2.msra.mxu0 0.0
  %1921 = vmatprep.subr.mxu0 0.0
  %1922 = vmatpush2.msra.mxu0 0.0
  %1923 = vmatprep.subr.mxu0 0.0
  %1924 = vmatpush2.msra.mxu0 0.0
  %1925 = vmatprep.mubr.f32.mxu0 0.0
  %1926 = vmatmul.mubr.f32.gmra.mxu0 %v1850
  %v1927 = vpop.f32.mrf.mxu0
  %v1928 = vadd.f32 %v170, %v1927
  %v1929 = vpop.f32.mrf.mxu0
  %1930 = vmatprep.mubr.f32.mxu0 0.0
  %1931 = vmatmul.mubr.f32.gmra.mxu0 %v1853
  %v1932 = vpop.f32.mrf.mxu0
  %v1933 = vadd.f32 %v170, %v1932
  %v1934 = vpop.f32.mrf.mxu0
  %1935 = vmatprep.mubr.f32.mxu0 0.0
  %1936 = vmatmul.mubr.f32.gmra.mxu0 %v1856
  %v1937 = vpop.f32.mrf.mxu0
  %v1938 = vadd.f32 %v170, %v1937
  %v1939 = vpop.f32.mrf.mxu0
  %1940 = vmatprep.mubr.f32.mxu0 0.0
  %1941 = vmatmul.mubr.f32.gmra.mxu0 %v1859
  %v1942 = vpop.f32.mrf.mxu0
  %v1943 = vadd.f32 %v170, %v1942
  %v1944 = vpop.f32.mrf.mxu0
  %1945 = vdwg.mxu0
  %1950 = vrot.lane.b32.xlu0 %v1928, 96
  %v1951 = vpop.permute.xlu0 %1950
  %1952 = vrot.lane.b32.xlu0 %v1933, 96
  %v1953 = vpop.permute.xlu0 %1952
  %1954 = vrot.lane.b32.xlu0 %v1938, 96
  %v1955 = vpop.permute.xlu0 %1954
  %1956 = vrot.lane.b32.xlu0 %v1943, 96
  %v1957 = vpop.permute.xlu0 %1956
  %v1958 = vsel %vm281, %v1928, 0
  %v1960 = vsel %vm281, %v1933, 0
  %v1962 = vsel %vm281, %v1938, 0
  %v1964 = vsel %vm281, %v1943, 0
  %v1966 = vsel %vm281, %v1951, 0
  %v1968 = vsel %vm281, %v1953, 0
  %v1970 = vsel %vm281, %v1955, 0
  %v1972 = vsel %vm281, %v1957, 0
  %1974 = vmatprep.subr.mxu0 0.0
  %1975 = vmatpush1.xpose.msra.mxu0 0.0
  %1976 = vmatprep.subr.mxu0 0.0
  %1977 = vmatpush1.xpose.msra.mxu0 0.0
  %1978 = vmatprep.subr.mxu0 0.0
  %1979 = vmatpush1.xpose.msra.mxu0 0.0
  %1980 = vmatprep.subr.mxu0 0.0
  %1981 = vmatpush1.xpose.msra.mxu0 0.0
  %1982 = vmatprep.subr.mxu0 0.0
  %1983 = vmatpush1.xpose.msra.mxu0 0.0
  %1984 = vmatprep.subr.mxu0 0.0
  %1985 = vmatpush1.xpose.msra.mxu0 0.0
  %1986 = vmatprep.subr.mxu0 0.0
  %1987 = vmatpush1.xpose.msra.mxu0 0.0
  %1988 = vmatprep.subr.mxu0 0.0
  %1989 = vmatpush1.xpose.msra.mxu0 0.0
  %1990 = vmatprep.subr.mxu0 0.0
  %1991 = vmatpush1.xpose.msra.mxu0 0.0
  %1992 = vmatprep.subr.mxu0 0.0
  %1993 = vmatpush1.xpose.msra.mxu0 0.0
  %1994 = vmatprep.subr.mxu0 0.0
  %1995 = vmatpush1.xpose.msra.mxu0 0.0
  %1996 = vmatprep.subr.mxu0 0.0
  %1997 = vmatpush1.xpose.msra.mxu0 0.0
  %1998 = vmatprep.subr.mxu0 0.0
  %1999 = vmatpush1.xpose.msra.mxu0 %v1972
  %2000 = vmatprep.subr.mxu0 0.0
  %2001 = vmatpush1.xpose.msra.mxu0 %v1970
  %2002 = vmatprep.subr.mxu0 0.0
  %2003 = vmatpush1.xpose.msra.mxu0 %v1968
  %2004 = vmatprep.subr.mxu0 0.0
  %2005 = vmatpush1.xpose.msra.mxu0 %v1966
  %2006 = vmatprep.subr.mxu0 0.0
  %2007 = vmatpush2.xpose.msra.mxu0 0.0
  %2008 = vmatprep.subr.mxu0 0.0
  %2009 = vmatpush2.xpose.msra.mxu0 0.0
  %2010 = vmatprep.subr.mxu0 0.0
  %2011 = vmatpush2.xpose.msra.mxu0 0.0
  %2012 = vmatprep.subr.mxu0 0.0
  %2013 = vmatpush2.xpose.msra.mxu0 0.0
  %2014 = vmatprep.subr.mxu0 0.0
  %2015 = vmatpush2.xpose.msra.mxu0 0.0
  %2016 = vmatprep.subr.mxu0 0.0
  %2017 = vmatpush2.xpose.msra.mxu0 0.0
  %2018 = vmatprep.subr.mxu0 0.0
  %2019 = vmatpush2.xpose.msra.mxu0 0.0
  %2020 = vmatprep.subr.mxu0 0.0
  %2021 = vmatpush2.xpose.msra.mxu0 0.0
  %2022 = vmatprep.subr.mxu0 0.0
  %2023 = vmatpush2.xpose.msra.mxu0 0.0
  %2024 = vmatprep.subr.mxu0 0.0
  %2025 = vmatpush2.xpose.msra.mxu0 0.0
  %2026 = vmatprep.subr.mxu0 0.0
  %2027 = vmatpush2.xpose.msra.mxu0 0.0
  %2028 = vmatprep.subr.mxu0 0.0
  %2029 = vmatpush2.xpose.msra.mxu0 0.0
  %2030 = vmatprep.subr.mxu0 0.0
  %2031 = vmatpush2.xpose.msra.mxu0 0.0
  %2032 = vmatprep.subr.mxu0 0.0
  %2033 = vmatpush2.xpose.msra.mxu0 0.0
  %2034 = vmatprep.subr.mxu0 0.0
  %2035 = vmatpush2.xpose.msra.mxu0 0.0
  %2036 = vmatprep.subr.mxu0 0.0
  %2037 = vmatpush2.xpose.msra.mxu0 0.0
  %2038 = vmatprep.mubr.f32.mxu0 0.0
  %2039 = vmatmul.mubr.f32.gmra.mxu0 %v1958
  %v2040 = vpop.f32.mrf.mxu0
  %v2041 = vadd.f32 0.0, %v2040
  %v2042 = vpop.f32.mrf.mxu0
  %2043 = vmatprep.mubr.f32.mxu0 0.0
  %2044 = vmatmul.mubr.f32.gmra.mxu0 %v1960
  %v2045 = vpop.f32.mrf.mxu0
  %v2046 = vadd.f32 0.0, %v2045
  %v2047 = vpop.f32.mrf.mxu0
  %2048 = vmatprep.mubr.f32.mxu0 0.0
  %2049 = vmatmul.mubr.f32.gmra.mxu0 %v1962
  %v2050 = vpop.f32.mrf.mxu0
  %v2051 = vadd.f32 0.0, %v2050
  %v2052 = vpop.f32.mrf.mxu0
  %2053 = vmatprep.mubr.f32.mxu0 0.0
  %2054 = vmatmul.mubr.f32.gmra.mxu0 %v1964
  %v2055 = vpop.f32.mrf.mxu0
  %v2056 = vadd.f32 0.0, %v2055
  %v2057 = vpop.f32.mrf.mxu0
  %2058 = vdwg.mxu0
  %v2059 = vmul.f32 %v2041, 0.35355338
  %v2060 = vmul.f32 %v2046, 0.35355338
  %v2061 = vmul.f32 %v2051, 0.35355338
  %v2062 = vmul.f32 %v2056, 0.35355338
  %v2063 = vadd.f32 %v2059, %v1845
  %v2064 = vadd.f32 %v2060, %v1846
  %v2065 = vadd.f32 %v2061, %v1847
  %v2066 = vadd.f32 %v2062, %v1848
  %v2067 = vsel %vm81, %v2063, -inf
  %2068 = vmax.xlane.f32.xlu0 %v2067
  %v2069 = vpop.xlane.xlu0 %2068
  %v2070 = vsel %vm81, %v2064, -inf
  %2071 = vmax.xlane.f32.xlu0 %v2070
  %v2072 = vpop.xlane.xlu0 %2071
  %v2073 = vsel %vm81, %v2065, -inf
  %2074 = vmax.xlane.f32.xlu0 %v2073
  %v2075 = vpop.xlane.xlu0 %2074
  %v2076 = vsel %vm81, %v2066, -inf
  %2077 = vmax.xlane.f32.xlu0 %v2076
  %v2078 = vpop.xlane.xlu0 %2077
  %v2079 = vsub.f32 %v2063, %v2069
  %v2080 = vsub.f32 %v2064, %v2072
  %v2081 = vsub.f32 %v2065, %v2075
  %v2082 = vsub.f32 %v2066, %v2078
  %v2083 = vmul.f32 %v2079, 1.442695
  %v2084 = vpow.pop %v2083
  %v2085 = vmul.f32 %v2080, 1.442695
  %v2086 = vpow.pop %v2085
  %v2087 = vmul.f32 %v2081, 1.442695
  %v2088 = vpow.pop %v2087
  %v2089 = vmul.f32 %v2082, 1.442695
  %v2090 = vpow.pop %v2089
  %v2091 = vsel %vm81, %v2084, 0.0
  %2092 = vadd.xlane.f32.xlu0 %v2091
  %v2093 = vpop.xlane.xlu0 %2092
  %v2094 = vsel %vm81, %v2086, 0.0
  %2095 = vadd.xlane.f32.xlu0 %v2094
  %v2096 = vpop.xlane.xlu0 %2095
  %v2097 = vsel %vm81, %v2088, 0.0
  %2098 = vadd.xlane.f32.xlu0 %v2097
  %v2099 = vpop.xlane.xlu0 %2098
  %v2100 = vsel %vm81, %v2090, 0.0
  %2101 = vadd.xlane.f32.xlu0 %v2100
  %v2102 = vpop.xlane.xlu0 %2101
  %v2103 = vrcp.pop %v2093
  %v2104 = vmul.f32 %v2084, %v2103
  %v2105 = vrcp.pop %v2096
  %v2106 = vmul.f32 %v2086, %v2105
  %v2107 = vrcp.pop %v2099
  %v2108 = vmul.f32 %v2088, %v2107
  %v2109 = vrcp.pop %v2102
  %v2110 = vmul.f32 %v2090, %v2109
  %2111 = vrot.lane.b32.xlu0 %v1928, 64
  %v2112 = vpop.permute.xlu0 %2111
  %2113 = vrot.lane.b32.xlu0 %v1933, 64
  %v2114 = vpop.permute.xlu0 %2113
  %2115 = vrot.lane.b32.xlu0 %v1938, 64
  %v2116 = vpop.permute.xlu0 %2115
  %2117 = vrot.lane.b32.xlu0 %v1943, 64
  %v2118 = vpop.permute.xlu0 %2117
  %v2124 = vsel %vm81, %v2104, 0
  %v2127 = vsel %vm81, %v2106, 0
  %v2130 = vsel %vm81, %v2108, 0
  %v2133 = vsel %vm81, %v2110, 0
  %2135 = vmatprep.subr.mxu0 0.0
  %2136 = vmatpush1.msra.mxu0 0.0
  %2137 = vmatprep.subr.mxu0 0.0
  %2138 = vmatpush1.msra.mxu0 0.0
  %2139 = vmatprep.subr.mxu0 0.0
  %2140 = vmatpush1.msra.mxu0 0.0
  %2141 = vmatprep.subr.mxu0 0.0
  %2142 = vmatpush1.msra.mxu0 0.0
  %2143 = vmatprep.subr.mxu0 0.0
  %2144 = vmatpush1.msra.mxu0 0.0
  %2145 = vmatprep.subr.mxu0 0.0
  %2146 = vmatpush1.msra.mxu0 0.0
  %2147 = vmatprep.subr.mxu0 0.0
  %2148 = vmatpush1.msra.mxu0 0.0
  %2149 = vmatprep.subr.mxu0 0.0
  %2150 = vmatpush1.msra.mxu0 0.0
  %2151 = vmatprep.subr.mxu0 0.0
  %2152 = vmatpush1.msra.mxu0 0.0
  %2153 = vmatprep.subr.mxu0 0.0
  %2154 = vmatpush1.msra.mxu0 0.0
  %2155 = vmatprep.subr.mxu0 0.0
  %2156 = vmatpush1.msra.mxu0 0.0
  %2157 = vmatprep.subr.mxu0 0.0
  %2158 = vmatpush1.msra.mxu0 0.0
  %2159 = vmatprep.subr.mxu0 0.0
  %2160 = vmatpush1.msra.mxu0 %v2118
  %2161 = vmatprep.subr.mxu0 0.0
  %2162 = vmatpush1.msra.mxu0 %v2116
  %2163 = vmatprep.subr.mxu0 0.0
  %2164 = vmatpush1.msra.mxu0 %v2114
  %2165 = vmatprep.subr.mxu0 0.0
  %2166 = vmatpush1.msra.mxu0 %v2112
  %2167 = vmatprep.subr.mxu0 0.0
  %2168 = vmatpush2.msra.mxu0 0.0
  %2169 = vmatprep.subr.mxu0 0.0
  %2170 = vmatpush2.msra.mxu0 0.0
  %2171 = vmatprep.subr.mxu0 0.0
  %2172 = vmatpush2.msra.mxu0 0.0
  %2173 = vmatprep.subr.mxu0 0.0
  %2174 = vmatpush2.msra.mxu0 0.0
  %2175 = vmatprep.subr.mxu0 0.0
  %2176 = vmatpush2.msra.mxu0 0.0
  %2177 = vmatprep.subr.mxu0 0.0
  %2178 = vmatpush2.msra.mxu0 0.0
  %2179 = vmatprep.subr.mxu0 0.0
  %2180 = vmatpush2.msra.mxu0 0.0
  %2181 = vmatprep.subr.mxu0 0.0
  %2182 = vmatpush2.msra.mxu0 0.0
  %2183 = vmatprep.subr.mxu0 0.0
  %2184 = vmatpush2.msra.mxu0 0.0
  %2185 = vmatprep.subr.mxu0 0.0
  %2186 = vmatpush2.msra.mxu0 0.0
  %2187 = vmatprep.subr.mxu0 0.0
  %2188 = vmatpush2.msra.mxu0 0.0
  %2189 = vmatprep.subr.mxu0 0.0
  %2190 = vmatpush2.msra.mxu0 0.0
  %2191 = vmatprep.subr.mxu0 0.0
  %2192 = vmatpush2.msra.mxu0 0.0
  %2193 = vmatprep.subr.mxu0 0.0
  %2194 = vmatpush2.msra.mxu0 0.0
  %2195 = vmatprep.subr.mxu0 0.0
  %2196 = vmatpush2.msra.mxu0 0.0
  %2197 = vmatprep.subr.mxu0 0.0
  %2198 = vmatpush2.msra.mxu0 0.0
  %2199 = vmatprep.mubr.f32.mxu0 0.0
  %2200 = vmatmul.mubr.f32.gmra.mxu0 %v2124
  %v2201 = vpop.f32.mrf.mxu0
  %v2202 = vadd.f32 0.0, %v2201
  %v2203 = vpop.f32.mrf.mxu0
  %2204 = vmatprep.mubr.f32.mxu0 0.0
  %2205 = vmatmul.mubr.f32.gmra.mxu0 %v2127
  %v2206 = vpop.f32.mrf.mxu0
  %v2207 = vadd.f32 0.0, %v2206
  %v2208 = vpop.f32.mrf.mxu0
  %2209 = vmatprep.mubr.f32.mxu0 0.0
  %2210 = vmatmul.mubr.f32.gmra.mxu0 %v2130
  %v2211 = vpop.f32.mrf.mxu0
  %v2212 = vadd.f32 0.0, %v2211
  %v2213 = vpop.f32.mrf.mxu0
  %2214 = vmatprep.mubr.f32.mxu0 0.0
  %2215 = vmatmul.mubr.f32.gmra.mxu0 %v2133
  %v2216 = vpop.f32.mrf.mxu0
  %v2217 = vadd.f32 0.0, %v2216
  %v2218 = vpop.f32.mrf.mxu0
  %2219 = vdwg.mxu0
  %2220 = vrot.lane.b32.xlu0 %v1928, 120
  %v2221 = vpop.permute.xlu0 %2220
  %2222 = vrot.lane.b32.xlu0 %v1933, 120
  %v2223 = vpop.permute.xlu0 %2222
  %2224 = vrot.lane.b32.xlu0 %v1938, 120
  %v2225 = vpop.permute.xlu0 %2224
  %2226 = vrot.lane.b32.xlu0 %v1943, 120
  %v2227 = vpop.permute.xlu0 %2226
  %2228 = vrot.lane.b32.xlu0 %v1928, 88
  %v2229 = vpop.permute.xlu0 %2228
  %2230 = vrot.lane.b32.xlu0 %v1933, 88
  %v2231 = vpop.permute.xlu0 %2230
  %2232 = vrot.lane.b32.xlu0 %v1938, 88
  %v2233 = vpop.permute.xlu0 %2232
  %2234 = vrot.lane.b32.xlu0 %v1943, 88
  %v2235 = vpop.permute.xlu0 %2234
  %v2236 = vsel %vm281, %v2221, 0
  %v2238 = vsel %vm281, %v2223, 0
  %v2240 = vsel %vm281, %v2225, 0
  %v2242 = vsel %vm281, %v2227, 0
  %v2244 = vsel %vm281, %v2229, 0
  %v2246 = vsel %vm281, %v2231, 0
  %v2248 = vsel %vm281, %v2233, 0
  %v2250 = vsel %vm281, %v2235, 0
  %2252 = vmatprep.subr.mxu0 0.0
  %2253 = vmatpush1.xpose.msra.mxu0 0.0
  %2254 = vmatprep.subr.mxu0 0.0
  %2255 = vmatpush1.xpose.msra.mxu0 0.0
  %2256 = vmatprep.subr.mxu0 0.0
  %2257 = vmatpush1.xpose.msra.mxu0 0.0
  %2258 = vmatprep.subr.mxu0 0.0
  %2259 = vmatpush1.xpose.msra.mxu0 0.0
  %2260 = vmatprep.subr.mxu0 0.0
  %2261 = vmatpush1.xpose.msra.mxu0 0.0
  %2262 = vmatprep.subr.mxu0 0.0
  %2263 = vmatpush1.xpose.msra.mxu0 0.0
  %2264 = vmatprep.subr.mxu0 0.0
  %2265 = vmatpush1.xpose.msra.mxu0 0.0
  %2266 = vmatprep.subr.mxu0 0.0
  %2267 = vmatpush1.xpose.msra.mxu0 0.0
  %2268 = vmatprep.subr.mxu0 0.0
  %2269 = vmatpush1.xpose.msra.mxu0 0.0
  %2270 = vmatprep.subr.mxu0 0.0
  %2271 = vmatpush1.xpose.msra.mxu0 0.0
  %2272 = vmatprep.subr.mxu0 0.0
  %2273 = vmatpush1.xpose.msra.mxu0 0.0
  %2274 = vmatprep.subr.mxu0 0.0
  %2275 = vmatpush1.xpose.msra.mxu0 0.0
  %2276 = vmatprep.subr.mxu0 0.0
  %2277 = vmatpush1.xpose.msra.mxu0 %v2250
  %2278 = vmatprep.subr.mxu0 0.0
  %2279 = vmatpush1.xpose.msra.mxu0 %v2248
  %2280 = vmatprep.subr.mxu0 0.0
  %2281 = vmatpush1.xpose.msra.mxu0 %v2246
  %2282 = vmatprep.subr.mxu0 0.0
  %2283 = vmatpush1.xpose.msra.mxu0 %v2244
  %2284 = vmatprep.subr.mxu0 0.0
  %2285 = vmatpush2.xpose.msra.mxu0 0.0
  %2286 = vmatprep.subr.mxu0 0.0
  %2287 = vmatpush2.xpose.msra.mxu0 0.0
  %2288 = vmatprep.subr.mxu0 0.0
  %2289 = vmatpush2.xpose.msra.mxu0 0.0
  %2290 = vmatprep.subr.mxu0 0.0
  %2291 = vmatpush2.xpose.msra.mxu0 0.0
  %2292 = vmatprep.subr.mxu0 0.0
  %2293 = vmatpush2.xpose.msra.mxu0 0.0
  %2294 = vmatprep.subr.mxu0 0.0
  %2295 = vmatpush2.xpose.msra.mxu0 0.0
  %2296 = vmatprep.subr.mxu0 0.0
  %2297 = vmatpush2.xpose.msra.mxu0 0.0
  %2298 = vmatprep.subr.mxu0 0.0
  %2299 = vmatpush2.xpose.msra.mxu0 0.0
  %2300 = vmatprep.subr.mxu0 0.0
  %2301 = vmatpush2.xpose.msra.mxu0 0.0
  %2302 = vmatprep.subr.mxu0 0.0
  %2303 = vmatpush2.xpose.msra.mxu0 0.0
  %2304 = vmatprep.subr.mxu0 0.0
  %2305 = vmatpush2.xpose.msra.mxu0 0.0
  %2306 = vmatprep.subr.mxu0 0.0
  %2307 = vmatpush2.xpose.msra.mxu0 0.0
  %2308 = vmatprep.subr.mxu0 0.0
  %2309 = vmatpush2.xpose.msra.mxu0 0.0
  %2310 = vmatprep.subr.mxu0 0.0
  %2311 = vmatpush2.xpose.msra.mxu0 0.0
  %2312 = vmatprep.subr.mxu0 0.0
  %2313 = vmatpush2.xpose.msra.mxu0 0.0
  %2314 = vmatprep.subr.mxu0 0.0
  %2315 = vmatpush2.xpose.msra.mxu0 0.0
  %2316 = vmatprep.mubr.f32.mxu0 0.0
  %2317 = vmatmul.mubr.f32.gmra.mxu0 %v2236
  %v2318 = vpop.f32.mrf.mxu0
  %v2319 = vadd.f32 0.0, %v2318
  %v2320 = vpop.f32.mrf.mxu0
  %2321 = vmatprep.mubr.f32.mxu0 0.0
  %2322 = vmatmul.mubr.f32.gmra.mxu0 %v2238
  %v2323 = vpop.f32.mrf.mxu0
  %v2324 = vadd.f32 0.0, %v2323
  %v2325 = vpop.f32.mrf.mxu0
  %2326 = vmatprep.mubr.f32.mxu0 0.0
  %2327 = vmatmul.mubr.f32.gmra.mxu0 %v2240
  %v2328 = vpop.f32.mrf.mxu0
  %v2329 = vadd.f32 0.0, %v2328
  %v2330 = vpop.f32.mrf.mxu0
  %2331 = vmatprep.mubr.f32.mxu0 0.0
  %2332 = vmatmul.mubr.f32.gmra.mxu0 %v2242
  %v2333 = vpop.f32.mrf.mxu0
  %v2334 = vadd.f32 0.0, %v2333
  %v2335 = vpop.f32.mrf.mxu0
  %2336 = vdwg.mxu0
  %v2337 = vmul.f32 %v2319, 0.35355338
  %v2338 = vmul.f32 %v2324, 0.35355338
  %v2339 = vmul.f32 %v2329, 0.35355338
  %v2340 = vmul.f32 %v2334, 0.35355338
  %v2341 = vadd.f32 %v2337, %v1845
  %v2342 = vadd.f32 %v2338, %v1846
  %v2343 = vadd.f32 %v2339, %v1847
  %v2344 = vadd.f32 %v2340, %v1848
  %v2345 = vsel %vm81, %v2341, -inf
  %2346 = vmax.xlane.f32.xlu0 %v2345
  %v2347 = vpop.xlane.xlu0 %2346
  %v2348 = vsel %vm81, %v2342, -inf
  %2349 = vmax.xlane.f32.xlu0 %v2348
  %v2350 = vpop.xlane.xlu0 %2349
  %v2351 = vsel %vm81, %v2343, -inf
  %2352 = vmax.xlane.f32.xlu0 %v2351
  %v2353 = vpop.xlane.xlu0 %2352
  %v2354 = vsel %vm81, %v2344, -inf
  %2355 = vmax.xlane.f32.xlu0 %v2354
  %v2356 = vpop.xlane.xlu0 %2355
  %v2357 = vsub.f32 %v2341, %v2347
  %v2358 = vsub.f32 %v2342, %v2350
  %v2359 = vsub.f32 %v2343, %v2353
  %v2360 = vsub.f32 %v2344, %v2356
  %v2361 = vmul.f32 %v2357, 1.442695
  %v2362 = vpow.pop %v2361
  %v2363 = vmul.f32 %v2358, 1.442695
  %v2364 = vpow.pop %v2363
  %v2365 = vmul.f32 %v2359, 1.442695
  %v2366 = vpow.pop %v2365
  %v2367 = vmul.f32 %v2360, 1.442695
  %v2368 = vpow.pop %v2367
  %v2369 = vsel %vm81, %v2362, 0.0
  %2370 = vadd.xlane.f32.xlu0 %v2369
  %v2371 = vpop.xlane.xlu0 %2370
  %v2372 = vsel %vm81, %v2364, 0.0
  %2373 = vadd.xlane.f32.xlu0 %v2372
  %v2374 = vpop.xlane.xlu0 %2373
  %v2375 = vsel %vm81, %v2366, 0.0
  %2376 = vadd.xlane.f32.xlu0 %v2375
  %v2377 = vpop.xlane.xlu0 %2376
  %v2378 = vsel %vm81, %v2368, 0.0
  %2379 = vadd.xlane.f32.xlu0 %v2378
  %v2380 = vpop.xlane.xlu0 %2379
  %v2381 = vrcp.pop %v2371
  %v2382 = vmul.f32 %v2362, %v2381
  %v2383 = vrcp.pop %v2374
  %v2384 = vmul.f32 %v2364, %v2383
  %v2385 = vrcp.pop %v2377
  %v2386 = vmul.f32 %v2366, %v2385
  %v2387 = vrcp.pop %v2380
  %v2388 = vmul.f32 %v2368, %v2387
  %2389 = vrot.lane.b32.xlu0 %v1928, 56
  %v2390 = vpop.permute.xlu0 %2389
  %2391 = vrot.lane.b32.xlu0 %v1933, 56
  %v2392 = vpop.permute.xlu0 %2391
  %2393 = vrot.lane.b32.xlu0 %v1938, 56
  %v2394 = vpop.permute.xlu0 %2393
  %2395 = vrot.lane.b32.xlu0 %v1943, 56
  %v2396 = vpop.permute.xlu0 %2395
  %v2402 = vsel %vm81, %v2382, 0
  %v2405 = vsel %vm81, %v2384, 0
  %v2408 = vsel %vm81, %v2386, 0
  %v2411 = vsel %vm81, %v2388, 0
  %2413 = vmatprep.subr.mxu0 0.0
  %2414 = vmatpush1.msra.mxu0 0.0
  %2415 = vmatprep.subr.mxu0 0.0
  %2416 = vmatpush1.msra.mxu0 0.0
  %2417 = vmatprep.subr.mxu0 0.0
  %2418 = vmatpush1.msra.mxu0 0.0
  %2419 = vmatprep.subr.mxu0 0.0
  %2420 = vmatpush1.msra.mxu0 0.0
  %2421 = vmatprep.subr.mxu0 0.0
  %2422 = vmatpush1.msra.mxu0 0.0
  %2423 = vmatprep.subr.mxu0 0.0
  %2424 = vmatpush1.msra.mxu0 0.0
  %2425 = vmatprep.subr.mxu0 0.0
  %2426 = vmatpush1.msra.mxu0 0.0
  %2427 = vmatprep.subr.mxu0 0.0
  %2428 = vmatpush1.msra.mxu0 0.0
  %2429 = vmatprep.subr.mxu0 0.0
  %2430 = vmatpush1.msra.mxu0 0.0
  %2431 = vmatprep.subr.mxu0 0.0
  %2432 = vmatpush1.msra.mxu0 0.0
  %2433 = vmatprep.subr.mxu0 0.0
  %2434 = vmatpush1.msra.mxu0 0.0
  %2435 = vmatprep.subr.mxu0 0.0
  %2436 = vmatpush1.msra.mxu0 0.0
  %2437 = vmatprep.subr.mxu0 0.0
  %2438 = vmatpush1.msra.mxu0 %v2396
  %2439 = vmatprep.subr.mxu0 0.0
  %2440 = vmatpush1.msra.mxu0 %v2394
  %2441 = vmatprep.subr.mxu0 0.0
  %2442 = vmatpush1.msra.mxu0 %v2392
  %2443 = vmatprep.subr.mxu0 0.0
  %2444 = vmatpush1.msra.mxu0 %v2390
  %2445 = vmatprep.subr.mxu0 0.0
  %2446 = vmatpush2.msra.mxu0 0.0
  %2447 = vmatprep.subr.mxu0 0.0
  %2448 = vmatpush2.msra.mxu0 0.0
  %2449 = vmatprep.subr.mxu0 0.0
  %2450 = vmatpush2.msra.mxu0 0.0
  %2451 = vmatprep.subr.mxu0 0.0
  %2452 = vmatpush2.msra.mxu0 0.0
  %2453 = vmatprep.subr.mxu0 0.0
  %2454 = vmatpush2.msra.mxu0 0.0
  %2455 = vmatprep.subr.mxu0 0.0
  %2456 = vmatpush2.msra.mxu0 0.0
  %2457 = vmatprep.subr.mxu0 0.0
  %2458 = vmatpush2.msra.mxu0 0.0
  %2459 = vmatprep.subr.mxu0 0.0
  %2460 = vmatpush2.msra.mxu0 0.0
  %2461 = vmatprep.subr.mxu0 0.0
  %2462 = vmatpush2.msra.mxu0 0.0
  %2463 = vmatprep.subr.mxu0 0.0
  %2464 = vmatpush2.msra.mxu0 0.0
  %2465 = vmatprep.subr.mxu0 0.0
  %2466 = vmatpush2.msra.mxu0 0.0
  %2467 = vmatprep.subr.mxu0 0.0
  %2468 = vmatpush2.msra.mxu0 0.0
  %2469 = vmatprep.subr.mxu0 0.0
  %2470 = vmatpush2.msra.mxu0 0.0
  %2471 = vmatprep.subr.mxu0 0.0
  %2472 = vmatpush2.msra.mxu0 0.0
  %2473 = vmatprep.subr.mxu0 0.0
  %2474 = vmatpush2.msra.mxu0 0.0
  %2475 = vmatprep.subr.mxu0 0.0
  %2476 = vmatpush2.msra.mxu0 0.0
  %2477 = vmatprep.mubr.f32.mxu0 0.0
  %2478 = vmatmul.mubr.f32.gmra.mxu0 %v2402
  %v2479 = vpop.f32.mrf.mxu0
  %v2480 = vadd.f32 0.0, %v2479
  %v2481 = vpop.f32.mrf.mxu0
  %2482 = vmatprep.mubr.f32.mxu0 0.0
  %2483 = vmatmul.mubr.f32.gmra.mxu0 %v2405
  %v2484 = vpop.f32.mrf.mxu0
  %v2485 = vadd.f32 0.0, %v2484
  %v2486 = vpop.f32.mrf.mxu0
  %2487 = vmatprep.mubr.f32.mxu0 0.0
  %2488 = vmatmul.mubr.f32.gmra.mxu0 %v2408
  %v2489 = vpop.f32.mrf.mxu0
  %v2490 = vadd.f32 0.0, %v2489
  %v2491 = vpop.f32.mrf.mxu0
  %2492 = vmatprep.mubr.f32.mxu0 0.0
  %2493 = vmatmul.mubr.f32.gmra.mxu0 %v2411
  %v2494 = vpop.f32.mrf.mxu0
  %v2495 = vadd.f32 0.0, %v2494
  %v2496 = vpop.f32.mrf.mxu0
  %2497 = vdwg.mxu0
  %2498 = vrot.lane.b32.xlu0 %v1928, 112
  %v2499 = vpop.permute.xlu0 %2498
  %2500 = vrot.lane.b32.xlu0 %v1933, 112
  %v2501 = vpop.permute.xlu0 %2500
  %2502 = vrot.lane.b32.xlu0 %v1938, 112
  %v2503 = vpop.permute.xlu0 %2502
  %2504 = vrot.lane.b32.xlu0 %v1943, 112
  %v2505 = vpop.permute.xlu0 %2504
  %2506 = vrot.lane.b32.xlu0 %v1928, 80
  %v2507 = vpop.permute.xlu0 %2506
  %2508 = vrot.lane.b32.xlu0 %v1933, 80
  %v2509 = vpop.permute.xlu0 %2508
  %2510 = vrot.lane.b32.xlu0 %v1938, 80
  %v2511 = vpop.permute.xlu0 %2510
  %2512 = vrot.lane.b32.xlu0 %v1943, 80
  %v2513 = vpop.permute.xlu0 %2512
  %v2514 = vsel %vm281, %v2499, 0
  %v2516 = vsel %vm281, %v2501, 0
  %v2518 = vsel %vm281, %v2503, 0
  %v2520 = vsel %vm281, %v2505, 0
  %v2522 = vsel %vm281, %v2507, 0
  %v2524 = vsel %vm281, %v2509, 0
  %v2526 = vsel %vm281, %v2511, 0
  %v2528 = vsel %vm281, %v2513, 0
  %2530 = vmatprep.subr.mxu0 0.0
  %2531 = vmatpush1.xpose.msra.mxu0 0.0
  %2532 = vmatprep.subr.mxu0 0.0
  %2533 = vmatpush1.xpose.msra.mxu0 0.0
  %2534 = vmatprep.subr.mxu0 0.0
  %2535 = vmatpush1.xpose.msra.mxu0 0.0
  %2536 = vmatprep.subr.mxu0 0.0
  %2537 = vmatpush1.xpose.msra.mxu0 0.0
  %2538 = vmatprep.subr.mxu0 0.0
  %2539 = vmatpush1.xpose.msra.mxu0 0.0
  %2540 = vmatprep.subr.mxu0 0.0
  %2541 = vmatpush1.xpose.msra.mxu0 0.0
  %2542 = vmatprep.subr.mxu0 0.0
  %2543 = vmatpush1.xpose.msra.mxu0 0.0
  %2544 = vmatprep.subr.mxu0 0.0
  %2545 = vmatpush1.xpose.msra.mxu0 0.0
  %2546 = vmatprep.subr.mxu0 0.0
  %2547 = vmatpush1.xpose.msra.mxu0 0.0
  %2548 = vmatprep.subr.mxu0 0.0
  %2549 = vmatpush1.xpose.msra.mxu0 0.0
  %2550 = vmatprep.subr.mxu0 0.0
  %2551 = vmatpush1.xpose.msra.mxu0 0.0
  %2552 = vmatprep.subr.mxu0 0.0
  %2553 = vmatpush1.xpose.msra.mxu0 0.0
  %2554 = vmatprep.subr.mxu0 0.0
  %2555 = vmatpush1.xpose.msra.mxu0 %v2528
  %2556 = vmatprep.subr.mxu0 0.0
  %2557 = vmatpush1.xpose.msra.mxu0 %v2526
  %2558 = vmatprep.subr.mxu0 0.0
  %2559 = vmatpush1.xpose.msra.mxu0 %v2524
  %2560 = vmatprep.subr.mxu0 0.0
  %2561 = vmatpush1.xpose.msra.mxu0 %v2522
  %2562 = vmatprep.subr.mxu0 0.0
  %2563 = vmatpush2.xpose.msra.mxu0 0.0
  %2564 = vmatprep.subr.mxu0 0.0
  %2565 = vmatpush2.xpose.msra.mxu0 0.0
  %2566 = vmatprep.subr.mxu0 0.0
  %2567 = vmatpush2.xpose.msra.mxu0 0.0
  %2568 = vmatprep.subr.mxu0 0.0
  %2569 = vmatpush2.xpose.msra.mxu0 0.0
  %2570 = vmatprep.subr.mxu0 0.0
  %2571 = vmatpush2.xpose.msra.mxu0 0.0
  %2572 = vmatprep.subr.mxu0 0.0
  %2573 = vmatpush2.xpose.msra.mxu0 0.0
  %2574 = vmatprep.subr.mxu0 0.0
  %2575 = vmatpush2.xpose.msra.mxu0 0.0
  %2576 = vmatprep.subr.mxu0 0.0
  %2577 = vmatpush2.xpose.msra.mxu0 0.0
  %2578 = vmatprep.subr.mxu0 0.0
  %2579 = vmatpush2.xpose.msra.mxu0 0.0
  %2580 = vmatprep.subr.mxu0 0.0
  %2581 = vmatpush2.xpose.msra.mxu0 0.0
  %2582 = vmatprep.subr.mxu0 0.0
  %2583 = vmatpush2.xpose.msra.mxu0 0.0
  %2584 = vmatprep.subr.mxu0 0.0
  %2585 = vmatpush2.xpose.msra.mxu0 0.0
  %2586 = vmatprep.subr.mxu0 0.0
  %2587 = vmatpush2.xpose.msra.mxu0 0.0
  %2588 = vmatprep.subr.mxu0 0.0
  %2589 = vmatpush2.xpose.msra.mxu0 0.0
  %2590 = vmatprep.subr.mxu0 0.0
  %2591 = vmatpush2.xpose.msra.mxu0 0.0
  %2592 = vmatprep.subr.mxu0 0.0
  %2593 = vmatpush2.xpose.msra.mxu0 0.0
  %2594 = vmatprep.mubr.f32.mxu0 0.0
  %2595 = vmatmul.mubr.f32.gmra.mxu0 %v2514
  %v2596 = vpop.f32.mrf.mxu0
  %v2597 = vadd.f32 0.0, %v2596
  %v2598 = vpop.f32.mrf.mxu0
  %2599 = vmatprep.mubr.f32.mxu0 0.0
  %2600 = vmatmul.mubr.f32.gmra.mxu0 %v2516
  %v2601 = vpop.f32.mrf.mxu0
  %v2602 = vadd.f32 0.0, %v2601
  %v2603 = vpop.f32.mrf.mxu0
  %2604 = vmatprep.mubr.f32.mxu0 0.0
  %2605 = vmatmul.mubr.f32.gmra.mxu0 %v2518
  %v2606 = vpop.f32.mrf.mxu0
  %v2607 = vadd.f32 0.0, %v2606
  %v2608 = vpop.f32.mrf.mxu0
  %2609 = vmatprep.mubr.f32.mxu0 0.0
  %2610 = vmatmul.mubr.f32.gmra.mxu0 %v2520
  %v2611 = vpop.f32.mrf.mxu0
  %v2612 = vadd.f32 0.0, %v2611
  %v2613 = vpop.f32.mrf.mxu0
  %2614 = vdwg.mxu0
  %v2615 = vmul.f32 %v2597, 0.35355338
  %v2616 = vmul.f32 %v2602, 0.35355338
  %v2617 = vmul.f32 %v2607, 0.35355338
  %v2618 = vmul.f32 %v2612, 0.35355338
  %v2619 = vadd.f32 %v2615, %v1845
  %v2620 = vadd.f32 %v2616, %v1846
  %v2621 = vadd.f32 %v2617, %v1847
  %v2622 = vadd.f32 %v2618, %v1848
  %v2623 = vsel %vm81, %v2619, -inf
  %2624 = vmax.xlane.f32.xlu0 %v2623
  %v2625 = vpop.xlane.xlu0 %2624
  %v2626 = vsel %vm81, %v2620, -inf
  %2627 = vmax.xlane.f32.xlu0 %v2626
  %v2628 = vpop.xlane.xlu0 %2627
  %v2629 = vsel %vm81, %v2621, -inf
  %2630 = vmax.xlane.f32.xlu0 %v2629
  %v2631 = vpop.xlane.xlu0 %2630
  %v2632 = vsel %vm81, %v2622, -inf
  %2633 = vmax.xlane.f32.xlu0 %v2632
  %v2634 = vpop.xlane.xlu0 %2633
  %v2635 = vsub.f32 %v2619, %v2625
  %v2636 = vsub.f32 %v2620, %v2628
  %v2637 = vsub.f32 %v2621, %v2631
  %v2638 = vsub.f32 %v2622, %v2634
  %v2639 = vmul.f32 %v2635, 1.442695
  %v2640 = vpow.pop %v2639
  %v2641 = vmul.f32 %v2636, 1.442695
  %v2642 = vpow.pop %v2641
  %v2643 = vmul.f32 %v2637, 1.442695
  %v2644 = vpow.pop %v2643
  %v2645 = vmul.f32 %v2638, 1.442695
  %v2646 = vpow.pop %v2645
  %v2647 = vsel %vm81, %v2640, 0.0
  %2648 = vadd.xlane.f32.xlu0 %v2647
  %v2649 = vpop.xlane.xlu0 %2648
  %v2650 = vsel %vm81, %v2642, 0.0
  %2651 = vadd.xlane.f32.xlu0 %v2650
  %v2652 = vpop.xlane.xlu0 %2651
  %v2653 = vsel %vm81, %v2644, 0.0
  %2654 = vadd.xlane.f32.xlu0 %v2653
  %v2655 = vpop.xlane.xlu0 %2654
  %v2656 = vsel %vm81, %v2646, 0.0
  %2657 = vadd.xlane.f32.xlu0 %v2656
  %v2658 = vpop.xlane.xlu0 %2657
  %v2659 = vrcp.pop %v2649
  %v2660 = vmul.f32 %v2640, %v2659
  %v2661 = vrcp.pop %v2652
  %v2662 = vmul.f32 %v2642, %v2661
  %v2663 = vrcp.pop %v2655
  %v2664 = vmul.f32 %v2644, %v2663
  %v2665 = vrcp.pop %v2658
  %v2666 = vmul.f32 %v2646, %v2665
  %2667 = vrot.lane.b32.xlu0 %v1928, 48
  %v2668 = vpop.permute.xlu0 %2667
  %2669 = vrot.lane.b32.xlu0 %v1933, 48
  %v2670 = vpop.permute.xlu0 %2669
  %2671 = vrot.lane.b32.xlu0 %v1938, 48
  %v2672 = vpop.permute.xlu0 %2671
  %2673 = vrot.lane.b32.xlu0 %v1943, 48
  %v2674 = vpop.permute.xlu0 %2673
  %v2680 = vsel %vm81, %v2660, 0
  %v2683 = vsel %vm81, %v2662, 0
  %v2686 = vsel %vm81, %v2664, 0
  %v2689 = vsel %vm81, %v2666, 0
  %2691 = vmatprep.subr.mxu0 0.0
  %2692 = vmatpush1.msra.mxu0 0.0
  %2693 = vmatprep.subr.mxu0 0.0
  %2694 = vmatpush1.msra.mxu0 0.0
  %2695 = vmatprep.subr.mxu0 0.0
  %2696 = vmatpush1.msra.mxu0 0.0
  %2697 = vmatprep.subr.mxu0 0.0
  %2698 = vmatpush1.msra.mxu0 0.0
  %2699 = vmatprep.subr.mxu0 0.0
  %2700 = vmatpush1.msra.mxu0 0.0
  %2701 = vmatprep.subr.mxu0 0.0
  %2702 = vmatpush1.msra.mxu0 0.0
  %2703 = vmatprep.subr.mxu0 0.0
  %2704 = vmatpush1.msra.mxu0 0.0
  %2705 = vmatprep.subr.mxu0 0.0
  %2706 = vmatpush1.msra.mxu0 0.0
  %2707 = vmatprep.subr.mxu0 0.0
  %2708 = vmatpush1.msra.mxu0 0.0
  %2709 = vmatprep.subr.mxu0 0.0
  %2710 = vmatpush1.msra.mxu0 0.0
  %2711 = vmatprep.subr.mxu0 0.0
  %2712 = vmatpush1.msra.mxu0 0.0
  %2713 = vmatprep.subr.mxu0 0.0
  %2714 = vmatpush1.msra.mxu0 0.0
  %2715 = vmatprep.subr.mxu0 0.0
  %2716 = vmatpush1.msra.mxu0 %v2674
  %2717 = vmatprep.subr.mxu0 0.0
  %2718 = vmatpush1.msra.mxu0 %v2672
  %2719 = vmatprep.subr.mxu0 0.0
  %2720 = vmatpush1.msra.mxu0 %v2670
  %2721 = vmatprep.subr.mxu0 0.0
  %2722 = vmatpush1.msra.mxu0 %v2668
  %2723 = vmatprep.subr.mxu0 0.0
  %2724 = vmatpush2.msra.mxu0 0.0
  %2725 = vmatprep.subr.mxu0 0.0
  %2726 = vmatpush2.msra.mxu0 0.0
  %2727 = vmatprep.subr.mxu0 0.0
  %2728 = vmatpush2.msra.mxu0 0.0
  %2729 = vmatprep.subr.mxu0 0.0
  %2730 = vmatpush2.msra.mxu0 0.0
  %2731 = vmatprep.subr.mxu0 0.0
  %2732 = vmatpush2.msra.mxu0 0.0
  %2733 = vmatprep.subr.mxu0 0.0
  %2734 = vmatpush2.msra.mxu0 0.0
  %2735 = vmatprep.subr.mxu0 0.0
  %2736 = vmatpush2.msra.mxu0 0.0
  %2737 = vmatprep.subr.mxu0 0.0
  %2738 = vmatpush2.msra.mxu0 0.0
  %2739 = vmatprep.subr.mxu0 0.0
  %2740 = vmatpush2.msra.mxu0 0.0
  %2741 = vmatprep.subr.mxu0 0.0
  %2742 = vmatpush2.msra.mxu0 0.0
  %2743 = vmatprep.subr.mxu0 0.0
  %2744 = vmatpush2.msra.mxu0 0.0
  %2745 = vmatprep.subr.mxu0 0.0
  %2746 = vmatpush2.msra.mxu0 0.0
  %2747 = vmatprep.subr.mxu0 0.0
  %2748 = vmatpush2.msra.mxu0 0.0
  %2749 = vmatprep.subr.mxu0 0.0
  %2750 = vmatpush2.msra.mxu0 0.0
  %2751 = vmatprep.subr.mxu0 0.0
  %2752 = vmatpush2.msra.mxu0 0.0
  %2753 = vmatprep.subr.mxu0 0.0
  %2754 = vmatpush2.msra.mxu0 0.0
  %2755 = vmatprep.mubr.f32.mxu0 0.0
  %2756 = vmatmul.mubr.f32.gmra.mxu0 %v2680
  %v2757 = vpop.f32.mrf.mxu0
  %v2758 = vadd.f32 0.0, %v2757
  %v2759 = vpop.f32.mrf.mxu0
  %2760 = vmatprep.mubr.f32.mxu0 0.0
  %2761 = vmatmul.mubr.f32.gmra.mxu0 %v2683
  %v2762 = vpop.f32.mrf.mxu0
  %v2763 = vadd.f32 0.0, %v2762
  %v2764 = vpop.f32.mrf.mxu0
  %2765 = vmatprep.mubr.f32.mxu0 0.0
  %2766 = vmatmul.mubr.f32.gmra.mxu0 %v2686
  %v2767 = vpop.f32.mrf.mxu0
  %v2768 = vadd.f32 0.0, %v2767
  %v2769 = vpop.f32.mrf.mxu0
  %2770 = vmatprep.mubr.f32.mxu0 0.0
  %2771 = vmatmul.mubr.f32.gmra.mxu0 %v2689
  %v2772 = vpop.f32.mrf.mxu0
  %v2773 = vadd.f32 0.0, %v2772
  %v2774 = vpop.f32.mrf.mxu0
  %2775 = vdwg.mxu0
  %2776 = vrot.lane.b32.xlu0 %v1928, 104
  %v2777 = vpop.permute.xlu0 %2776
  %2778 = vrot.lane.b32.xlu0 %v1933, 104
  %v2779 = vpop.permute.xlu0 %2778
  %2780 = vrot.lane.b32.xlu0 %v1938, 104
  %v2781 = vpop.permute.xlu0 %2780
  %2782 = vrot.lane.b32.xlu0 %v1943, 104
  %v2783 = vpop.permute.xlu0 %2782
  %2784 = vrot.lane.b32.xlu0 %v1928, 72
  %v2785 = vpop.permute.xlu0 %2784
  %2786 = vrot.lane.b32.xlu0 %v1933, 72
  %v2787 = vpop.permute.xlu0 %2786
  %2788 = vrot.lane.b32.xlu0 %v1938, 72
  %v2789 = vpop.permute.xlu0 %2788
  %2790 = vrot.lane.b32.xlu0 %v1943, 72
  %v2791 = vpop.permute.xlu0 %2790
  %v2792 = vsel %vm281, %v2777, 0
  %v2794 = vsel %vm281, %v2779, 0
  %v2796 = vsel %vm281, %v2781, 0
  %v2798 = vsel %vm281, %v2783, 0
  %v2800 = vsel %vm281, %v2785, 0
  %v2802 = vsel %vm281, %v2787, 0
  %v2804 = vsel %vm281, %v2789, 0
  %v2806 = vsel %vm281, %v2791, 0
  %2808 = vmatprep.subr.mxu0 0.0
  %2809 = vmatpush1.xpose.msra.mxu0 0.0
  %2810 = vmatprep.subr.mxu0 0.0
  %2811 = vmatpush1.xpose.msra.mxu0 0.0
  %2812 = vmatprep.subr.mxu0 0.0
  %2813 = vmatpush1.xpose.msra.mxu0 0.0
  %2814 = vmatprep.subr.mxu0 0.0
  %2815 = vmatpush1.xpose.msra.mxu0 0.0
  %2816 = vmatprep.subr.mxu0 0.0
  %2817 = vmatpush1.xpose.msra.mxu0 0.0
  %2818 = vmatprep.subr.mxu0 0.0
  %2819 = vmatpush1.xpose.msra.mxu0 0.0
  %2820 = vmatprep.subr.mxu0 0.0
  %2821 = vmatpush1.xpose.msra.mxu0 0.0
  %2822 = vmatprep.subr.mxu0 0.0
  %2823 = vmatpush1.xpose.msra.mxu0 0.0
  %2824 = vmatprep.subr.mxu0 0.0
  %2825 = vmatpush1.xpose.msra.mxu0 0.0
  %2826 = vmatprep.subr.mxu0 0.0
  %2827 = vmatpush1.xpose.msra.mxu0 0.0
  %2828 = vmatprep.subr.mxu0 0.0
  %2829 = vmatpush1.xpose.msra.mxu0 0.0
  %2830 = vmatprep.subr.mxu0 0.0
  %2831 = vmatpush1.xpose.msra.mxu0 0.0
  %2832 = vmatprep.subr.mxu0 0.0
  %2833 = vmatpush1.xpose.msra.mxu0 %v2806
  %2834 = vmatprep.subr.mxu0 0.0
  %2835 = vmatpush1.xpose.msra.mxu0 %v2804
  %2836 = vmatprep.subr.mxu0 0.0
  %2837 = vmatpush1.xpose.msra.mxu0 %v2802
  %2838 = vmatprep.subr.mxu0 0.0
  %2839 = vmatpush1.xpose.msra.mxu0 %v2800
  %2840 = vmatprep.subr.mxu0 0.0
  %2841 = vmatpush2.xpose.msra.mxu0 0.0
  %2842 = vmatprep.subr.mxu0 0.0
  %2843 = vmatpush2.xpose.msra.mxu0 0.0
  %2844 = vmatprep.subr.mxu0 0.0
  %2845 = vmatpush2.xpose.msra.mxu0 0.0
  %2846 = vmatprep.subr.mxu0 0.0
  %2847 = vmatpush2.xpose.msra.mxu0 0.0
  %2848 = vmatprep.subr.mxu0 0.0
  %2849 = vmatpush2.xpose.msra.mxu0 0.0
  %2850 = vmatprep.subr.mxu0 0.0
  %2851 = vmatpush2.xpose.msra.mxu0 0.0
  %2852 = vmatprep.subr.mxu0 0.0
  %2853 = vmatpush2.xpose.msra.mxu0 0.0
  %2854 = vmatprep.subr.mxu0 0.0
  %2855 = vmatpush2.xpose.msra.mxu0 0.0
  %2856 = vmatprep.subr.mxu0 0.0
  %2857 = vmatpush2.xpose.msra.mxu0 0.0
  %2858 = vmatprep.subr.mxu0 0.0
  %2859 = vmatpush2.xpose.msra.mxu0 0.0
  %2860 = vmatprep.subr.mxu0 0.0
  %2861 = vmatpush2.xpose.msra.mxu0 0.0
  %2862 = vmatprep.subr.mxu0 0.0
  %2863 = vmatpush2.xpose.msra.mxu0 0.0
  %2864 = vmatprep.subr.mxu0 0.0
  %2865 = vmatpush2.xpose.msra.mxu0 0.0
  %2866 = vmatprep.subr.mxu0 0.0
  %2867 = vmatpush2.xpose.msra.mxu0 0.0
  %2868 = vmatprep.subr.mxu0 0.0
  %2869 = vmatpush2.xpose.msra.mxu0 0.0
  %2870 = vmatprep.subr.mxu0 0.0
  %2871 = vmatpush2.xpose.msra.mxu0 0.0
  %2872 = vmatprep.mubr.f32.mxu0 0.0
  %2873 = vmatmul.mubr.f32.gmra.mxu0 %v2792
  %v2874 = vpop.f32.mrf.mxu0
  %v2875 = vadd.f32 0.0, %v2874
  %v2876 = vpop.f32.mrf.mxu0
  %2877 = vmatprep.mubr.f32.mxu0 0.0
  %2878 = vmatmul.mubr.f32.gmra.mxu0 %v2794
  %v2879 = vpop.f32.mrf.mxu0
  %v2880 = vadd.f32 0.0, %v2879
  %v2881 = vpop.f32.mrf.mxu0
  %2882 = vmatprep.mubr.f32.mxu0 0.0
  %2883 = vmatmul.mubr.f32.gmra.mxu0 %v2796
  %v2884 = vpop.f32.mrf.mxu0
  %v2885 = vadd.f32 0.0, %v2884
  %v2886 = vpop.f32.mrf.mxu0
  %2887 = vmatprep.mubr.f32.mxu0 0.0
  %2888 = vmatmul.mubr.f32.gmra.mxu0 %v2798
  %v2889 = vpop.f32.mrf.mxu0
  %v2890 = vadd.f32 0.0, %v2889
  %v2891 = vpop.f32.mrf.mxu0
  %2892 = vdwg.mxu0
  %v2893 = vmul.f32 %v2875, 0.35355338
  %v2894 = vmul.f32 %v2880, 0.35355338
  %v2895 = vmul.f32 %v2885, 0.35355338
  %v2896 = vmul.f32 %v2890, 0.35355338
  %v2897 = vadd.f32 %v2893, %v1845
  %v2898 = vadd.f32 %v2894, %v1846
  %v2899 = vadd.f32 %v2895, %v1847
  %v2900 = vadd.f32 %v2896, %v1848
  %v2901 = vsel %vm81, %v2897, -inf
  %2902 = vmax.xlane.f32.xlu0 %v2901
  %v2903 = vpop.xlane.xlu0 %2902
  %v2904 = vsel %vm81, %v2898, -inf
  %2905 = vmax.xlane.f32.xlu0 %v2904
  %v2906 = vpop.xlane.xlu0 %2905
  %v2907 = vsel %vm81, %v2899, -inf
  %2908 = vmax.xlane.f32.xlu0 %v2907
  %v2909 = vpop.xlane.xlu0 %2908
  %v2910 = vsel %vm81, %v2900, -inf
  %2911 = vmax.xlane.f32.xlu0 %v2910
  %v2912 = vpop.xlane.xlu0 %2911
  %v2913 = vsub.f32 %v2897, %v2903
  %v2914 = vsub.f32 %v2898, %v2906
  %v2915 = vsub.f32 %v2899, %v2909
  %v2916 = vsub.f32 %v2900, %v2912
  %v2917 = vmul.f32 %v2913, 1.442695
  %v2918 = vpow.pop %v2917
  %v2919 = vmul.f32 %v2914, 1.442695
  %v2920 = vpow.pop %v2919
  %v2921 = vmul.f32 %v2915, 1.442695
  %v2922 = vpow.pop %v2921
  %v2923 = vmul.f32 %v2916, 1.442695
  %v2924 = vpow.pop %v2923
  %v2925 = vsel %vm81, %v2918, 0.0
  %2926 = vadd.xlane.f32.xlu0 %v2925
  %v2927 = vpop.xlane.xlu0 %2926
  %v2928 = vsel %vm81, %v2920, 0.0
  %2929 = vadd.xlane.f32.xlu0 %v2928
  %v2930 = vpop.xlane.xlu0 %2929
  %v2931 = vsel %vm81, %v2922, 0.0
  %2932 = vadd.xlane.f32.xlu0 %v2931
  %v2933 = vpop.xlane.xlu0 %2932
  %v2934 = vsel %vm81, %v2924, 0.0
  %2935 = vadd.xlane.f32.xlu0 %v2934
  %v2936 = vpop.xlane.xlu0 %2935
  %v2937 = vrcp.pop %v2927
  %v2938 = vmul.f32 %v2918, %v2937
  %v2939 = vrcp.pop %v2930
  %v2940 = vmul.f32 %v2920, %v2939
  %v2941 = vrcp.pop %v2933
  %v2942 = vmul.f32 %v2922, %v2941
  %v2943 = vrcp.pop %v2936
  %v2944 = vmul.f32 %v2924, %v2943
  %2945 = vrot.lane.b32.xlu0 %v1928, 40
  %v2946 = vpop.permute.xlu0 %2945
  %2947 = vrot.lane.b32.xlu0 %v1933, 40
  %v2948 = vpop.permute.xlu0 %2947
  %2949 = vrot.lane.b32.xlu0 %v1938, 40
  %v2950 = vpop.permute.xlu0 %2949
  %2951 = vrot.lane.b32.xlu0 %v1943, 40
  %v2952 = vpop.permute.xlu0 %2951
  %v2958 = vsel %vm81, %v2938, 0
  %v2961 = vsel %vm81, %v2940, 0
  %v2964 = vsel %vm81, %v2942, 0
  %v2967 = vsel %vm81, %v2944, 0
  %2969 = vmatprep.subr.mxu0 0.0
  %2970 = vmatpush1.msra.mxu0 0.0
  %2971 = vmatprep.subr.mxu0 0.0
  %2972 = vmatpush1.msra.mxu0 0.0
  %2973 = vmatprep.subr.mxu0 0.0
  %2974 = vmatpush1.msra.mxu0 0.0
  %2975 = vmatprep.subr.mxu0 0.0
  %2976 = vmatpush1.msra.mxu0 0.0
  %2977 = vmatprep.subr.mxu0 0.0
  %2978 = vmatpush1.msra.mxu0 0.0
  %2979 = vmatprep.subr.mxu0 0.0
  %2980 = vmatpush1.msra.mxu0 0.0
  %2981 = vmatprep.subr.mxu0 0.0
  %2982 = vmatpush1.msra.mxu0 0.0
  %2983 = vmatprep.subr.mxu0 0.0
  %2984 = vmatpush1.msra.mxu0 0.0
  %2985 = vmatprep.subr.mxu0 0.0
  %2986 = vmatpush1.msra.mxu0 0.0
  %2987 = vmatprep.subr.mxu0 0.0
  %2988 = vmatpush1.msra.mxu0 0.0
  %2989 = vmatprep.subr.mxu0 0.0
  %2990 = vmatpush1.msra.mxu0 0.0
  %2991 = vmatprep.subr.mxu0 0.0
  %2992 = vmatpush1.msra.mxu0 0.0
  %2993 = vmatprep.subr.mxu0 0.0
  %2994 = vmatpush1.msra.mxu0 %v2952
  %2995 = vmatprep.subr.mxu0 0.0
  %2996 = vmatpush1.msra.mxu0 %v2950
  %2997 = vmatprep.subr.mxu0 0.0
  %2998 = vmatpush1.msra.mxu0 %v2948
  %2999 = vmatprep.subr.mxu0 0.0
  %3000 = vmatpush1.msra.mxu0 %v2946
  %3001 = vmatprep.subr.mxu0 0.0
  %3002 = vmatpush2.msra.mxu0 0.0
  %3003 = vmatprep.subr.mxu0 0.0
  %3004 = vmatpush2.msra.mxu0 0.0
  %3005 = vmatprep.subr.mxu0 0.0
  %3006 = vmatpush2.msra.mxu0 0.0
  %3007 = vmatprep.subr.mxu0 0.0
  %3008 = vmatpush2.msra.mxu0 0.0
  %3009 = vmatprep.subr.mxu0 0.0
  %3010 = vmatpush2.msra.mxu0 0.0
  %3011 = vmatprep.subr.mxu0 0.0
  %3012 = vmatpush2.msra.mxu0 0.0
  %3013 = vmatprep.subr.mxu0 0.0
  %3014 = vmatpush2.msra.mxu0 0.0
  %3015 = vmatprep.subr.mxu0 0.0
  %3016 = vmatpush2.msra.mxu0 0.0
  %3017 = vmatprep.subr.mxu0 0.0
  %3018 = vmatpush2.msra.mxu0 0.0
  %3019 = vmatprep.subr.mxu0 0.0
  %3020 = vmatpush2.msra.mxu0 0.0
  %3021 = vmatprep.subr.mxu0 0.0
  %3022 = vmatpush2.msra.mxu0 0.0
  %3023 = vmatprep.subr.mxu0 0.0
  %3024 = vmatpush2.msra.mxu0 0.0
  %3025 = vmatprep.subr.mxu0 0.0
  %3026 = vmatpush2.msra.mxu0 0.0
  %3027 = vmatprep.subr.mxu0 0.0
  %3028 = vmatpush2.msra.mxu0 0.0
  %3029 = vmatprep.subr.mxu0 0.0
  %3030 = vmatpush2.msra.mxu0 0.0
  %3031 = vmatprep.subr.mxu0 0.0
  %3032 = vmatpush2.msra.mxu0 0.0
  %3033 = vmatprep.mubr.f32.mxu0 0.0
  %3034 = vmatmul.mubr.f32.gmra.mxu0 %v2958
  %v3035 = vpop.f32.mrf.mxu0
  %v3036 = vadd.f32 0.0, %v3035
  %v3037 = vpop.f32.mrf.mxu0
  %3038 = vmatprep.mubr.f32.mxu0 0.0
  %3039 = vmatmul.mubr.f32.gmra.mxu0 %v2961
  %v3040 = vpop.f32.mrf.mxu0
  %v3041 = vadd.f32 0.0, %v3040
  %v3042 = vpop.f32.mrf.mxu0
  %3043 = vmatprep.mubr.f32.mxu0 0.0
  %3044 = vmatmul.mubr.f32.gmra.mxu0 %v2964
  %v3045 = vpop.f32.mrf.mxu0
  %v3046 = vadd.f32 0.0, %v3045
  %v3047 = vpop.f32.mrf.mxu0
  %3048 = vmatprep.mubr.f32.mxu0 0.0
  %3049 = vmatmul.mubr.f32.gmra.mxu0 %v2967
  %v3050 = vpop.f32.mrf.mxu0
  %v3051 = vadd.f32 0.0, %v3050
  %v3052 = vpop.f32.mrf.mxu0
  %3053 = vdwg.mxu0
  %3058 = vrot.lane.b32.xlu0 %v2480, 8
  %v3059 = vpop.permute.xlu0 %3058
  %3060 = vrot.lane.b32.xlu0 %v2485, 8
  %v3061 = vpop.permute.xlu0 %3060
  %3062 = vrot.lane.b32.xlu0 %v2490, 8
  %v3063 = vpop.permute.xlu0 %3062
  %3064 = vrot.lane.b32.xlu0 %v2495, 8
  %v3065 = vpop.permute.xlu0 %3064
  %3074 = vrot.lane.b32.xlu0 %v2758, 16
  %v3075 = vpop.permute.xlu0 %3074
  %3076 = vrot.lane.b32.xlu0 %v2763, 16
  %v3077 = vpop.permute.xlu0 %3076
  %3078 = vrot.lane.b32.xlu0 %v2768, 16
  %v3079 = vpop.permute.xlu0 %3078
  %3080 = vrot.lane.b32.xlu0 %v2773, 16
  %v3081 = vpop.permute.xlu0 %3080
  %3090 = vrot.lane.b32.xlu0 %v3036, 24
  %v3091 = vpop.permute.xlu0 %3090
  %3092 = vrot.lane.b32.xlu0 %v3041, 24
  %v3093 = vpop.permute.xlu0 %3092
  %3094 = vrot.lane.b32.xlu0 %v3046, 24
  %v3095 = vpop.permute.xlu0 %3094
  %3096 = vrot.lane.b32.xlu0 %v3051, 24
  %v3097 = vpop.permute.xlu0 %3096
  %v3102 = vsel %vm281, %v2202, %v3059
  %v3103 = vsel %vm281, %v2207, %v3061
  %v3104 = vsel %vm281, %v2212, %v3063
  %v3105 = vsel %vm281, %v2217, %v3065
  %v3106 = vsel %vm1430, %v3102, %v3075
  %v3107 = vsel %vm1430, %v3103, %v3077
  %v3108 = vsel %vm1430, %v3104, %v3079
  %v3109 = vsel %vm1430, %v3105, %v3081
  %v3110 = vsel %vm1435, %v3106, %v3091
  %v3111 = vsel %vm1435, %v3107, %v3093
  %v3112 = vsel %vm1435, %v3108, %v3095
  %v3113 = vsel %vm1435, %v3109, %v3097
  %v3115 = vsel %vm81, %v3110, 0
  %v3118 = vsel %vm81, %v3111, 0
  %v3121 = vsel %vm81, %v3112, 0
  %v3124 = vsel %vm81, %v3113, 0
  %3126 = vmatprep.subr.mxu0 0.0
  %3127 = vmatpush1.msra.mxu0 0.0
  %3128 = vmatprep.subr.mxu0 0.0
  %3129 = vmatpush1.msra.mxu0 0.0
  %3130 = vmatprep.subr.mxu0 0.0
  %3131 = vmatpush1.msra.mxu0 0.0
  %3132 = vmatprep.subr.mxu0 0.0
  %3133 = vmatpush1.msra.mxu0 0.0
  %3134 = vmatprep.subr.mxu0 0.0
  %3135 = vmatpush1.msra.mxu0 0.0
  %3136 = vmatprep.subr.mxu0 0.0
  %3137 = vmatpush1.msra.mxu0 0.0
  %3138 = vmatprep.subr.mxu0 0.0
  %3139 = vmatpush1.msra.mxu0 0.0
  %3140 = vmatprep.subr.mxu0 0.0
  %3141 = vmatpush1.msra.mxu0 0.0
  %3142 = vmatprep.subr.mxu0 0.0
  %3143 = vmatpush1.msra.mxu0 0.0
  %3144 = vmatprep.subr.mxu0 0.0
  %3145 = vmatpush1.msra.mxu0 0.0
  %3146 = vmatprep.subr.mxu0 0.0
  %3147 = vmatpush1.msra.mxu0 0.0
  %3148 = vmatprep.subr.mxu0 0.0
  %3149 = vmatpush1.msra.mxu0 0.0
  %3150 = vmatprep.subr.mxu0 0.0
  %3151 = vmatpush1.msra.mxu0 %v1443
  %3152 = vmatprep.subr.mxu0 0.0
  %3153 = vmatpush1.msra.mxu0 %v1442
  %3154 = vmatprep.subr.mxu0 0.0
  %3155 = vmatpush1.msra.mxu0 %v1441
  %3156 = vmatprep.subr.mxu0 0.0
  %3157 = vmatpush1.msra.mxu0 %v1440
  %3158 = vmatprep.subr.mxu0 0.0
  %3159 = vmatpush2.msra.mxu0 0.0
  %3160 = vmatprep.subr.mxu0 0.0
  %3161 = vmatpush2.msra.mxu0 0.0
  %3162 = vmatprep.subr.mxu0 0.0
  %3163 = vmatpush2.msra.mxu0 0.0
  %3164 = vmatprep.subr.mxu0 0.0
  %3165 = vmatpush2.msra.mxu0 0.0
  %3166 = vmatprep.subr.mxu0 0.0
  %3167 = vmatpush2.msra.mxu0 0.0
  %3168 = vmatprep.subr.mxu0 0.0
  %3169 = vmatpush2.msra.mxu0 0.0
  %3170 = vmatprep.subr.mxu0 0.0
  %3171 = vmatpush2.msra.mxu0 0.0
  %3172 = vmatprep.subr.mxu0 0.0
  %3173 = vmatpush2.msra.mxu0 0.0
  %3174 = vmatprep.subr.mxu0 0.0
  %3175 = vmatpush2.msra.mxu0 0.0
  %3176 = vmatprep.subr.mxu0 0.0
  %3177 = vmatpush2.msra.mxu0 0.0
  %3178 = vmatprep.subr.mxu0 0.0
  %3179 = vmatpush2.msra.mxu0 0.0
  %3180 = vmatprep.subr.mxu0 0.0
  %3181 = vmatpush2.msra.mxu0 0.0
  %3182 = vmatprep.subr.mxu0 0.0
  %3183 = vmatpush2.msra.mxu0 0.0
  %3184 = vmatprep.subr.mxu0 0.0
  %3185 = vmatpush2.msra.mxu0 0.0
  %3186 = vmatprep.subr.mxu0 0.0
  %3187 = vmatpush2.msra.mxu0 0.0
  %3188 = vmatprep.subr.mxu0 0.0
  %3189 = vmatpush2.msra.mxu0 0.0
  %3190 = vmatprep.mubr.f32.mxu0 0.0
  %3191 = vmatmul.mubr.f32.gmra.mxu0 %v3115
  %v3192 = vpop.f32.mrf.mxu0
  %v3193 = vadd.f32 %v1449, %v3192
  %v3194 = vpop.f32.mrf.mxu0
  %3195 = vmatprep.mubr.f32.mxu0 0.0
  %3196 = vmatmul.mubr.f32.gmra.mxu0 %v3118
  %v3197 = vpop.f32.mrf.mxu0
  %v3198 = vadd.f32 %v1449, %v3197
  %v3199 = vpop.f32.mrf.mxu0
  %3200 = vmatprep.mubr.f32.mxu0 0.0
  %3201 = vmatmul.mubr.f32.gmra.mxu0 %v3121
  %v3202 = vpop.f32.mrf.mxu0
  %v3203 = vadd.f32 %v1449, %v3202
  %v3204 = vpop.f32.mrf.mxu0
  %3205 = vmatprep.mubr.f32.mxu0 0.0
  %3206 = vmatmul.mubr.f32.gmra.mxu0 %v3124
  %v3207 = vpop.f32.mrf.mxu0
  %v3208 = vadd.f32 %v1449, %v3207
  %v3209 = vpop.f32.mrf.mxu0
  %3210 = vdwg.mxu0
  %v3211 = vadd.f32 %v1781, %v3193
  %v3212 = vadd.f32 %v1782, %v3198
  %v3213 = vadd.f32 %v1783, %v3203
  %v3214 = vadd.f32 %v1784, %v3208
  %v3215 = vld [vmem:[%s15] sm:$0xff]
  %v3216 = vld [vmem:[%s15 + $0x8] sm:$0xff]
  %v3217 = vld [vmem:[%s15 + $0x10] sm:$0xff]
  %v3218 = vld [vmem:[%s15 + $0x18] sm:$0xff]
  %v3219 = vld [vmem:[%s16] sm:$0x1]
  %v3221 = vlaneseq
  %v3222 = vshrl.u32 %v3221, 7
  %v3223 = vsub.s32 0, %v3222
  %v3224 = vrot.slane %v3219, %v3223
  %v3227 = vsel %vm81, %v3211, 0
  %v3230 = vsel %vm81, %v3212, 0
  %v3233 = vsel %vm81, %v3213, 0
  %v3236 = vsel %vm81, %v3214, 0
  %3238 = vmatprep.subr.mxu0 0.0
  %3239 = vmatpush1.msra.mxu0 0.0
  %3240 = vmatprep.subr.mxu0 0.0
  %3241 = vmatpush1.msra.mxu0 0.0
  %3242 = vmatprep.subr.mxu0 0.0
  %3243 = vmatpush1.msra.mxu0 0.0
  %3244 = vmatprep.subr.mxu0 0.0
  %3245 = vmatpush1.msra.mxu0 0.0
  %3246 = vmatprep.subr.mxu0 0.0
  %3247 = vmatpush1.msra.mxu0 0.0
  %3248 = vmatprep.subr.mxu0 0.0
  %3249 = vmatpush1.msra.mxu0 0.0
  %3250 = vmatprep.subr.mxu0 0.0
  %3251 = vmatpush1.msra.mxu0 0.0
  %3252 = vmatprep.subr.mxu0 0.0
  %3253 = vmatpush1.msra.mxu0 0.0
  %3254 = vmatprep.subr.mxu0 0.0
  %3255 = vmatpush1.msra.mxu0 0.0
  %3256 = vmatprep.subr.mxu0 0.0
  %3257 = vmatpush1.msra.mxu0 0.0
  %3258 = vmatprep.subr.mxu0 0.0
  %3259 = vmatpush1.msra.mxu0 0.0
  %3260 = vmatprep.subr.mxu0 0.0
  %3261 = vmatpush1.msra.mxu0 0.0
  %3262 = vmatprep.subr.mxu0 0.0
  %3263 = vmatpush1.msra.mxu0 %v3218
  %3264 = vmatprep.subr.mxu0 0.0
  %3265 = vmatpush1.msra.mxu0 %v3217
  %3266 = vmatprep.subr.mxu0 0.0
  %3267 = vmatpush1.msra.mxu0 %v3216
  %3268 = vmatprep.subr.mxu0 0.0
  %3269 = vmatpush1.msra.mxu0 %v3215
  %3270 = vmatprep.subr.mxu0 0.0
  %3271 = vmatpush2.msra.mxu0 0.0
  %3272 = vmatprep.subr.mxu0 0.0
  %3273 = vmatpush2.msra.mxu0 0.0
  %3274 = vmatprep.subr.mxu0 0.0
  %3275 = vmatpush2.msra.mxu0 0.0
  %3276 = vmatprep.subr.mxu0 0.0
  %3277 = vmatpush2.msra.mxu0 0.0
  %3278 = vmatprep.subr.mxu0 0.0
  %3279 = vmatpush2.msra.mxu0 0.0
  %3280 = vmatprep.subr.mxu0 0.0
  %3281 = vmatpush2.msra.mxu0 0.0
  %3282 = vmatprep.subr.mxu0 0.0
  %3283 = vmatpush2.msra.mxu0 0.0
  %3284 = vmatprep.subr.mxu0 0.0
  %3285 = vmatpush2.msra.mxu0 0.0
  %3286 = vmatprep.subr.mxu0 0.0
  %3287 = vmatpush2.msra.mxu0 0.0
  %3288 = vmatprep.subr.mxu0 0.0
  %3289 = vmatpush2.msra.mxu0 0.0
  %3290 = vmatprep.subr.mxu0 0.0
  %3291 = vmatpush2.msra.mxu0 0.0
  %3292 = vmatprep.subr.mxu0 0.0
  %3293 = vmatpush2.msra.mxu0 0.0
  %3294 = vmatprep.subr.mxu0 0.0
  %3295 = vmatpush2.msra.mxu0 0.0
  %3296 = vmatprep.subr.mxu0 0.0
  %3297 = vmatpush2.msra.mxu0 0.0
  %3298 = vmatprep.subr.mxu0 0.0
  %3299 = vmatpush2.msra.mxu0 0.0
  %3300 = vmatprep.subr.mxu0 0.0
  %3301 = vmatpush2.msra.mxu0 0.0
  %3302 = vmatprep.mubr.f32.mxu0 0.0
  %3303 = vmatmul.mubr.f32.gmra.mxu0 %v3227
  %v3304 = vpop.f32.mrf.mxu0
  %v3305 = vadd.f32 %v3224, %v3304
  %v3306 = vpop.f32.mrf.mxu0
  %3307 = vmatprep.mubr.f32.mxu0 0.0
  %3308 = vmatmul.mubr.f32.gmra.mxu0 %v3230
  %v3309 = vpop.f32.mrf.mxu0
  %v3310 = vadd.f32 %v3224, %v3309
  %v3311 = vpop.f32.mrf.mxu0
  %3312 = vmatprep.mubr.f32.mxu0 0.0
  %3313 = vmatmul.mubr.f32.gmra.mxu0 %v3233
  %v3314 = vpop.f32.mrf.mxu0
  %v3315 = vadd.f32 %v3224, %v3314
  %v3316 = vpop.f32.mrf.mxu0
  %3317 = vmatprep.mubr.f32.mxu0 0.0
  %3318 = vmatmul.mubr.f32.gmra.mxu0 %v3236
  %v3319 = vpop.f32.mrf.mxu0
  %v3320 = vadd.f32 %v3224, %v3319
  %v3321 = vpop.f32.mrf.mxu0
  %3322 = vdwg.mxu0
  %v3323 = vmul.f32 %v3305, 0.5
  %v3324 = vmul.f32 %v3310, 0.5
  %v3325 = vmul.f32 %v3315, 0.5
  %v3326 = vmul.f32 %v3320, 0.5
  %v3327 = vmul.f32 %v3305, 0.70710677
  %v3328 = vmul.f32 %v3310, 0.70710677
  %v3329 = vmul.f32 %v3315, 0.70710677
  %v3330 = vmul.f32 %v3320, 0.70710677
  %v3331 = verf.f32.pop %v3327
  %v3332 = verf.f32.pop %v3328
  %v3333 = verf.f32.pop %v3329
  %v3334 = verf.f32.pop %v3330
  %v3335 = vadd.f32 %v3331, 1.0
  %v3336 = vadd.f32 %v3332, 1.0
  %v3337 = vadd.f32 %v3333, 1.0
  %v3338 = vadd.f32 %v3334, 1.0
  %v3339 = vmul.f32 %v3323, %v3335
  %v3340 = vmul.f32 %v3324, %v3336
  %v3341 = vmul.f32 %v3325, %v3337
  %v3342 = vmul.f32 %v3326, %v3338
  %v3343 = vld [vmem:[%s17] sm:$0xff]
  %v3344 = vld [vmem:[%s18] sm:$0x1]
  %v3346 = vlaneseq
  %v3347 = vshrl.u32 %v3346, 7
  %v3348 = vsub.s32 0, %v3347
  %v3349 = vrot.slane %v3344, %v3348
  %v3352 = vsel %vm281, %v3339, 0
  %v3355 = vsel %vm281, %v3340, 0
  %v3358 = vsel %vm281, %v3341, 0
  %v3361 = vsel %vm281, %v3342, 0
  %3363 = vmatprep.subr.mxu0 0.0
  %3364 = vmatpush1.msra.mxu0 0.0
  %3365 = vmatprep.subr.mxu0 0.0
  %3366 = vmatpush1.msra.mxu0 0.0
  %3367 = vmatprep.subr.mxu0 0.0
  %3368 = vmatpush1.msra.mxu0 0.0
  %3369 = vmatprep.subr.mxu0 0.0
  %3370 = vmatpush1.msra.mxu0 0.0
  %3371 = vmatprep.subr.mxu0 0.0
  %3372 = vmatpush1.msra.mxu0 0.0
  %3373 = vmatprep.subr.mxu0 0.0
  %3374 = vmatpush1.msra.mxu0 0.0
  %3375 = vmatprep.subr.mxu0 0.0
  %3376 = vmatpush1.msra.mxu0 0.0
  %3377 = vmatprep.subr.mxu0 0.0
  %3378 = vmatpush1.msra.mxu0 0.0
  %3379 = vmatprep.subr.mxu0 0.0
  %3380 = vmatpush1.msra.mxu0 0.0
  %3381 = vmatprep.subr.mxu0 0.0
  %3382 = vmatpush1.msra.mxu0 0.0
  %3383 = vmatprep.subr.mxu0 0.0
  %3384 = vmatpush1.msra.mxu0 0.0
  %3385 = vmatprep.subr.mxu0 0.0
  %3386 = vmatpush1.msra.mxu0 0.0
  %3387 = vmatprep.subr.mxu0 0.0
  %3388 = vmatpush1.msra.mxu0 0.0
  %3389 = vmatprep.subr.mxu0 0.0
  %3390 = vmatpush1.msra.mxu0 0.0
  %3391 = vmatprep.subr.mxu0 0.0
  %3392 = vmatpush1.msra.mxu0 0.0
  %3393 = vmatprep.subr.mxu0 0.0
  %3394 = vmatpush1.msra.mxu0 %v3343
  %3395 = vmatprep.subr.mxu0 0.0
  %3396 = vmatpush2.msra.mxu0 0.0
  %3397 = vmatprep.subr.mxu0 0.0
  %3398 = vmatpush2.msra.mxu0 0.0
  %3399 = vmatprep.subr.mxu0 0.0
  %3400 = vmatpush2.msra.mxu0 0.0
  %3401 = vmatprep.subr.mxu0 0.0
  %3402 = vmatpush2.msra.mxu0 0.0
  %3403 = vmatprep.subr.mxu0 0.0
  %3404 = vmatpush2.msra.mxu0 0.0
  %3405 = vmatprep.subr.mxu0 0.0
  %3406 = vmatpush2.msra.mxu0 0.0
  %3407 = vmatprep.subr.mxu0 0.0
  %3408 = vmatpush2.msra.mxu0 0.0
  %3409 = vmatprep.subr.mxu0 0.0
  %3410 = vmatpush2.msra.mxu0 0.0
  %3411 = vmatprep.subr.mxu0 0.0
  %3412 = vmatpush2.msra.mxu0 0.0
  %3413 = vmatprep.subr.mxu0 0.0
  %3414 = vmatpush2.msra.mxu0 0.0
  %3415 = vmatprep.subr.mxu0 0.0
  %3416 = vmatpush2.msra.mxu0 0.0
  %3417 = vmatprep.subr.mxu0 0.0
  %3418 = vmatpush2.msra.mxu0 0.0
  %3419 = vmatprep.subr.mxu0 0.0
  %3420 = vmatpush2.msra.mxu0 0.0
  %3421 = vmatprep.subr.mxu0 0.0
  %3422 = vmatpush2.msra.mxu0 0.0
  %3423 = vmatprep.subr.mxu0 0.0
  %3424 = vmatpush2.msra.mxu0 0.0
  %3425 = vmatprep.subr.mxu0 0.0
  %3426 = vmatpush2.msra.mxu0 0.0
  %3427 = vmatprep.mubr.f32.mxu0 0.0
  %3428 = vmatmul.mubr.f32.gmra.mxu0 %v3352
  %v3429 = vpop.f32.mrf.mxu0
  %v3430 = vadd.f32 %v3349, %v3429
  %v3431 = vpop.f32.mrf.mxu0
  %3432 = vmatprep.mubr.f32.mxu0 0.0
  %3433 = vmatmul.mubr.f32.gmra.mxu0 %v3355
  %v3434 = vpop.f32.mrf.mxu0
  %v3435 = vadd.f32 %v3349, %v3434
  %v3436 = vpop.f32.mrf.mxu0
  %3437 = vmatprep.mubr.f32.mxu0 0.0
  %3438 = vmatmul.mubr.f32.gmra.mxu0 %v3358
  %v3439 = vpop.f32.mrf.mxu0
  %v3440 = vadd.f32 %v3349, %v3439
  %v3441 = vpop.f32.mrf.mxu0
  %3442 = vmatprep.mubr.f32.mxu0 0.0
  %3443 = vmatmul.mubr.f32.gmra.mxu0 %v3361
  %v3444 = vpop.f32.mrf.mxu0
  %v3445 = vadd.f32 %v3349, %v3444
  %v3446 = vpop.f32.mrf.mxu0
  %3447 = vdwg.mxu0
  %v3448 = vadd.f32 %v3211, %v3430
  %v3449 = vadd.f32 %v3212, %v3435
  %v3450 = vadd.f32 %v3213, %v3440
  %v3451 = vadd.f32 %v3214, %v3445
  %v3452 = vsel %vm81, %v3448, 0.0
  %3453 = vadd.xlane.f32.xlu0 %v3452
  %v3454 = vpop.xlane.xlu0 %3453
  %v3455 = vsel %vm81, %v3449, 0.0
  %3456 = vadd.xlane.f32.xlu0 %v3455
  %v3457 = vpop.xlane.xlu0 %3456
  %v3458 = vsel %vm81, %v3450, 0.0
  %3459 = vadd.xlane.f32.xlu0 %v3458
  %v3460 = vpop.xlane.xlu0 %3459
  %v3461 = vsel %vm81, %v3451, 0.0
  %3462 = vadd.xlane.f32.xlu0 %v3461
  %v3463 = vpop.xlane.xlu0 %3462
  %v3464 = vmul.f32 %v3454, %v94
  %v3465 = vmul.f32 %v3457, %v94
  %v3466 = vmul.f32 %v3460, %v94
  %v3467 = vmul.f32 %v3463, %v94
  %v3468 = vsub.f32 %v3448, %v3464
  %v3469 = vsub.f32 %v3449, %v3465
  %v3470 = vsub.f32 %v3450, %v3466
  %v3471 = vsub.f32 %v3451, %v3467
  %v3472 = vmul.f32 %v3468, %v3468
  %v3473 = vmul.f32 %v3469, %v3469
  %v3474 = vmul.f32 %v3470, %v3470
  %v3475 = vmul.f32 %v3471, %v3471
  %v3476 = vsel %vm81, %v3472, 0.0
  %3477 = vadd.xlane.f32.xlu0 %v3476
  %v3478 = vpop.xlane.xlu0 %3477
  %v3479 = vsel %vm81, %v3473, 0.0
  %3480 = vadd.xlane.f32.xlu0 %v3479
  %v3481 = vpop.xlane.xlu0 %3480
  %v3482 = vsel %vm81, %v3474, 0.0
  %3483 = vadd.xlane.f32.xlu0 %v3482
  %v3484 = vpop.xlane.xlu0 %3483
  %v3485 = vsel %vm81, %v3475, 0.0
  %3486 = vadd.xlane.f32.xlu0 %v3485
  %v3487 = vpop.xlane.xlu0 %3486
  %v3488 = vmul.f32 %v3478, %v94
  %v3489 = vmul.f32 %v3481, %v94
  %v3490 = vmul.f32 %v3484, %v94
  %v3491 = vmul.f32 %v3487, %v94
  %v3492 = vadd.f32 %v3488, 1e-05
  %v3493 = vadd.f32 %v3489, 1e-05
  %v3494 = vadd.f32 %v3490, 1e-05
  %v3495 = vadd.f32 %v3491, 1e-05
  %v3496 = vrsqrt.pop %v3492
  %v3497 = vrsqrt.pop %v3493
  %v3498 = vrsqrt.pop %v3494
  %v3499 = vrsqrt.pop %v3495
  %v3500 = vmul.f32 %v3468, %v3496
  %v3501 = vmul.f32 %v3469, %v3497
  %v3502 = vmul.f32 %v3470, %v3498
  %v3503 = vmul.f32 %v3471, %v3499
  %v3504 = vld [vmem:[%s9] sm:$0x1]
  %v3506 = vlaneseq
  %v3507 = vshrl.u32 %v3506, 7
  %v3508 = vsub.s32 0, %v3507
  %v3509 = vrot.slane %v3504, %v3508
  %v3511 = vmul.f32 %v3500, %v3509
  %v3512 = vmul.f32 %v3501, %v3509
  %v3513 = vmul.f32 %v3502, %v3509
  %v3514 = vmul.f32 %v3503, %v3509
  %v3515 = vld [vmem:[%s10] sm:$0x1]
  %v3517 = vlaneseq
  %v3518 = vshrl.u32 %v3517, 7
  %v3519 = vsub.s32 0, %v3518
  %v3520 = vrot.slane %v3515, %v3519
  %v3522 = vadd.f32 %v3511, %v3520
  %v3523 = vadd.f32 %v3512, %v3520
  %v3524 = vadd.f32 %v3513, %v3520
  %v3525 = vadd.f32 %v3514, %v3520
  %v3526 = vld [vmem:[%s19] sm:$0xff]
  %v3527 = vld [vmem:[%s19 + $0x8] sm:$0xff]
  %v3528 = vld [vmem:[%s19 + $0x10] sm:$0xff]
  %v3529 = vld [vmem:[%s19 + $0x18] sm:$0xff]
  %v3530 = vld [vmem:[%s20] sm:$0x1]
  %v3532 = vlaneseq
  %v3533 = vshrl.u32 %v3532, 7
  %v3534 = vsub.s32 0, %v3533
  %v3535 = vrot.slane %v3530, %v3534
  %v3538 = vsel %vm81, %v3522, 0
  %v3541 = vsel %vm81, %v3523, 0
  %v3544 = vsel %vm81, %v3524, 0
  %v3547 = vsel %vm81, %v3525, 0
  %3549 = vmatprep.subr.mxu0 0.0
  %3550 = vmatpush1.msra.mxu0 0.0
  %3551 = vmatprep.subr.mxu0 0.0
  %3552 = vmatpush1.msra.mxu0 0.0
  %3553 = vmatprep.subr.mxu0 0.0
  %3554 = vmatpush1.msra.mxu0 0.0
  %3555 = vmatprep.subr.mxu0 0.0
  %3556 = vmatpush1.msra.mxu0 0.0
  %3557 = vmatprep.subr.mxu0 0.0
  %3558 = vmatpush1.msra.mxu0 0.0
  %3559 = vmatprep.subr.mxu0 0.0
  %3560 = vmatpush1.msra.mxu0 0.0
  %3561 = vmatprep.subr.mxu0 0.0
  %3562 = vmatpush1.msra.mxu0 0.0
  %3563 = vmatprep.subr.mxu0 0.0
  %3564 = vmatpush1.msra.mxu0 0.0
  %3565 = vmatprep.subr.mxu0 0.0
  %3566 = vmatpush1.msra.mxu0 0.0
  %3567 = vmatprep.subr.mxu0 0.0
  %3568 = vmatpush1.msra.mxu0 0.0
  %3569 = vmatprep.subr.mxu0 0.0
  %3570 = vmatpush1.msra.mxu0 0.0
  %3571 = vmatprep.subr.mxu0 0.0
  %3572 = vmatpush1.msra.mxu0 0.0
  %3573 = vmatprep.subr.mxu0 0.0
  %3574 = vmatpush1.msra.mxu0 %v3529
  %3575 = vmatprep.subr.mxu0 0.0
  %3576 = vmatpush1.msra.mxu0 %v3528
  %3577 = vmatprep.subr.mxu0 0.0
  %3578 = vmatpush1.msra.mxu0 %v3527
  %3579 = vmatprep.subr.mxu0 0.0
  %3580 = vmatpush1.msra.mxu0 %v3526
  %3581 = vmatprep.subr.mxu0 0.0
  %3582 = vmatpush2.msra.mxu0 0.0
  %3583 = vmatprep.subr.mxu0 0.0
  %3584 = vmatpush2.msra.mxu0 0.0
  %3585 = vmatprep.subr.mxu0 0.0
  %3586 = vmatpush2.msra.mxu0 0.0
  %3587 = vmatprep.subr.mxu0 0.0
  %3588 = vmatpush2.msra.mxu0 0.0
  %3589 = vmatprep.subr.mxu0 0.0
  %3590 = vmatpush2.msra.mxu0 0.0
  %3591 = vmatprep.subr.mxu0 0.0
  %3592 = vmatpush2.msra.mxu0 0.0
  %3593 = vmatprep.subr.mxu0 0.0
  %3594 = vmatpush2.msra.mxu0 0.0
  %3595 = vmatprep.subr.mxu0 0.0
  %3596 = vmatpush2.msra.mxu0 0.0
  %3597 = vmatprep.subr.mxu0 0.0
  %3598 = vmatpush2.msra.mxu0 0.0
  %3599 = vmatprep.subr.mxu0 0.0
  %3600 = vmatpush2.msra.mxu0 0.0
  %3601 = vmatprep.subr.mxu0 0.0
  %3602 = vmatpush2.msra.mxu0 0.0
  %3603 = vmatprep.subr.mxu0 0.0
  %3604 = vmatpush2.msra.mxu0 0.0
  %3605 = vmatprep.subr.mxu0 0.0
  %3606 = vmatpush2.msra.mxu0 0.0
  %3607 = vmatprep.subr.mxu0 0.0
  %3608 = vmatpush2.msra.mxu0 0.0
  %3609 = vmatprep.subr.mxu0 0.0
  %3610 = vmatpush2.msra.mxu0 0.0
  %3611 = vmatprep.subr.mxu0 0.0
  %3612 = vmatpush2.msra.mxu0 0.0
  %3613 = vmatprep.mubr.f32.mxu0 0.0
  %3614 = vmatmul.mubr.f32.gmra.mxu0 %v3538
  %v3615 = vpop.f32.mrf.mxu0
  %v3616 = vadd.f32 %v3535, %v3615
  %v3617 = vpop.f32.mrf.mxu0
  %3618 = vmatprep.mubr.f32.mxu0 0.0
  %3619 = vmatmul.mubr.f32.gmra.mxu0 %v3541
  %v3620 = vpop.f32.mrf.mxu0
  %v3621 = vadd.f32 %v3535, %v3620
  %v3622 = vpop.f32.mrf.mxu0
  %3623 = vmatprep.mubr.f32.mxu0 0.0
  %3624 = vmatmul.mubr.f32.gmra.mxu0 %v3544
  %v3625 = vpop.f32.mrf.mxu0
  %v3626 = vadd.f32 %v3535, %v3625
  %v3627 = vpop.f32.mrf.mxu0
  %3628 = vmatprep.mubr.f32.mxu0 0.0
  %3629 = vmatmul.mubr.f32.gmra.mxu0 %v3547
  %v3630 = vpop.f32.mrf.mxu0
  %v3631 = vadd.f32 %v3535, %v3630
  %v3632 = vpop.f32.mrf.mxu0
  %3633 = vdwg.mxu0
  %v3634 = vmul.f32 %v3616, 1.702
  %v3635 = vmul.f32 %v3621, 1.702
  %v3636 = vmul.f32 %v3626, 1.702
  %v3637 = vmul.f32 %v3631, 1.702
  %v3638 = vxor.u32 %v3634, 2147483648
  %v3639 = vxor.u32 %v3635, 2147483648
  %v3640 = vxor.u32 %v3636, 2147483648
  %v3641 = vxor.u32 %v3637, 2147483648
  %v3642 = vmul.f32 %v3638, 1.442695
  %v3643 = vpow.pop %v3642
  %v3644 = vmul.f32 %v3639, 1.442695
  %v3645 = vpow.pop %v3644
  %v3646 = vmul.f32 %v3640, 1.442695
  %v3647 = vpow.pop %v3646
  %v3648 = vmul.f32 %v3641, 1.442695
  %v3649 = vpow.pop %v3648
  %v3650 = vadd.f32 %v3643, 1.0
  %v3651 = vadd.f32 %v3645, 1.0
  %v3652 = vadd.f32 %v3647, 1.0
  %v3653 = vadd.f32 %v3649, 1.0
  %v3654 = vrcp.pop %v3650
  %v3655 = vmul.f32 1.0, %v3654
  %v3656 = vrcp.pop %v3651
  %v3657 = vmul.f32 1.0, %v3656
  %v3658 = vrcp.pop %v3652
  %v3659 = vmul.f32 1.0, %v3658
  %v3660 = vrcp.pop %v3653
  %v3661 = vmul.f32 1.0, %v3660
  %v3662 = vmul.f32 %v3616, %v3655
  %v3663 = vmul.f32 %v3621, %v3657
  %v3664 = vmul.f32 %v3626, %v3659
  %v3665 = vmul.f32 %v3631, %v3661
  %v3666 = vld [vmem:[%s21] sm:$0xff]
  %v3667 = vld [vmem:[%s21 + $0x8] sm:$0xff]
  %v3668 = vld [vmem:[%s21 + $0x10] sm:$0xff]
  %v3669 = vld [vmem:[%s21 + $0x18] sm:$0xff]
  %v3670 = vld [vmem:[%s21 + $0x20] sm:$0xff]
  %v3671 = vld [vmem:[%s21 + $0x28] sm:$0xff]
  %v3672 = vld [vmem:[%s21 + $0x30] sm:$0xff]
  %v3673 = vld [vmem:[%s21 + $0x38] sm:$0xff]
  %v3674 = vld [vmem:[%s21 + $0x40] sm:$0xff]
  %v3675 = vld [vmem:[%s21 + $0x48] sm:$0xff]
  %v3676 = vld [vmem:[%s21 + $0x50] sm:$0xff]
  %v3677 = vld [vmem:[%s21 + $0x58] sm:$0xff]
  %v3678 = vld [vmem:[%s21 + $0x60] sm:$0xff]
  %v3679 = vld [vmem:[%s21 + $0x68] sm:$0xff]
  %v3680 = vld [vmem:[%s21 + $0x70] sm:$0xff]
  %v3681 = vld [vmem:[%s21 + $0x78] sm:$0xff]
  %3682 = vmatprep.subr.mxu0 0.0
  %3683 = vmatpush1.msra.mxu0 %v3681
  %3684 = vmatprep.subr.mxu0 0.0
  %3685 = vmatpush1.msra.mxu0 %v3680
  %3686 = vmatprep.subr.mxu0 0.0
  %3687 = vmatpush1.msra.mxu0 %v3679
  %3688 = vmatprep.subr.mxu0 0.0
  %3689 = vmatpush1.msra.mxu0 %v3678
  %3690 = vmatprep.subr.mxu0 0.0
  %3691 = vmatpush1.msra.mxu0 %v3677
  %3692 = vmatprep.subr.mxu0 0.0
  %3693 = vmatpush1.msra.mxu0 %v3676
  %3694 = vmatprep.subr.mxu0 0.0
  %3695 = vmatpush1.msra.mxu0 %v3675
  %3696 = vmatprep.subr.mxu0 0.0
  %3697 = vmatpush1.msra.mxu0 %v3674
  %3698 = vmatprep.subr.mxu0 0.0
  %3699 = vmatpush1.msra.mxu0 %v3673
  %3700 = vmatprep.subr.mxu0 0.0
  %3701 = vmatpush1.msra.mxu0 %v3672
  %3702 = vmatprep.subr.mxu0 0.0
  %3703 = vmatpush1.msra.mxu0 %v3671
  %3704 = vmatprep.subr.mxu0 0.0
  %3705 = vmatpush1.msra.mxu0 %v3670
  %3706 = vmatprep.subr.mxu0 0.0
  %3707 = vmatpush1.msra.mxu0 %v3669
  %3708 = vmatprep.subr.mxu0 0.0
  %3709 = vmatpush1.msra.mxu0 %v3668
  %3710 = vmatprep.subr.mxu0 0.0
  %3711 = vmatpush1.msra.mxu0 %v3667
  %3712 = vmatprep.subr.mxu0 0.0
  %3713 = vmatpush1.msra.mxu0 %v3666
  %3714 = vmatprep.subr.mxu0 0.0
  %3715 = vmatpush2.msra.mxu0 0.0
  %3716 = vmatprep.subr.mxu0 0.0
  %3717 = vmatpush2.msra.mxu0 0.0
  %3718 = vmatprep.subr.mxu0 0.0
  %3719 = vmatpush2.msra.mxu0 0.0
  %3720 = vmatprep.subr.mxu0 0.0
  %3721 = vmatpush2.msra.mxu0 0.0
  %3722 = vmatprep.subr.mxu0 0.0
  %3723 = vmatpush2.msra.mxu0 0.0
  %3724 = vmatprep.subr.mxu0 0.0
  %3725 = vmatpush2.msra.mxu0 0.0
  %3726 = vmatprep.subr.mxu0 0.0
  %3727 = vmatpush2.msra.mxu0 0.0
  %3728 = vmatprep.subr.mxu0 0.0
  %3729 = vmatpush2.msra.mxu0 0.0
  %3730 = vmatprep.subr.mxu0 0.0
  %3731 = vmatpush2.msra.mxu0 0.0
  %3732 = vmatprep.subr.mxu0 0.0
  %3733 = vmatpush2.msra.mxu0 0.0
  %3734 = vmatprep.subr.mxu0 0.0
  %3735 = vmatpush2.msra.mxu0 0.0
  %3736 = vmatprep.subr.mxu0 0.0
  %3737 = vmatpush2.msra.mxu0 0.0
  %3738 = vmatprep.subr.mxu0 0.0
  %3739 = vmatpush2.msra.mxu0 0.0
  %3740 = vmatprep.subr.mxu0 0.0
  %3741 = vmatpush2.msra.mxu0 0.0
  %3742 = vmatprep.subr.mxu0 0.0
  %3743 = vmatpush2.msra.mxu0 0.0
  %3744 = vmatprep.subr.mxu0 0.0
  %3745 = vmatpush2.msra.mxu0 0.0
  %3746 = vmatprep.mubr.f32.mxu0 0.0
  %3747 = vmatmul.mubr.f32.gmra.mxu0 %v3662
  %v3748 = vpop.f32.mrf.mxu0
  %v3749 = vadd.f32 0.0, %v3748
  %v3750 = vpop.f32.mrf.mxu0
  %3751 = vmatprep.mubr.f32.mxu0 0.0
  %3752 = vmatmul.mubr.f32.gmra.mxu0 %v3663
  %v3753 = vpop.f32.mrf.mxu0
  %v3754 = vadd.f32 0.0, %v3753
  %v3755 = vpop.f32.mrf.mxu0
  %3756 = vmatprep.mubr.f32.mxu0 0.0
  %3757 = vmatmul.mubr.f32.gmra.mxu0 %v3664
  %v3758 = vpop.f32.mrf.mxu0
  %v3759 = vadd.f32 0.0, %v3758
  %v3760 = vpop.f32.mrf.mxu0
  %3761 = vmatprep.mubr.f32.mxu0 0.0
  %3762 = vmatmul.mubr.f32.gmra.mxu0 %v3665
  %v3763 = vpop.f32.mrf.mxu0
  %v3764 = vadd.f32 0.0, %v3763
  %v3765 = vpop.f32.mrf.mxu0
  %3766 = vdwg.mxu0
  %v3767 = vadd.f32 %v3448, %v3749
  %v3768 = vadd.f32 %v3449, %v3754
  %v3769 = vadd.f32 %v3450, %v3759
  %v3770 = vadd.f32 %v3451, %v3764
  %v3771 = vld [vmem:[%s22] sm:$0x1]
  %v3773 = vlaneseq
  %v3774 = vshrl.u32 %v3773, 7
  %v3775 = vsub.s32 0, %v3774
  %v3776 = vrot.slane %v3771, %v3775
  %v3778 = vadd.f32 %v3767, %v3776
  %v3779 = vadd.f32 %v3768, %v3776
  %v3780 = vadd.f32 %v3769, %v3776
  %v3781 = vadd.f32 %v3770, %v3776
  %3783 = vrot.lane.b32.xlu0 %v3779, 32
  %v3784 = vpop.permute.xlu0 %3783
  %3787 = vrot.lane.b32.xlu0 %v3780, 64
  %v3788 = vpop.permute.xlu0 %3787
  %3791 = vrot.lane.b32.xlu0 %v3781, 96
  %v3792 = vpop.permute.xlu0 %3791
  %v3794 = vsel %vm81, %v3778, %v3784
  %vm3795 = vcmask 523264
  %v3796 = vsel %vm3795, %v3794, %v3788
  %vm3797 = vcmask 785408
  %v3798 = vsel %vm3797, %v3796, %v3792
  %3799 = vst [vmem:[%s23] sm:$0xff] %v3798
  // Predicated region
  $region94: #{residual_attention_block_forward.1} parent=0 // pred_check
    _
  $region95: #{residual_attention_block_forward.1} parent=0 // pred_check_branch
    %3801 = sbr.rel (0) target = $region97
  $region96: #{residual_attention_block_forward.1} parent=0 // pred_region
    _
  $region97: #{residual_attention_block_forward.1} parent=0 // pred_fallthru
    _
  // Predicated region
  $region98: #{residual_attention_block_forward.1} parent=0 // pred_check
    _
  $region99: #{residual_attention_block_forward.1} parent=0 // pred_check_branch
    %3803 = sbr.rel (0) target = $region101
  $region100: #{residual_attention_block_forward.1} parent=0 // pred_region
    _
  $region101: #{residual_attention_block_forward.1} parent=0 // pred_fallthru
    _

</llo_original>
